<compile_context>
chip_gen: v7x
topology: tpu7x:2x2x1
jax: 0.10.0
libtpu: 0.0.40
codegen_flags: <defaults>
</compile_context>

<pallas_src>
import functools

import numpy as np
import jax
import jax.numpy as jnp
from jax import lax
from jax.experimental import pallas as pl
from jax.experimental.pallas import tpu as pltpu


# ----------------------------------------------------------------------------
# Fused kernel: (embedding+input proj) -> fused BiGRU -> attention -> pool -> fc
# (time-major flat rows: row index = t * B + b, B padded to 8)
# ----------------------------------------------------------------------------
def _fused_kernel(T, B, idx_ref, wgate_ref, watt_ref, attw_ref, wfc_ref,
                  brow_ref, out_ref):
    f32 = jnp.float32
    SW = 128                 # padded state width: [hf(32) | hb(32) | 0-pad(64)]
    GW = 3 * SW              # gate width: r | z | n, each one full lane tile
    VPAD = 64                # per-direction one-hot slot width
    TB = T * B
    bshift = (B - 1).bit_length()          # B is a power of two (8)

    # ---- fused embedding gather + input projection: one one-hot matmul ----
    idx = idx_ref[...]                                                # [TB, 2]
    iota_v = lax.broadcasted_iota(jnp.int32, (TB, 2 * VPAD), 1)
    onehot = jnp.logical_or(iota_v == idx[:, 0:1],
                            iota_v == (idx[:, 1:2] + VPAD)).astype(f32)  # [TB,128]

    we2 = wgate_ref[0:SW, :]          # vocab -> gates (embedding pre-folded)
    wh2 = wgate_ref[SW:2 * SW, :]     # block-diagonal recurrent weights
    b_gi = brow_ref[0:1, 0:GW]
    b_hn = brow_ref[1:2, 0:SW]
    b_att = brow_ref[2:3, :]
    b_fc = brow_ref[3:4, 0:2]

    gi_all = jnp.dot(onehot, we2, preferred_element_type=f32) + b_gi  # [TB, GW]

    # ---- fused bidirectional recurrence (fwd chain lanes 0:H, reversed bwd
    #      chain lanes H:2H, pad lanes stay exactly zero) ----
    h2 = jnp.zeros((B, SW), f32)
    hs = []
    for s in range(T):
        gi_t = gi_all[s * B:(s + 1) * B, :]                           # [8, GW] aligned
        gh = jnp.dot(h2, wh2, preferred_element_type=f32)             # [B, GW]
        r = jax.nn.sigmoid(gi_t[:, 0:SW] + gh[:, 0:SW])
        z = jax.nn.sigmoid(gi_t[:, SW:2 * SW] + gh[:, SW:2 * SW])
        n = jnp.tanh(gi_t[:, 2 * SW:GW] + r * (gh[:, 2 * SW:GW] + b_hn))
        h2 = (1.0 - z) * n + z * h2
        hs.append(h2)

    h_fwd = jnp.concatenate(hs, axis=0)         # row s*B+b: [hf_s | hb_{T-1-s}]
    h_rev = jnp.concatenate(hs[::-1], axis=0)   # row s*B+b: [hf_{T-1-s} | hb_s]

    # ---- attention projection (ATT 500 padded to 512 with zeros, exact) ----
    wa_f = watt_ref[0:SW, :]
    wa_b = watt_ref[SW:2 * SW, :]
    u = jnp.tanh(jnp.dot(h_fwd, wa_f, preferred_element_type=f32)
                 + jnp.dot(h_rev, wa_b, preferred_element_type=f32) + b_att)
    s_col = jnp.dot(u, attw_ref[...], preferred_element_type=f32)     # [TB, 1]

    # ---- time softmax via iota-built selection matmuls ----
    row_r = lax.broadcasted_iota(jnp.int32, (TB, T), 0)
    col_t = lax.broadcasted_iota(jnp.int32, (TB, T), 1)
    E = (jnp.right_shift(row_r, bshift) == col_t).astype(f32)         # [TB, T]
    row_b = lax.broadcasted_iota(jnp.int32, (B, TB), 0)
    col_r = lax.broadcasted_iota(jnp.int32, (B, TB), 1)
    P = (jnp.bitwise_and(col_r, B - 1) == row_b).astype(f32)          # [B, TB]
    row_t2 = lax.broadcasted_iota(jnp.int32, (T, TB), 0)
    col_r2 = lax.broadcasted_iota(jnp.int32, (T, TB), 1)
    E2 = (jnp.right_shift(col_r2, bshift) == row_t2).astype(f32)      # [T, TB]

    scores = jnp.dot(P, s_col * E, preferred_element_type=f32)        # [B, T]
    m = jnp.max(scores, axis=1, keepdims=True)
    e = jnp.exp(scores - m)
    att = e / jnp.sum(e, axis=1, keepdims=True)                       # [B, T]

    # ---- attention-weighted pooling as two MXU matmuls ----
    a_mat = P * jnp.dot(att, E2, preferred_element_type=f32)          # [B, TB]
    pooled_f = jnp.dot(a_mat, h_fwd, preferred_element_type=f32)      # [B, SW]
    pooled_b = jnp.dot(a_mat, h_rev, preferred_element_type=f32)      # [B, SW]

    # TODO(synk): nn.Dropout (inplace, before fc) treated as identity
    # (inference mode) — no RNG dropout applied here.
    out_ref[...] = (jnp.dot(pooled_f, wfc_ref[0:SW, :], preferred_element_type=f32)
                    + jnp.dot(pooled_b, wfc_ref[SW:2 * SW, :], preferred_element_type=f32)
                    + b_fc)                                           # [B, 2]


# ----------------------------------------------------------------------------
# Parameter preparation (done once, on the host, in float64 for exactness)
# ----------------------------------------------------------------------------
def prepare_params(p):
    H = p["w_hh_f"].shape[1]
    V = p["W"].shape[0]
    A = p["att_weight"].shape[0]
    SW = 128
    GW = 3 * SW
    VPAD = 64
    APAD = ((A + 127) // 128) * 128          # 500 -> 512
    assert V <= VPAD and 2 * H <= SW and GW <= APAD

    f64 = np.float64
    W = np.asarray(p["W"], f64)
    wif = np.asarray(p["w_ih_f"], f64); whf = np.asarray(p["w_hh_f"], f64)
    bif = np.asarray(p["b_ih_f"], f64); bhf = np.asarray(p["b_hh_f"], f64)
    wib = np.asarray(p["w_ih_b"], f64); whb = np.asarray(p["w_hh_b"], f64)
    bib = np.asarray(p["b_ih_b"], f64); bhb = np.asarray(p["b_hh_b"], f64)
    waT = np.asarray(p["att_fc_w"], f64).T       # [2H, A]
    ab = np.asarray(p["att_fc_b"], f64)
    attw = np.asarray(p["att_weight"], f64)      # [A, 1]
    wfT = np.asarray(p["fc_w"], f64).T           # [2H, 2]
    fcb = np.asarray(p["fc_b"], f64)

    # embedding folded into the input projection (exact up to f32 rounding)
    gef = W @ wif.T                              # [V, 3H]
    geb = W @ wib.T

    w_gates = np.zeros((2 * SW, GW), f64)        # rows 0:128 input, 128:256 recurrent
    bias_big = np.zeros((GW,), f64)
    bhn2 = np.zeros((SW,), f64)
    for g in range(3):
        c = g * SW
        # vocab -> gate projection (embedding pre-folded), fwd / bwd columns
        w_gates[0:V, c:c + H] = gef[:, g * H:(g + 1) * H]
        w_gates[VPAD:VPAD + V, c + H:c + 2 * H] = geb[:, g * H:(g + 1) * H]
        # block-diagonal recurrent weights
        w_gates[SW + 0:SW + H, c:c + H] = whf.T[:, g * H:(g + 1) * H]
        w_gates[SW + H:SW + 2 * H, c + H:c + 2 * H] = whb.T[:, g * H:(g + 1) * H]
        # biases: fold b_hh into b_ih for r,z gates (exact); keep n-gate b_hh apart
        bias_big[c:c + H] = bif[g * H:(g + 1) * H] + (bhf[g * H:(g + 1) * H] if g < 2 else 0.0)
        bias_big[c + H:c + 2 * H] = bib[g * H:(g + 1) * H] + (bhb[g * H:(g + 1) * H] if g < 2 else 0.0)
    bhn2[0:H] = bhf[2 * H:3 * H]
    bhn2[H:2 * H] = bhb[2 * H:3 * H]

    w_att = np.zeros((2 * SW, APAD), f64)
    w_att[0:H, 0:A] = waT[0:H]
    w_att[SW + H:SW + 2 * H, 0:A] = waT[H:2 * H]

    attw_pad = np.zeros((APAD, 1), f64)
    attw_pad[0:A, :] = attw

    w_fc = np.zeros((2 * SW, 2), f64)
    w_fc[0:H] = wfT[0:H]
    w_fc[SW + H:SW + 2 * H] = wfT[H:2 * H]

    b_rows = np.zeros((8, APAD), f64)
    b_rows[0, 0:GW] = bias_big
    b_rows[1, 0:SW] = bhn2
    b_rows[2, 0:A] = ab
    b_rows[3, 0:2] = fcb

    f32 = jnp.float32
    return {
        "w_gates": jnp.asarray(w_gates, f32),
        "w_att": jnp.asarray(w_att, f32),
        "attw": jnp.asarray(attw_pad, f32),
        "w_fc": jnp.asarray(w_fc, f32),
        "b_rows": jnp.asarray(b_rows, f32),
    }


@jax.jit
def gru_random_att_forward(x_idx, prep):
    b_real, T = x_idx.shape
    B = 8                                         # pad batch to one sublane tile
    x_pad = jnp.zeros((B, T), jnp.int32).at[:b_real, :].set(x_idx.astype(jnp.int32))
    x_tm = jnp.transpose(x_pad)                   # [T, B], forward time order
    # row s*B+b: col 0 = token at time s, col 1 = token at time T-1-s
    idx_both = jnp.stack([x_tm, x_tm[::-1, :]], axis=-1).reshape(T * B, 2)

    vmem = pl.BlockSpec(memory_space=pltpu.MemorySpace.VMEM)
    kernel = functools.partial(_fused_kernel, T, B)
    out = pl.pallas_call(
        kernel,
        out_shape=jax.ShapeDtypeStruct((B, 2), jnp.float32),
        in_specs=[vmem] * 6,
        out_specs=vmem,
    )(idx_both, prep["w_gates"], prep["w_att"], prep["attw"],
      prep["w_fc"], prep["b_rows"])
    return out[:b_real]


# ----------------------------------------------------------------------------
# Pure-JAX reference (f32, HIGHEST precision) for correctness check
# ----------------------------------------------------------------------------
def reference_forward(x_idx, p):
    HIGH = lax.Precision.HIGHEST
    emb = p["W"][x_idx]
    x = jnp.transpose(emb, (1, 0, 2))
    T, B, _ = x.shape
    H = p["w_hh_f"].shape[1]

    def cell(x_t, h_prev, wi, wh, bi, bh):
        gi = jnp.dot(x_t, wi.T, precision=HIGH) + bi
        gh = jnp.dot(h_prev, wh.T, precision=HIGH) + bh
        r = jax.nn.sigmoid(gi[:, :H] + gh[:, :H])
        z = jax.nn.sigmoid(gi[:, H:2 * H] + gh[:, H:2 * H])
        n = jnp.tanh(gi[:, 2 * H:] + r * gh[:, 2 * H:])
        return (1.0 - z) * n + z * h_prev

    hf = jnp.zeros((B, H), jnp.float32); hf_l = []
    for t in range(T):
        hf = cell(x[t], hf, p["w_ih_f"], p["w_hh_f"], p["b_ih_f"], p["b_hh_f"])
        hf_l.append(hf)
    hb = jnp.zeros((B, H), jnp.float32); hb_l = [None] * T
    for t in range(T - 1, -1, -1):
        hb = cell(x[t], hb, p["w_ih_b"], p["w_hh_b"], p["b_ih_b"], p["b_hh_b"])
        hb_l[t] = hb
    h = jnp.stack([jnp.concatenate([hf_l[t], hb_l[t]], -1) for t in range(T)], 0)
    hbt = jnp.transpose(h, (1, 0, 2))                            # [B, T, 2H]
    u = jnp.tanh(jnp.dot(hbt.reshape(B * T, 2 * H), p["att_fc_w"].T,
                         precision=HIGH) + p["att_fc_b"])
    u = u.reshape(B, T, -1)
    scores = jnp.einsum("bta,ao->bto", u, p["att_weight"], precision=HIGH)
    att = jax.nn.softmax(scores, axis=1)[..., 0]                 # [B, T]
    pooled = jnp.einsum("btd,bt->bd", hbt, att, precision=HIGH)
    return jnp.dot(pooled, p["fc_w"].T, precision=HIGH) + p["fc_b"]


# ----------------------------------------------------------------------------
if __name__ == "__main__":
    VOCAB, VEC_LEN, HID, SEQ, BATCH, ATT_LEN = 50, 32, 32, 8, 4, 500

    key = jax.random.PRNGKey(0)
    ks = jax.random.split(key, 16)
    s = 0.1
    f32 = jnp.float32
    params = {
        "W":          (jax.random.normal(ks[0], (VOCAB, VEC_LEN)) * s).astype(f32),
        "w_ih_f":     (jax.random.normal(ks[1], (3 * HID, VEC_LEN)) * s).astype(f32),
        "w_hh_f":     (jax.random.normal(ks[2], (3 * HID, HID)) * s).astype(f32),
        "b_ih_f":     (jax.random.normal(ks[3], (3 * HID,)) * s).astype(f32),
        "b_hh_f":     (jax.random.normal(ks[4], (3 * HID,)) * s).astype(f32),
        "w_ih_b":     (jax.random.normal(ks[5], (3 * HID, VEC_LEN)) * s).astype(f32),
        "w_hh_b":     (jax.random.normal(ks[6], (3 * HID, HID)) * s).astype(f32),
        "b_ih_b":     (jax.random.normal(ks[7], (3 * HID,)) * s).astype(f32),
        "b_hh_b":     (jax.random.normal(ks[8], (3 * HID,)) * s).astype(f32),
        "att_fc_w":   (jax.random.normal(ks[9], (ATT_LEN, 2 * HID)) * s).astype(f32),
        "att_fc_b":   (jax.random.normal(ks[10], (ATT_LEN,)) * s).astype(f32),
        "att_weight": (jax.random.normal(ks[11], (ATT_LEN, 1)) * s).astype(f32),
        "fc_w":       (jax.random.normal(ks[12], (2, 2 * HID)) * s).astype(f32),
        "fc_b":       (jax.random.normal(ks[13], (2,)) * s).astype(f32),
    }
    x_idx = jax.random.randint(ks[14], (BATCH, SEQ), 0, VOCAB, dtype=jnp.int32)

    prep = prepare_params(params)
    out = gru_random_att_forward(x_idx, prep)
    out = jax.block_until_ready(out)

    ref = reference_forward(x_idx, params)
    assert out.shape == (BATCH, 2)
    diff = np.max(np.abs(np.asarray(out) - np.asarray(ref)))
    # default (bf16-pass) MXU precision in the kernel vs f32 HIGHEST reference
    assert np.allclose(np.asarray(out), np.asarray(ref), atol=2e-2, rtol=2e-2), \
        f"mismatch: max abs diff {diff}"
    print("KERNEL_OK")
</pallas_src>

<mosaic_0001>
module attributes {stable_mosaic.version = 11 : i64} {
  func.func @_fused_kernel(%arg0: memref<64x2xi32, #tpu.memory_space<vmem>>, %arg1: memref<256x384xf32, #tpu.memory_space<vmem>>, %arg2: memref<256x512xf32, #tpu.memory_space<vmem>>, %arg3: memref<512x1xf32, #tpu.memory_space<vmem>>, %arg4: memref<256x2xf32, #tpu.memory_space<vmem>>, %arg5: memref<8x512xf32, #tpu.memory_space<vmem>>, %arg6: memref<8x2xf32, #tpu.memory_space<vmem>>) attributes {dimension_semantics = [], scalar_prefetch = 0 : i64, scratch_operands = 0 : i64, tpu.core_type = #tpu.core_type<tc>} {
    %c0 = arith.constant 0 : index
    %c0_0 = arith.constant 0 : index
    %0 = vector.load %arg0[%c0, %c0_0] : memref<64x2xi32, #tpu.memory_space<vmem>>, vector<64x2xi32>
    %1 = tpu.iota {dimensions = array<i32: 1>} : vector<64x128xi32>
    %2 = vector.extract_strided_slice %0 {offsets = [0, 0], sizes = [64, 1], strides = [1, 1]} : vector<64x2xi32> to vector<64x1xi32>
    %3 = vector.broadcast %2 : vector<64x1xi32> to vector<64x128xi32>
    %4 = arith.cmpi eq, %1, %3 : vector<64x128xi32>
    %5 = vector.extract_strided_slice %0 {offsets = [0, 1], sizes = [64, 1], strides = [1, 1]} : vector<64x2xi32> to vector<64x1xi32>
    %c64_i32 = arith.constant 64 : i32
    %6 = vector.broadcast %c64_i32 : i32 to vector<64x1xi32>
    %7 = arith.addi %5, %6 : vector<64x1xi32>
    %8 = vector.broadcast %7 : vector<64x1xi32> to vector<64x128xi32>
    %9 = arith.cmpi eq, %1, %8 : vector<64x128xi32>
    %10 = arith.ori %4, %9 : vector<64x128xi1>
    %11 = arith.extui %10 : vector<64x128xi1> to vector<64x128xi32>
    %12 = arith.sitofp %11 : vector<64x128xi32> to vector<64x128xf32>
    %c0_1 = arith.constant 0 : index
    %c0_2 = arith.constant 0 : index
    %13 = vector.load %arg1[%c0_1, %c0_2] : memref<256x384xf32, #tpu.memory_space<vmem>>, vector<128x384xf32>
    %c128 = arith.constant 128 : index
    %c0_3 = arith.constant 0 : index
    %14 = vector.load %arg1[%c128, %c0_3] : memref<256x384xf32, #tpu.memory_space<vmem>>, vector<128x384xf32>
    %c0_4 = arith.constant 0 : index
    %c0_5 = arith.constant 0 : index
    %15 = vector.load %arg5[%c0_4, %c0_5] : memref<8x512xf32, #tpu.memory_space<vmem>>, vector<1x384xf32>
    %c1 = arith.constant 1 : index
    %c0_6 = arith.constant 0 : index
    %16 = vector.load %arg5[%c1, %c0_6] : memref<8x512xf32, #tpu.memory_space<vmem>>, vector<1x128xf32>
    %c2 = arith.constant 2 : index
    %c0_7 = arith.constant 0 : index
    %17 = vector.load %arg5[%c2, %c0_7] : memref<8x512xf32, #tpu.memory_space<vmem>>, vector<1x512xf32>
    %c3 = arith.constant 3 : index
    %c0_8 = arith.constant 0 : index
    %18 = vector.load %arg5[%c3, %c0_8] : memref<8x512xf32, #tpu.memory_space<vmem>>, vector<1x2xf32>
    %cst = arith.constant dense<0.000000e+00> : vector<64x384xf32>
    %19 = tpu.matmul %12, %13, %cst {dimension_numbers = #tpu.dot_dimension_numbers<[1], [0], [0], [1], [0, 0, 1, 1], [], []>} : vector<64x128xf32>, vector<128x384xf32>, vector<64x384xf32> -> vector<64x384xf32>
    %20 = vector.broadcast %15 : vector<1x384xf32> to vector<64x384xf32>
    %21 = arith.addf %19, %20 : vector<64x384xf32>
    %cst_9 = arith.constant 0.000000e+00 : f32
    %22 = vector.broadcast %cst_9 : f32 to vector<8x128xf32>
    %23 = vector.extract_strided_slice %21 {offsets = [0, 0], sizes = [8, 384], strides = [1, 1]} : vector<64x384xf32> to vector<8x384xf32>
    %cst_10 = arith.constant dense<0.000000e+00> : vector<8x384xf32>
    %24 = tpu.matmul %22, %14, %cst_10 {dimension_numbers = #tpu.dot_dimension_numbers<[1], [0], [0], [1], [0, 0, 1, 1], [], []>} : vector<8x128xf32>, vector<128x384xf32>, vector<8x384xf32> -> vector<8x384xf32>
    %25 = vector.extract_strided_slice %23 {offsets = [0, 0], sizes = [8, 128], strides = [1, 1]} : vector<8x384xf32> to vector<8x128xf32>
    %26 = vector.extract_strided_slice %24 {offsets = [0, 0], sizes = [8, 128], strides = [1, 1]} : vector<8x384xf32> to vector<8x128xf32>
    %27 = arith.addf %25, %26 : vector<8x128xf32>
    %28 = arith.negf %27 : vector<8x128xf32>
    %29 = math.exp %28 : vector<8x128xf32>
    %cst_11 = arith.constant 1.000000e+00 : f32
    %30 = vector.broadcast %cst_11 : f32 to vector<8x128xf32>
    %31 = arith.addf %30, %29 : vector<8x128xf32>
    %32 = arith.divf %30, %31 : vector<8x128xf32>
    %33 = vector.extract_strided_slice %23 {offsets = [0, 128], sizes = [8, 128], strides = [1, 1]} : vector<8x384xf32> to vector<8x128xf32>
    %34 = vector.extract_strided_slice %24 {offsets = [0, 128], sizes = [8, 128], strides = [1, 1]} : vector<8x384xf32> to vector<8x128xf32>
    %35 = arith.addf %33, %34 : vector<8x128xf32>
    %36 = arith.negf %35 : vector<8x128xf32>
    %37 = math.exp %36 : vector<8x128xf32>
    %cst_12 = arith.constant 1.000000e+00 : f32
    %38 = vector.broadcast %cst_12 : f32 to vector<8x128xf32>
    %39 = arith.addf %38, %37 : vector<8x128xf32>
    %40 = arith.divf %38, %39 : vector<8x128xf32>
    %41 = vector.extract_strided_slice %23 {offsets = [0, 256], sizes = [8, 128], strides = [1, 1]} : vector<8x384xf32> to vector<8x128xf32>
    %42 = vector.extract_strided_slice %24 {offsets = [0, 256], sizes = [8, 128], strides = [1, 1]} : vector<8x384xf32> to vector<8x128xf32>
    %43 = vector.broadcast %16 : vector<1x128xf32> to vector<8x128xf32>
    %44 = arith.addf %42, %43 : vector<8x128xf32>
    %45 = arith.mulf %32, %44 : vector<8x128xf32>
    %46 = arith.addf %41, %45 : vector<8x128xf32>
    %47 = math.tanh %46 : vector<8x128xf32>
    %cst_13 = arith.constant 1.000000e+00 : f32
    %48 = vector.broadcast %cst_13 : f32 to vector<8x128xf32>
    %49 = arith.subf %48, %40 : vector<8x128xf32>
    %50 = arith.mulf %49, %47 : vector<8x128xf32>
    %51 = arith.mulf %40, %22 : vector<8x128xf32>
    %52 = arith.addf %50, %51 : vector<8x128xf32>
    %53 = vector.extract_strided_slice %21 {offsets = [8, 0], sizes = [8, 384], strides = [1, 1]} : vector<64x384xf32> to vector<8x384xf32>
    %cst_14 = arith.constant dense<0.000000e+00> : vector<8x384xf32>
    %54 = tpu.matmul %52, %14, %cst_14 {dimension_numbers = #tpu.dot_dimension_numbers<[1], [0], [0], [1], [0, 0, 1, 1], [], []>} : vector<8x128xf32>, vector<128x384xf32>, vector<8x384xf32> -> vector<8x384xf32>
    %55 = vector.extract_strided_slice %53 {offsets = [0, 0], sizes = [8, 128], strides = [1, 1]} : vector<8x384xf32> to vector<8x128xf32>
    %56 = vector.extract_strided_slice %54 {offsets = [0, 0], sizes = [8, 128], strides = [1, 1]} : vector<8x384xf32> to vector<8x128xf32>
    %57 = arith.addf %55, %56 : vector<8x128xf32>
    %58 = arith.negf %57 : vector<8x128xf32>
    %59 = math.exp %58 : vector<8x128xf32>
    %cst_15 = arith.constant 1.000000e+00 : f32
    %60 = vector.broadcast %cst_15 : f32 to vector<8x128xf32>
    %61 = arith.addf %60, %59 : vector<8x128xf32>
    %62 = arith.divf %60, %61 : vector<8x128xf32>
    %63 = vector.extract_strided_slice %53 {offsets = [0, 128], sizes = [8, 128], strides = [1, 1]} : vector<8x384xf32> to vector<8x128xf32>
    %64 = vector.extract_strided_slice %54 {offsets = [0, 128], sizes = [8, 128], strides = [1, 1]} : vector<8x384xf32> to vector<8x128xf32>
    %65 = arith.addf %63, %64 : vector<8x128xf32>
    %66 = arith.negf %65 : vector<8x128xf32>
    %67 = math.exp %66 : vector<8x128xf32>
    %cst_16 = arith.constant 1.000000e+00 : f32
    %68 = vector.broadcast %cst_16 : f32 to vector<8x128xf32>
    %69 = arith.addf %68, %67 : vector<8x128xf32>
    %70 = arith.divf %68, %69 : vector<8x128xf32>
    %71 = vector.extract_strided_slice %53 {offsets = [0, 256], sizes = [8, 128], strides = [1, 1]} : vector<8x384xf32> to vector<8x128xf32>
    %72 = vector.extract_strided_slice %54 {offsets = [0, 256], sizes = [8, 128], strides = [1, 1]} : vector<8x384xf32> to vector<8x128xf32>
    %73 = vector.broadcast %16 : vector<1x128xf32> to vector<8x128xf32>
    %74 = arith.addf %72, %73 : vector<8x128xf32>
    %75 = arith.mulf %62, %74 : vector<8x128xf32>
    %76 = arith.addf %71, %75 : vector<8x128xf32>
    %77 = math.tanh %76 : vector<8x128xf32>
    %cst_17 = arith.constant 1.000000e+00 : f32
    %78 = vector.broadcast %cst_17 : f32 to vector<8x128xf32>
    %79 = arith.subf %78, %70 : vector<8x128xf32>
    %80 = arith.mulf %79, %77 : vector<8x128xf32>
    %81 = arith.mulf %70, %52 : vector<8x128xf32>
    %82 = arith.addf %80, %81 : vector<8x128xf32>
    %83 = vector.extract_strided_slice %21 {offsets = [16, 0], sizes = [8, 384], strides = [1, 1]} : vector<64x384xf32> to vector<8x384xf32>
    %cst_18 = arith.constant dense<0.000000e+00> : vector<8x384xf32>
    %84 = tpu.matmul %82, %14, %cst_18 {dimension_numbers = #tpu.dot_dimension_numbers<[1], [0], [0], [1], [0, 0, 1, 1], [], []>} : vector<8x128xf32>, vector<128x384xf32>, vector<8x384xf32> -> vector<8x384xf32>
    %85 = vector.extract_strided_slice %83 {offsets = [0, 0], sizes = [8, 128], strides = [1, 1]} : vector<8x384xf32> to vector<8x128xf32>
    %86 = vector.extract_strided_slice %84 {offsets = [0, 0], sizes = [8, 128], strides = [1, 1]} : vector<8x384xf32> to vector<8x128xf32>
    %87 = arith.addf %85, %86 : vector<8x128xf32>
    %88 = arith.negf %87 : vector<8x128xf32>
    %89 = math.exp %88 : vector<8x128xf32>
    %cst_19 = arith.constant 1.000000e+00 : f32
    %90 = vector.broadcast %cst_19 : f32 to vector<8x128xf32>
    %91 = arith.addf %90, %89 : vector<8x128xf32>
    %92 = arith.divf %90, %91 : vector<8x128xf32>
    %93 = vector.extract_strided_slice %83 {offsets = [0, 128], sizes = [8, 128], strides = [1, 1]} : vector<8x384xf32> to vector<8x128xf32>
    %94 = vector.extract_strided_slice %84 {offsets = [0, 128], sizes = [8, 128], strides = [1, 1]} : vector<8x384xf32> to vector<8x128xf32>
    %95 = arith.addf %93, %94 : vector<8x128xf32>
    %96 = arith.negf %95 : vector<8x128xf32>
    %97 = math.exp %96 : vector<8x128xf32>
    %cst_20 = arith.constant 1.000000e+00 : f32
    %98 = vector.broadcast %cst_20 : f32 to vector<8x128xf32>
    %99 = arith.addf %98, %97 : vector<8x128xf32>
    %100 = arith.divf %98, %99 : vector<8x128xf32>
    %101 = vector.extract_strided_slice %83 {offsets = [0, 256], sizes = [8, 128], strides = [1, 1]} : vector<8x384xf32> to vector<8x128xf32>
    %102 = vector.extract_strided_slice %84 {offsets = [0, 256], sizes = [8, 128], strides = [1, 1]} : vector<8x384xf32> to vector<8x128xf32>
    %103 = vector.broadcast %16 : vector<1x128xf32> to vector<8x128xf32>
    %104 = arith.addf %102, %103 : vector<8x128xf32>
    %105 = arith.mulf %92, %104 : vector<8x128xf32>
    %106 = arith.addf %101, %105 : vector<8x128xf32>
    %107 = math.tanh %106 : vector<8x128xf32>
    %cst_21 = arith.constant 1.000000e+00 : f32
    %108 = vector.broadcast %cst_21 : f32 to vector<8x128xf32>
    %109 = arith.subf %108, %100 : vector<8x128xf32>
    %110 = arith.mulf %109, %107 : vector<8x128xf32>
    %111 = arith.mulf %100, %82 : vector<8x128xf32>
    %112 = arith.addf %110, %111 : vector<8x128xf32>
    %113 = vector.extract_strided_slice %21 {offsets = [24, 0], sizes = [8, 384], strides = [1, 1]} : vector<64x384xf32> to vector<8x384xf32>
    %cst_22 = arith.constant dense<0.000000e+00> : vector<8x384xf32>
    %114 = tpu.matmul %112, %14, %cst_22 {dimension_numbers = #tpu.dot_dimension_numbers<[1], [0], [0], [1], [0, 0, 1, 1], [], []>} : vector<8x128xf32>, vector<128x384xf32>, vector<8x384xf32> -> vector<8x384xf32>
    %115 = vector.extract_strided_slice %113 {offsets = [0, 0], sizes = [8, 128], strides = [1, 1]} : vector<8x384xf32> to vector<8x128xf32>
    %116 = vector.extract_strided_slice %114 {offsets = [0, 0], sizes = [8, 128], strides = [1, 1]} : vector<8x384xf32> to vector<8x128xf32>
    %117 = arith.addf %115, %116 : vector<8x128xf32>
    %118 = arith.negf %117 : vector<8x128xf32>
    %119 = math.exp %118 : vector<8x128xf32>
    %cst_23 = arith.constant 1.000000e+00 : f32
    %120 = vector.broadcast %cst_23 : f32 to vector<8x128xf32>
    %121 = arith.addf %120, %119 : vector<8x128xf32>
    %122 = arith.divf %120, %121 : vector<8x128xf32>
    %123 = vector.extract_strided_slice %113 {offsets = [0, 128], sizes = [8, 128], strides = [1, 1]} : vector<8x384xf32> to vector<8x128xf32>
    %124 = vector.extract_strided_slice %114 {offsets = [0, 128], sizes = [8, 128], strides = [1, 1]} : vector<8x384xf32> to vector<8x128xf32>
    %125 = arith.addf %123, %124 : vector<8x128xf32>
    %126 = arith.negf %125 : vector<8x128xf32>
    %127 = math.exp %126 : vector<8x128xf32>
    %cst_24 = arith.constant 1.000000e+00 : f32
    %128 = vector.broadcast %cst_24 : f32 to vector<8x128xf32>
    %129 = arith.addf %128, %127 : vector<8x128xf32>
    %130 = arith.divf %128, %129 : vector<8x128xf32>
    %131 = vector.extract_strided_slice %113 {offsets = [0, 256], sizes = [8, 128], strides = [1, 1]} : vector<8x384xf32> to vector<8x128xf32>
    %132 = vector.extract_strided_slice %114 {offsets = [0, 256], sizes = [8, 128], strides = [1, 1]} : vector<8x384xf32> to vector<8x128xf32>
    %133 = vector.broadcast %16 : vector<1x128xf32> to vector<8x128xf32>
    %134 = arith.addf %132, %133 : vector<8x128xf32>
    %135 = arith.mulf %122, %134 : vector<8x128xf32>
    %136 = arith.addf %131, %135 : vector<8x128xf32>
    %137 = math.tanh %136 : vector<8x128xf32>
    %cst_25 = arith.constant 1.000000e+00 : f32
    %138 = vector.broadcast %cst_25 : f32 to vector<8x128xf32>
    %139 = arith.subf %138, %130 : vector<8x128xf32>
    %140 = arith.mulf %139, %137 : vector<8x128xf32>
    %141 = arith.mulf %130, %112 : vector<8x128xf32>
    %142 = arith.addf %140, %141 : vector<8x128xf32>
    %143 = vector.extract_strided_slice %21 {offsets = [32, 0], sizes = [8, 384], strides = [1, 1]} : vector<64x384xf32> to vector<8x384xf32>
    %cst_26 = arith.constant dense<0.000000e+00> : vector<8x384xf32>
    %144 = tpu.matmul %142, %14, %cst_26 {dimension_numbers = #tpu.dot_dimension_numbers<[1], [0], [0], [1], [0, 0, 1, 1], [], []>} : vector<8x128xf32>, vector<128x384xf32>, vector<8x384xf32> -> vector<8x384xf32>
    %145 = vector.extract_strided_slice %143 {offsets = [0, 0], sizes = [8, 128], strides = [1, 1]} : vector<8x384xf32> to vector<8x128xf32>
    %146 = vector.extract_strided_slice %144 {offsets = [0, 0], sizes = [8, 128], strides = [1, 1]} : vector<8x384xf32> to vector<8x128xf32>
    %147 = arith.addf %145, %146 : vector<8x128xf32>
    %148 = arith.negf %147 : vector<8x128xf32>
    %149 = math.exp %148 : vector<8x128xf32>
    %cst_27 = arith.constant 1.000000e+00 : f32
    %150 = vector.broadcast %cst_27 : f32 to vector<8x128xf32>
    %151 = arith.addf %150, %149 : vector<8x128xf32>
    %152 = arith.divf %150, %151 : vector<8x128xf32>
    %153 = vector.extract_strided_slice %143 {offsets = [0, 128], sizes = [8, 128], strides = [1, 1]} : vector<8x384xf32> to vector<8x128xf32>
    %154 = vector.extract_strided_slice %144 {offsets = [0, 128], sizes = [8, 128], strides = [1, 1]} : vector<8x384xf32> to vector<8x128xf32>
    %155 = arith.addf %153, %154 : vector<8x128xf32>
    %156 = arith.negf %155 : vector<8x128xf32>
    %157 = math.exp %156 : vector<8x128xf32>
    %cst_28 = arith.constant 1.000000e+00 : f32
    %158 = vector.broadcast %cst_28 : f32 to vector<8x128xf32>
    %159 = arith.addf %158, %157 : vector<8x128xf32>
    %160 = arith.divf %158, %159 : vector<8x128xf32>
    %161 = vector.extract_strided_slice %143 {offsets = [0, 256], sizes = [8, 128], strides = [1, 1]} : vector<8x384xf32> to vector<8x128xf32>
    %162 = vector.extract_strided_slice %144 {offsets = [0, 256], sizes = [8, 128], strides = [1, 1]} : vector<8x384xf32> to vector<8x128xf32>
    %163 = vector.broadcast %16 : vector<1x128xf32> to vector<8x128xf32>
    %164 = arith.addf %162, %163 : vector<8x128xf32>
    %165 = arith.mulf %152, %164 : vector<8x128xf32>
    %166 = arith.addf %161, %165 : vector<8x128xf32>
    %167 = math.tanh %166 : vector<8x128xf32>
    %cst_29 = arith.constant 1.000000e+00 : f32
    %168 = vector.broadcast %cst_29 : f32 to vector<8x128xf32>
    %169 = arith.subf %168, %160 : vector<8x128xf32>
    %170 = arith.mulf %169, %167 : vector<8x128xf32>
    %171 = arith.mulf %160, %142 : vector<8x128xf32>
    %172 = arith.addf %170, %171 : vector<8x128xf32>
    %173 = vector.extract_strided_slice %21 {offsets = [40, 0], sizes = [8, 384], strides = [1, 1]} : vector<64x384xf32> to vector<8x384xf32>
    %cst_30 = arith.constant dense<0.000000e+00> : vector<8x384xf32>
    %174 = tpu.matmul %172, %14, %cst_30 {dimension_numbers = #tpu.dot_dimension_numbers<[1], [0], [0], [1], [0, 0, 1, 1], [], []>} : vector<8x128xf32>, vector<128x384xf32>, vector<8x384xf32> -> vector<8x384xf32>
    %175 = vector.extract_strided_slice %173 {offsets = [0, 0], sizes = [8, 128], strides = [1, 1]} : vector<8x384xf32> to vector<8x128xf32>
    %176 = vector.extract_strided_slice %174 {offsets = [0, 0], sizes = [8, 128], strides = [1, 1]} : vector<8x384xf32> to vector<8x128xf32>
    %177 = arith.addf %175, %176 : vector<8x128xf32>
    %178 = arith.negf %177 : vector<8x128xf32>
    %179 = math.exp %178 : vector<8x128xf32>
    %cst_31 = arith.constant 1.000000e+00 : f32
    %180 = vector.broadcast %cst_31 : f32 to vector<8x128xf32>
    %181 = arith.addf %180, %179 : vector<8x128xf32>
    %182 = arith.divf %180, %181 : vector<8x128xf32>
    %183 = vector.extract_strided_slice %173 {offsets = [0, 128], sizes = [8, 128], strides = [1, 1]} : vector<8x384xf32> to vector<8x128xf32>
    %184 = vector.extract_strided_slice %174 {offsets = [0, 128], sizes = [8, 128], strides = [1, 1]} : vector<8x384xf32> to vector<8x128xf32>
    %185 = arith.addf %183, %184 : vector<8x128xf32>
    %186 = arith.negf %185 : vector<8x128xf32>
    %187 = math.exp %186 : vector<8x128xf32>
    %cst_32 = arith.constant 1.000000e+00 : f32
    %188 = vector.broadcast %cst_32 : f32 to vector<8x128xf32>
    %189 = arith.addf %188, %187 : vector<8x128xf32>
    %190 = arith.divf %188, %189 : vector<8x128xf32>
    %191 = vector.extract_strided_slice %173 {offsets = [0, 256], sizes = [8, 128], strides = [1, 1]} : vector<8x384xf32> to vector<8x128xf32>
    %192 = vector.extract_strided_slice %174 {offsets = [0, 256], sizes = [8, 128], strides = [1, 1]} : vector<8x384xf32> to vector<8x128xf32>
    %193 = vector.broadcast %16 : vector<1x128xf32> to vector<8x128xf32>
    %194 = arith.addf %192, %193 : vector<8x128xf32>
    %195 = arith.mulf %182, %194 : vector<8x128xf32>
    %196 = arith.addf %191, %195 : vector<8x128xf32>
    %197 = math.tanh %196 : vector<8x128xf32>
    %cst_33 = arith.constant 1.000000e+00 : f32
    %198 = vector.broadcast %cst_33 : f32 to vector<8x128xf32>
    %199 = arith.subf %198, %190 : vector<8x128xf32>
    %200 = arith.mulf %199, %197 : vector<8x128xf32>
    %201 = arith.mulf %190, %172 : vector<8x128xf32>
    %202 = arith.addf %200, %201 : vector<8x128xf32>
    %203 = vector.extract_strided_slice %21 {offsets = [48, 0], sizes = [8, 384], strides = [1, 1]} : vector<64x384xf32> to vector<8x384xf32>
    %cst_34 = arith.constant dense<0.000000e+00> : vector<8x384xf32>
    %204 = tpu.matmul %202, %14, %cst_34 {dimension_numbers = #tpu.dot_dimension_numbers<[1], [0], [0], [1], [0, 0, 1, 1], [], []>} : vector<8x128xf32>, vector<128x384xf32>, vector<8x384xf32> -> vector<8x384xf32>
    %205 = vector.extract_strided_slice %203 {offsets = [0, 0], sizes = [8, 128], strides = [1, 1]} : vector<8x384xf32> to vector<8x128xf32>
    %206 = vector.extract_strided_slice %204 {offsets = [0, 0], sizes = [8, 128], strides = [1, 1]} : vector<8x384xf32> to vector<8x128xf32>
    %207 = arith.addf %205, %206 : vector<8x128xf32>
    %208 = arith.negf %207 : vector<8x128xf32>
    %209 = math.exp %208 : vector<8x128xf32>
    %cst_35 = arith.constant 1.000000e+00 : f32
    %210 = vector.broadcast %cst_35 : f32 to vector<8x128xf32>
    %211 = arith.addf %210, %209 : vector<8x128xf32>
    %212 = arith.divf %210, %211 : vector<8x128xf32>
    %213 = vector.extract_strided_slice %203 {offsets = [0, 128], sizes = [8, 128], strides = [1, 1]} : vector<8x384xf32> to vector<8x128xf32>
    %214 = vector.extract_strided_slice %204 {offsets = [0, 128], sizes = [8, 128], strides = [1, 1]} : vector<8x384xf32> to vector<8x128xf32>
    %215 = arith.addf %213, %214 : vector<8x128xf32>
    %216 = arith.negf %215 : vector<8x128xf32>
    %217 = math.exp %216 : vector<8x128xf32>
    %cst_36 = arith.constant 1.000000e+00 : f32
    %218 = vector.broadcast %cst_36 : f32 to vector<8x128xf32>
    %219 = arith.addf %218, %217 : vector<8x128xf32>
    %220 = arith.divf %218, %219 : vector<8x128xf32>
    %221 = vector.extract_strided_slice %203 {offsets = [0, 256], sizes = [8, 128], strides = [1, 1]} : vector<8x384xf32> to vector<8x128xf32>
    %222 = vector.extract_strided_slice %204 {offsets = [0, 256], sizes = [8, 128], strides = [1, 1]} : vector<8x384xf32> to vector<8x128xf32>
    %223 = vector.broadcast %16 : vector<1x128xf32> to vector<8x128xf32>
    %224 = arith.addf %222, %223 : vector<8x128xf32>
    %225 = arith.mulf %212, %224 : vector<8x128xf32>
    %226 = arith.addf %221, %225 : vector<8x128xf32>
    %227 = math.tanh %226 : vector<8x128xf32>
    %cst_37 = arith.constant 1.000000e+00 : f32
    %228 = vector.broadcast %cst_37 : f32 to vector<8x128xf32>
    %229 = arith.subf %228, %220 : vector<8x128xf32>
    %230 = arith.mulf %229, %227 : vector<8x128xf32>
    %231 = arith.mulf %220, %202 : vector<8x128xf32>
    %232 = arith.addf %230, %231 : vector<8x128xf32>
    %233 = vector.extract_strided_slice %21 {offsets = [56, 0], sizes = [8, 384], strides = [1, 1]} : vector<64x384xf32> to vector<8x384xf32>
    %cst_38 = arith.constant dense<0.000000e+00> : vector<8x384xf32>
    %234 = tpu.matmul %232, %14, %cst_38 {dimension_numbers = #tpu.dot_dimension_numbers<[1], [0], [0], [1], [0, 0, 1, 1], [], []>} : vector<8x128xf32>, vector<128x384xf32>, vector<8x384xf32> -> vector<8x384xf32>
    %235 = vector.extract_strided_slice %233 {offsets = [0, 0], sizes = [8, 128], strides = [1, 1]} : vector<8x384xf32> to vector<8x128xf32>
    %236 = vector.extract_strided_slice %234 {offsets = [0, 0], sizes = [8, 128], strides = [1, 1]} : vector<8x384xf32> to vector<8x128xf32>
    %237 = arith.addf %235, %236 : vector<8x128xf32>
    %238 = arith.negf %237 : vector<8x128xf32>
    %239 = math.exp %238 : vector<8x128xf32>
    %cst_39 = arith.constant 1.000000e+00 : f32
    %240 = vector.broadcast %cst_39 : f32 to vector<8x128xf32>
    %241 = arith.addf %240, %239 : vector<8x128xf32>
    %242 = arith.divf %240, %241 : vector<8x128xf32>
    %243 = vector.extract_strided_slice %233 {offsets = [0, 128], sizes = [8, 128], strides = [1, 1]} : vector<8x384xf32> to vector<8x128xf32>
    %244 = vector.extract_strided_slice %234 {offsets = [0, 128], sizes = [8, 128], strides = [1, 1]} : vector<8x384xf32> to vector<8x128xf32>
    %245 = arith.addf %243, %244 : vector<8x128xf32>
    %246 = arith.negf %245 : vector<8x128xf32>
    %247 = math.exp %246 : vector<8x128xf32>
    %cst_40 = arith.constant 1.000000e+00 : f32
    %248 = vector.broadcast %cst_40 : f32 to vector<8x128xf32>
    %249 = arith.addf %248, %247 : vector<8x128xf32>
    %250 = arith.divf %248, %249 : vector<8x128xf32>
    %251 = vector.extract_strided_slice %233 {offsets = [0, 256], sizes = [8, 128], strides = [1, 1]} : vector<8x384xf32> to vector<8x128xf32>
    %252 = vector.extract_strided_slice %234 {offsets = [0, 256], sizes = [8, 128], strides = [1, 1]} : vector<8x384xf32> to vector<8x128xf32>
    %253 = vector.broadcast %16 : vector<1x128xf32> to vector<8x128xf32>
    %254 = arith.addf %252, %253 : vector<8x128xf32>
    %255 = arith.mulf %242, %254 : vector<8x128xf32>
    %256 = arith.addf %251, %255 : vector<8x128xf32>
    %257 = math.tanh %256 : vector<8x128xf32>
    %cst_41 = arith.constant 1.000000e+00 : f32
    %258 = vector.broadcast %cst_41 : f32 to vector<8x128xf32>
    %259 = arith.subf %258, %250 : vector<8x128xf32>
    %260 = arith.mulf %259, %257 : vector<8x128xf32>
    %261 = arith.mulf %250, %232 : vector<8x128xf32>
    %262 = arith.addf %260, %261 : vector<8x128xf32>
    %263 = tpu.concatenate %52, %82, %112, %142, %172, %202, %232, %262 in 0 : vector<8x128xf32>, vector<8x128xf32>, vector<8x128xf32>, vector<8x128xf32>, vector<8x128xf32>, vector<8x128xf32>, vector<8x128xf32>, vector<8x128xf32> -> vector<64x128xf32>
    %264 = tpu.concatenate %262, %232, %202, %172, %142, %112, %82, %52 in 0 : vector<8x128xf32>, vector<8x128xf32>, vector<8x128xf32>, vector<8x128xf32>, vector<8x128xf32>, vector<8x128xf32>, vector<8x128xf32>, vector<8x128xf32> -> vector<64x128xf32>
    %c0_42 = arith.constant 0 : index
    %c0_43 = arith.constant 0 : index
    %265 = vector.load %arg2[%c0_42, %c0_43] : memref<256x512xf32, #tpu.memory_space<vmem>>, vector<128x512xf32>
    %c128_44 = arith.constant 128 : index
    %c0_45 = arith.constant 0 : index
    %266 = vector.load %arg2[%c128_44, %c0_45] : memref<256x512xf32, #tpu.memory_space<vmem>>, vector<128x512xf32>
    %cst_46 = arith.constant dense<0.000000e+00> : vector<64x512xf32>
    %267 = tpu.matmul %263, %265, %cst_46 {dimension_numbers = #tpu.dot_dimension_numbers<[1], [0], [0], [1], [0, 0, 1, 1], [], []>} : vector<64x128xf32>, vector<128x512xf32>, vector<64x512xf32> -> vector<64x512xf32>
    %cst_47 = arith.constant dense<0.000000e+00> : vector<64x512xf32>
    %268 = tpu.matmul %264, %266, %cst_47 {dimension_numbers = #tpu.dot_dimension_numbers<[1], [0], [0], [1], [0, 0, 1, 1], [], []>} : vector<64x128xf32>, vector<128x512xf32>, vector<64x512xf32> -> vector<64x512xf32>
    %269 = arith.addf %267, %268 : vector<64x512xf32>
    %270 = vector.broadcast %17 : vector<1x512xf32> to vector<64x512xf32>
    %271 = arith.addf %269, %270 : vector<64x512xf32>
    %272 = math.tanh %271 : vector<64x512xf32>
    %c0_48 = arith.constant 0 : index
    %c0_49 = arith.constant 0 : index
    %273 = vector.load %arg3[%c0_48, %c0_49] : memref<512x1xf32, #tpu.memory_space<vmem>>, vector<512x1xf32>
    %cst_50 = arith.constant dense<0.000000e+00> : vector<64x1xf32>
    %274 = tpu.matmul %272, %273, %cst_50 {dimension_numbers = #tpu.dot_dimension_numbers<[1], [0], [0], [1], [0, 0, 1, 1], [], []>} : vector<64x512xf32>, vector<512x1xf32>, vector<64x1xf32> -> vector<64x1xf32>
    %275 = tpu.iota {dimensions = array<i32: 0>} : vector<64x8xi32>
    %276 = tpu.iota {dimensions = array<i32: 1>} : vector<64x8xi32>
    %c3_i32 = arith.constant 3 : i32
    %277 = vector.broadcast %c3_i32 : i32 to vector<64x8xi32>
    %278 = arith.shrsi %275, %277 : vector<64x8xi32>
    %279 = arith.cmpi eq, %278, %276 : vector<64x8xi32>
    %280 = arith.extui %279 : vector<64x8xi1> to vector<64x8xi32>
    %281 = arith.sitofp %280 : vector<64x8xi32> to vector<64x8xf32>
    %282 = tpu.iota {dimensions = array<i32: 0>} : vector<8x64xi32>
    %283 = tpu.iota {dimensions = array<i32: 1>} : vector<8x64xi32>
    %c7_i32 = arith.constant 7 : i32
    %284 = vector.broadcast %c7_i32 : i32 to vector<8x64xi32>
    %285 = arith.andi %283, %284 : vector<8x64xi32>
    %286 = arith.cmpi eq, %285, %282 : vector<8x64xi32>
    %287 = arith.extui %286 : vector<8x64xi1> to vector<8x64xi32>
    %288 = arith.sitofp %287 : vector<8x64xi32> to vector<8x64xf32>
    %289 = tpu.iota {dimensions = array<i32: 0>} : vector<8x64xi32>
    %290 = tpu.iota {dimensions = array<i32: 1>} : vector<8x64xi32>
    %c3_i32_51 = arith.constant 3 : i32
    %291 = vector.broadcast %c3_i32_51 : i32 to vector<8x64xi32>
    %292 = arith.shrsi %290, %291 : vector<8x64xi32>
    %293 = arith.cmpi eq, %292, %289 : vector<8x64xi32>
    %294 = arith.extui %293 : vector<8x64xi1> to vector<8x64xi32>
    %295 = arith.sitofp %294 : vector<8x64xi32> to vector<8x64xf32>
    %296 = vector.broadcast %274 : vector<64x1xf32> to vector<64x8xf32>
    %297 = arith.mulf %296, %281 : vector<64x8xf32>
    %cst_52 = arith.constant dense<0.000000e+00> : vector<8x8xf32>
    %298 = tpu.matmul %288, %297, %cst_52 {dimension_numbers = #tpu.dot_dimension_numbers<[1], [0], [0], [1], [0, 0, 1, 1], [], []>} : vector<8x64xf32>, vector<64x8xf32>, vector<8x8xf32> -> vector<8x8xf32>
    %cst_53 = arith.constant dense<0xFF800000> : vector<8xf32>
    %299 = vector.multi_reduction <maximumf>, %298, %cst_53 [1] : vector<8x8xf32> to vector<8xf32>
    %300 = vector.shape_cast %299 : vector<8xf32> to vector<8x1xf32>
    %301 = vector.broadcast %300 : vector<8x1xf32> to vector<8x8xf32>
    %302 = arith.subf %298, %301 : vector<8x8xf32>
    %303 = math.exp %302 : vector<8x8xf32>
    %cst_54 = arith.constant dense<0.000000e+00> : vector<8xf32>
    %304 = vector.multi_reduction <add>, %303, %cst_54 [1] : vector<8x8xf32> to vector<8xf32>
    %305 = vector.shape_cast %304 : vector<8xf32> to vector<8x1xf32>
    %306 = vector.broadcast %305 : vector<8x1xf32> to vector<8x8xf32>
    %307 = arith.divf %303, %306 : vector<8x8xf32>
    %cst_55 = arith.constant dense<0.000000e+00> : vector<8x64xf32>
    %308 = tpu.matmul %307, %295, %cst_55 {dimension_numbers = #tpu.dot_dimension_numbers<[1], [0], [0], [1], [0, 0, 1, 1], [], []>} : vector<8x8xf32>, vector<8x64xf32>, vector<8x64xf32> -> vector<8x64xf32>
    %309 = arith.mulf %288, %308 : vector<8x64xf32>
    %cst_56 = arith.constant dense<0.000000e+00> : vector<8x128xf32>
    %310 = tpu.matmul %309, %263, %cst_56 {dimension_numbers = #tpu.dot_dimension_numbers<[1], [0], [0], [1], [0, 0, 1, 1], [], []>} : vector<8x64xf32>, vector<64x128xf32>, vector<8x128xf32> -> vector<8x128xf32>
    %cst_57 = arith.constant dense<0.000000e+00> : vector<8x128xf32>
    %311 = tpu.matmul %309, %264, %cst_57 {dimension_numbers = #tpu.dot_dimension_numbers<[1], [0], [0], [1], [0, 0, 1, 1], [], []>} : vector<8x64xf32>, vector<64x128xf32>, vector<8x128xf32> -> vector<8x128xf32>
    %c0_58 = arith.constant 0 : index
    %c0_59 = arith.constant 0 : index
    %312 = vector.load %arg4[%c0_58, %c0_59] : memref<256x2xf32, #tpu.memory_space<vmem>>, vector<128x2xf32>
    %cst_60 = arith.constant dense<0.000000e+00> : vector<8x2xf32>
    %313 = tpu.matmul %310, %312, %cst_60 {dimension_numbers = #tpu.dot_dimension_numbers<[1], [0], [0], [1], [0, 0, 1, 1], [], []>} : vector<8x128xf32>, vector<128x2xf32>, vector<8x2xf32> -> vector<8x2xf32>
    %c128_61 = arith.constant 128 : index
    %c0_62 = arith.constant 0 : index
    %314 = vector.load %arg4[%c128_61, %c0_62] : memref<256x2xf32, #tpu.memory_space<vmem>>, vector<128x2xf32>
    %cst_63 = arith.constant dense<0.000000e+00> : vector<8x2xf32>
    %315 = tpu.matmul %311, %314, %cst_63 {dimension_numbers = #tpu.dot_dimension_numbers<[1], [0], [0], [1], [0, 0, 1, 1], [], []>} : vector<8x128xf32>, vector<128x2xf32>, vector<8x2xf32> -> vector<8x2xf32>
    %316 = arith.addf %313, %315 : vector<8x2xf32>
    %317 = vector.broadcast %18 : vector<1x2xf32> to vector<8x2xf32>
    %318 = arith.addf %316, %317 : vector<8x2xf32>
    %c0_64 = arith.constant 0 : index
    %c0_65 = arith.constant 0 : index
    %319 = vector.load %arg6[%c0_64, %c0_65] : memref<8x2xf32, #tpu.memory_space<vmem>>, vector<8x2xf32>
    tpu.vector_store %arg6[%c0_64, %c0_65], %318 {strides = array<i32>} : memref<8x2xf32, #tpu.memory_space<vmem>>, vector<8x2xf32>,
    return
  }
}

</mosaic_0001>

<llo_original>
// kernel: gru_random_att_forward.1
$region0: #{gru_random_att_forward.1}
  #allocation0 [shape = 'u32[]', space=smem, size = 0x4, offset = 0x4, fixed_abs, tag = 'smem constant byte address 0x4 - core index']
  #allocation1 [shape = 'u32[144,128]{1,0:T(1,128)}', space=vmem, size = 0x12000, scoped, tag = 'internal scratch']
  %s0 = inlined_call_operand.vmem [shape: s32[64,2], index: 0, kind: input, shape index: {}]
  %s1 = inlined_call_operand.vmem [shape: f32[256,384], index: 1, kind: input, shape index: {}]
  %s2 = inlined_call_operand.hbm [shape: f32[256,512], index: 2, kind: input, shape index: {}]
  %s3 = inlined_call_operand.vmem [shape: f32[512,1], index: 3, kind: input, shape index: {}]
  %s4 = inlined_call_operand.vmem [shape: f32[256,2], index: 4, kind: input, shape index: {}]
  %s5 = inlined_call_operand.vmem [shape: f32[8,512], index: 5, kind: input, shape index: {}]
  %s6 = inlined_call_operand.vmem [shape: f32[8,2], index: 6, kind: output, shape index: {}]
  %s7 = sld [smem:[#allocation0]]
  $region38: #{gru_random_att_forward.1} parent=0
    _
  %s9 = ssub.s32 1, %s7
  %s10 = scalar_select 0, %s9, %s7
  $region1: #{gru_random_att_forward.1} parent=0
    #allocation2 [shape = 'u8[524288]{0}', space=vmem, size = 0x80000, scoped, tag = 'input window, operand 2, single buffered']
    #allocation3 [shape = 's32[1]{0}', space=sflag, size = 0x4, scoped, tag = 'scoped memory for gru_random_att_forward.1']
    %11 = vsyncpa [#allocation3], 0
    // Predicated region
    $region2: #{gru_random_att_forward.1} parent=1 // pred_check
      _
    $region3: #{gru_random_att_forward.1} parent=1 // pred_check_branch
      %13 = sbr.rel (0) target = $region5
    $region4: #{gru_random_att_forward.1} parent=1 // pred_region
      _
    $region5: #{gru_random_att_forward.1} parent=1 // pred_fallthru
      _
    // Predicated region
    $region6: #{gru_random_att_forward.1} parent=1 // pred_check
      _
    $region7: #{gru_random_att_forward.1} parent=1 // pred_check_branch
      %15 = sbr.rel (0) target = $region9
    $region8: #{gru_random_att_forward.1} parent=1 // pred_region
      _
    $region9: #{gru_random_att_forward.1} parent=1 // pred_fallthru
      _
    // Predicated region
    $region10: #{gru_random_att_forward.1} parent=1 // pred_check
      _
    $region11: #{gru_random_att_forward.1} parent=1 // pred_check_branch
      %17 = sbr.rel (0) target = $region13
    $region12: #{gru_random_att_forward.1} parent=1 // pred_region
      %s19 = ssub.s32 16384, 16384
      %20 = vsyncadd [#allocation3], %s19
      %s21 = sshll.u32 [#allocation2], 4
      %s22 = int_to_ptr.vmem [resolvable:$true] %s21
      %27 = dma.hbm_to_vmem [thread:$0]  %s2, 16384, %s22, [#allocation3], 512, 512, 32
    $region13: #{gru_random_att_forward.1} parent=1 // pred_fallthru
      _
    // Predicated region
    $region14: #{gru_random_att_forward.1} parent=1 // pred_check
      _
    $region15: #{gru_random_att_forward.1} parent=1 // pred_check_branch
      %29 = sbr.rel (0) target = $region17
    $region16: #{gru_random_att_forward.1} parent=1 // pred_region
      _
    $region17: #{gru_random_att_forward.1} parent=1 // pred_fallthru
      _
    // Predicated region
    $region18: #{gru_random_att_forward.1} parent=1 // pred_check
      _
    $region19: #{gru_random_att_forward.1} parent=1 // pred_check_branch
      %31 = sbr.rel (0) target = $region21
    $region20: #{gru_random_att_forward.1} parent=1 // pred_region
      _
    $region21: #{gru_random_att_forward.1} parent=1 // pred_fallthru
      _
    // Predicated region
    $region22: #{gru_random_att_forward.1} parent=1 // pred_check
      _
    $region23: #{gru_random_att_forward.1} parent=1 // pred_check_branch
      %33 = sbr.rel (0) target = $region25
    $region24: #{gru_random_att_forward.1} parent=1 // pred_region
      _
    $region25: #{gru_random_att_forward.1} parent=1 // pred_fallthru
      _
    // Predicated region
    $region26: #{gru_random_att_forward.1} parent=1 // pred_check
      _
    $region27: #{gru_random_att_forward.1} parent=1 // pred_check_branch
      %35 = sbr.rel (0) target = $region29
    $region28: #{gru_random_att_forward.1} parent=1 // pred_region
      %36 = dma.done [#allocation3], 16384
    $region29: #{gru_random_att_forward.1} parent=1 // pred_fallthru
      _
    %v37 = vld [vmem:[%s0] sm:$0xff]
    %v38 = vld [vmem:[%s0 + $0x8] sm:$0xff]
    %v39 = vld [vmem:[%s0 + $0x10] sm:$0xff]
    %v40 = vld [vmem:[%s0 + $0x18] sm:$0xff]
    %v41 = vld [vmem:[%s0 + $0x20] sm:$0xff]
    %v42 = vld [vmem:[%s0 + $0x28] sm:$0xff]
    %v43 = vld [vmem:[%s0 + $0x30] sm:$0xff]
    %v44 = vld [vmem:[%s0 + $0x38] sm:$0xff]
    %v45 = vlaneseq
    %v46 = vand.u32 %v45, 127
    %47 = vset.pattern.permute.xlu0 0
    %48 = vperm.xlu0 %47, %v37
    %v49 = vpop.permute.xlu0 %48
    %50 = vset.pattern.permute.xlu0 0
    %51 = vperm.xlu0 %50, %v38
    %v52 = vpop.permute.xlu0 %51
    %53 = vset.pattern.permute.xlu0 0
    %54 = vperm.xlu0 %53, %v39
    %v55 = vpop.permute.xlu0 %54
    %56 = vset.pattern.permute.xlu0 0
    %57 = vperm.xlu0 %56, %v40
    %v58 = vpop.permute.xlu0 %57
    %59 = vset.pattern.permute.xlu0 0
    %60 = vperm.xlu0 %59, %v41
    %v61 = vpop.permute.xlu0 %60
    %62 = vset.pattern.permute.xlu0 0
    %63 = vperm.xlu0 %62, %v42
    %v64 = vpop.permute.xlu0 %63
    %65 = vset.pattern.permute.xlu0 0
    %66 = vperm.xlu0 %65, %v43
    %v67 = vpop.permute.xlu0 %66
    %68 = vset.pattern.permute.xlu0 0
    %69 = vperm.xlu0 %68, %v44
    %v70 = vpop.permute.xlu0 %69
    %vm71 = vcmp.eq.s32.totalorder %v46, %v49
    %vm72 = vcmp.eq.s32.totalorder %v46, %v52
    %vm73 = vcmp.eq.s32.totalorder %v46, %v55
    %vm74 = vcmp.eq.s32.totalorder %v46, %v58
    %vm75 = vcmp.eq.s32.totalorder %v46, %v61
    %vm76 = vcmp.eq.s32.totalorder %v46, %v64
    %vm77 = vcmp.eq.s32.totalorder %v46, %v67
    %vm78 = vcmp.eq.s32.totalorder %v46, %v70
    %v79 = vadd.s32 %v37, 64
    %v80 = vadd.s32 %v38, 64
    %v81 = vadd.s32 %v39, 64
    %v82 = vadd.s32 %v40, 64
    %v83 = vadd.s32 %v41, 64
    %v84 = vadd.s32 %v42, 64
    %v85 = vadd.s32 %v43, 64
    %v86 = vadd.s32 %v44, 64
    %87 = vset.pattern.permute.xlu0 1
    %88 = vperm.xlu0 %87, %v79
    %v89 = vpop.permute.xlu0 %88
    %90 = vset.pattern.permute.xlu0 1
    %91 = vperm.xlu0 %90, %v80
    %v92 = vpop.permute.xlu0 %91
    %93 = vset.pattern.permute.xlu0 1
    %94 = vperm.xlu0 %93, %v81
    %v95 = vpop.permute.xlu0 %94
    %96 = vset.pattern.permute.xlu0 1
    %97 = vperm.xlu0 %96, %v82
    %v98 = vpop.permute.xlu0 %97
    %99 = vset.pattern.permute.xlu0 1
    %100 = vperm.xlu0 %99, %v83
    %v101 = vpop.permute.xlu0 %100
    %102 = vset.pattern.permute.xlu0 1
    %103 = vperm.xlu0 %102, %v84
    %v104 = vpop.permute.xlu0 %103
    %105 = vset.pattern.permute.xlu0 1
    %106 = vperm.xlu0 %105, %v85
    %v107 = vpop.permute.xlu0 %106
    %108 = vset.pattern.permute.xlu0 1
    %109 = vperm.xlu0 %108, %v86
    %v110 = vpop.permute.xlu0 %109
    %vm111 = vcmp.eq.s32.totalorder %v46, %v89
    %vm112 = vcmp.eq.s32.totalorder %v46, %v92
    %vm113 = vcmp.eq.s32.totalorder %v46, %v95
    %vm114 = vcmp.eq.s32.totalorder %v46, %v98
    %vm115 = vcmp.eq.s32.totalorder %v46, %v101
    %vm116 = vcmp.eq.s32.totalorder %v46, %v104
    %vm117 = vcmp.eq.s32.totalorder %v46, %v107
    %vm118 = vcmp.eq.s32.totalorder %v46, %v110
    %vm119 = vmor %vm71, %vm111
    %vm120 = vmor %vm72, %vm112
    %vm121 = vmor %vm73, %vm113
    %vm122 = vmor %vm74, %vm114
    %vm123 = vmor %vm75, %vm115
    %vm124 = vmor %vm76, %vm116
    %vm125 = vmor %vm77, %vm117
    %vm126 = vmor %vm78, %vm118
    %v127 = vsel %vm119, 1, 0
    %v128 = vsel %vm120, 1, 0
    %v129 = vsel %vm121, 1, 0
    %v130 = vsel %vm122, 1, 0
    %v131 = vsel %vm123, 1, 0
    %v132 = vsel %vm124, 1, 0
    %v133 = vsel %vm125, 1, 0
    %v134 = vsel %vm126, 1, 0
    %v135 = vcvt.s32.f32 %v127
    %v136 = vcvt.s32.f32 %v128
    %v137 = vcvt.s32.f32 %v129
    %v138 = vcvt.s32.f32 %v130
    %v139 = vcvt.s32.f32 %v131
    %v140 = vcvt.s32.f32 %v132
    %v141 = vcvt.s32.f32 %v133
    %v142 = vcvt.s32.f32 %v134
    %v143 = vld [vmem:[%s1] sm:$0xff]
    %v144 = vld [vmem:[%s1 + $0x8] sm:$0xff]
    %v145 = vld [vmem:[%s1 + $0x10] sm:$0xff]
    %v146 = vld [vmem:[%s1 + $0x18] sm:$0xff]
    %v147 = vld [vmem:[%s1 + $0x20] sm:$0xff]
    %v148 = vld [vmem:[%s1 + $0x28] sm:$0xff]
    %v149 = vld [vmem:[%s1 + $0x30] sm:$0xff]
    %v150 = vld [vmem:[%s1 + $0x38] sm:$0xff]
    %v151 = vld [vmem:[%s1 + $0x40] sm:$0xff]
    %v152 = vld [vmem:[%s1 + $0x48] sm:$0xff]
    %v153 = vld [vmem:[%s1 + $0x50] sm:$0xff]
    %v154 = vld [vmem:[%s1 + $0x58] sm:$0xff]
    %v155 = vld [vmem:[%s1 + $0x60] sm:$0xff]
    %v156 = vld [vmem:[%s1 + $0x68] sm:$0xff]
    %v157 = vld [vmem:[%s1 + $0x70] sm:$0xff]
    %v158 = vld [vmem:[%s1 + $0x78] sm:$0xff]
    %v159 = vld [vmem:[%s1 + $0x80] sm:$0xff]
    %v160 = vld [vmem:[%s1 + $0x88] sm:$0xff]
    %v161 = vld [vmem:[%s1 + $0x90] sm:$0xff]
    %v162 = vld [vmem:[%s1 + $0x98] sm:$0xff]
    %v163 = vld [vmem:[%s1 + $0xa0] sm:$0xff]
    %v164 = vld [vmem:[%s1 + $0xa8] sm:$0xff]
    %v165 = vld [vmem:[%s1 + $0xb0] sm:$0xff]
    %v166 = vld [vmem:[%s1 + $0xb8] sm:$0xff]
    %v167 = vld [vmem:[%s1 + $0xc0] sm:$0xff]
    %v168 = vld [vmem:[%s1 + $0xc8] sm:$0xff]
    %v169 = vld [vmem:[%s1 + $0xd0] sm:$0xff]
    %v170 = vld [vmem:[%s1 + $0xd8] sm:$0xff]
    %v171 = vld [vmem:[%s1 + $0xe0] sm:$0xff]
    %v172 = vld [vmem:[%s1 + $0xe8] sm:$0xff]
    %v173 = vld [vmem:[%s1 + $0xf0] sm:$0xff]
    %v174 = vld [vmem:[%s1 + $0xf8] sm:$0xff]
    %v175 = vld [vmem:[%s1 + $0x100] sm:$0xff]
    %v176 = vld [vmem:[%s1 + $0x108] sm:$0xff]
    %v177 = vld [vmem:[%s1 + $0x110] sm:$0xff]
    %v178 = vld [vmem:[%s1 + $0x118] sm:$0xff]
    %v179 = vld [vmem:[%s1 + $0x120] sm:$0xff]
    %v180 = vld [vmem:[%s1 + $0x128] sm:$0xff]
    %v181 = vld [vmem:[%s1 + $0x130] sm:$0xff]
    %v182 = vld [vmem:[%s1 + $0x138] sm:$0xff]
    %v183 = vld [vmem:[%s1 + $0x140] sm:$0xff]
    %v184 = vld [vmem:[%s1 + $0x148] sm:$0xff]
    %v185 = vld [vmem:[%s1 + $0x150] sm:$0xff]
    %v186 = vld [vmem:[%s1 + $0x158] sm:$0xff]
    %v187 = vld [vmem:[%s1 + $0x160] sm:$0xff]
    %v188 = vld [vmem:[%s1 + $0x168] sm:$0xff]
    %v189 = vld [vmem:[%s1 + $0x170] sm:$0xff]
    %v190 = vld [vmem:[%s1 + $0x178] sm:$0xff]
    %v191 = vld [vmem:[%s1 + $0x180] sm:$0xff]
    %v192 = vld [vmem:[%s1 + $0x188] sm:$0xff]
    %v193 = vld [vmem:[%s1 + $0x190] sm:$0xff]
    %v194 = vld [vmem:[%s1 + $0x198] sm:$0xff]
    %v195 = vld [vmem:[%s1 + $0x1a0] sm:$0xff]
    %v196 = vld [vmem:[%s1 + $0x1a8] sm:$0xff]
    %v197 = vld [vmem:[%s1 + $0x1b0] sm:$0xff]
    %v198 = vld [vmem:[%s1 + $0x1b8] sm:$0xff]
    %v199 = vld [vmem:[%s1 + $0x1c0] sm:$0xff]
    %v200 = vld [vmem:[%s1 + $0x1c8] sm:$0xff]
    %v201 = vld [vmem:[%s1 + $0x1d0] sm:$0xff]
    %v202 = vld [vmem:[%s1 + $0x1d8] sm:$0xff]
    %v203 = vld [vmem:[%s1 + $0x1e0] sm:$0xff]
    %v204 = vld [vmem:[%s1 + $0x1e8] sm:$0xff]
    %v205 = vld [vmem:[%s1 + $0x1f0] sm:$0xff]
    %v206 = vld [vmem:[%s1 + $0x1f8] sm:$0xff]
    %v207 = vld [vmem:[%s1 + $0x200] sm:$0xff]
    %v208 = vld [vmem:[%s1 + $0x208] sm:$0xff]
    %v209 = vld [vmem:[%s1 + $0x210] sm:$0xff]
    %v210 = vld [vmem:[%s1 + $0x218] sm:$0xff]
    %v211 = vld [vmem:[%s1 + $0x220] sm:$0xff]
    %v212 = vld [vmem:[%s1 + $0x228] sm:$0xff]
    %v213 = vld [vmem:[%s1 + $0x230] sm:$0xff]
    %v214 = vld [vmem:[%s1 + $0x238] sm:$0xff]
    %v215 = vld [vmem:[%s1 + $0x240] sm:$0xff]
    %v216 = vld [vmem:[%s1 + $0x248] sm:$0xff]
    %v217 = vld [vmem:[%s1 + $0x250] sm:$0xff]
    %v218 = vld [vmem:[%s1 + $0x258] sm:$0xff]
    %v219 = vld [vmem:[%s1 + $0x260] sm:$0xff]
    %v220 = vld [vmem:[%s1 + $0x268] sm:$0xff]
    %v221 = vld [vmem:[%s1 + $0x270] sm:$0xff]
    %v222 = vld [vmem:[%s1 + $0x278] sm:$0xff]
    %v223 = vld [vmem:[%s1 + $0x280] sm:$0xff]
    %v224 = vld [vmem:[%s1 + $0x288] sm:$0xff]
    %v225 = vld [vmem:[%s1 + $0x290] sm:$0xff]
    %v226 = vld [vmem:[%s1 + $0x298] sm:$0xff]
    %v227 = vld [vmem:[%s1 + $0x2a0] sm:$0xff]
    %v228 = vld [vmem:[%s1 + $0x2a8] sm:$0xff]
    %v229 = vld [vmem:[%s1 + $0x2b0] sm:$0xff]
    %v230 = vld [vmem:[%s1 + $0x2b8] sm:$0xff]
    %v231 = vld [vmem:[%s1 + $0x2c0] sm:$0xff]
    %v232 = vld [vmem:[%s1 + $0x2c8] sm:$0xff]
    %v233 = vld [vmem:[%s1 + $0x2d0] sm:$0xff]
    %v234 = vld [vmem:[%s1 + $0x2d8] sm:$0xff]
    %v235 = vld [vmem:[%s1 + $0x2e0] sm:$0xff]
    %v236 = vld [vmem:[%s1 + $0x2e8] sm:$0xff]
    %v237 = vld [vmem:[%s1 + $0x2f0] sm:$0xff]
    %v238 = vld [vmem:[%s1 + $0x2f8] sm:$0xff]
    %v239 = vld [vmem:[%s5] ss:$8 sm:$0x7]
    %v240 = vld [vmem:[%s5 + $0x1] ss:$0 sm:$0xff]
    %s241 = scalar_lea.vmem %s5, 2
    %v242 = vld [vmem:[%s241] ss:$8 sm:$0xf]
    %v243 = vld [vmem:[%s5 + $0x3] ss:$0 sm:$0xff]
    %v245 = vlaneseq
    %v246 = vshrl.u32 %v245, 7
    %v247 = vsub.s32 0, %v246
    %v248 = vrot.slane %v239, %v247
    %v249 = vlaneseq
    %v250 = vshrl.u32 %v249, 7
    %v251 = vsub.s32 1, %v250
    %v252 = vrot.slane %v239, %v251
    %v253 = vlaneseq
    %v254 = vshrl.u32 %v253, 7
    %v255 = vsub.s32 2, %v254
    %v256 = vrot.slane %v239, %v255
    %260 = vmatprep.subr.mxu0 %v144
    %261 = vmatpush1.msra.mxu0 %v143
    %262 = vmatprep.subr.mxu0 %v147
    %263 = vmatpush1.msra.mxu0 %v146
    %264 = vmatprep.subr.mxu0 %v150
    %265 = vmatpush1.msra.mxu0 %v149
    %266 = vmatprep.subr.mxu0 %v153
    %267 = vmatpush1.msra.mxu0 %v152
    %268 = vmatprep.subr.mxu0 %v156
    %269 = vmatpush1.msra.mxu0 %v155
    %270 = vmatprep.subr.mxu0 %v159
    %271 = vmatpush1.msra.mxu0 %v158
    %272 = vmatprep.subr.mxu0 %v162
    %273 = vmatpush1.msra.mxu0 %v161
    %274 = vmatprep.subr.mxu0 %v165
    %275 = vmatpush1.msra.mxu0 %v164
    %276 = vmatprep.subr.mxu0 %v168
    %277 = vmatpush1.msra.mxu0 %v167
    %278 = vmatprep.subr.mxu0 %v171
    %279 = vmatpush1.msra.mxu0 %v170
    %280 = vmatprep.subr.mxu0 %v174
    %281 = vmatpush1.msra.mxu0 %v173
    %282 = vmatprep.subr.mxu0 %v177
    %283 = vmatpush1.msra.mxu0 %v176
    %284 = vmatprep.subr.mxu0 %v180
    %285 = vmatpush1.msra.mxu0 %v179
    %286 = vmatprep.subr.mxu0 %v183
    %287 = vmatpush1.msra.mxu0 %v182
    %288 = vmatprep.subr.mxu0 %v186
    %289 = vmatpush1.msra.mxu0 %v185
    %290 = vmatprep.subr.mxu0 %v189
    %291 = vmatpush1.msra.mxu0 %v188
    %292 = vmatprep.subr.mxu0 0.0
    %293 = vmatpush1.msra.mxu0 0.0
    %294 = vmatprep.subr.mxu0 0.0
    %295 = vmatpush1.msra.mxu0 0.0
    %296 = vmatprep.subr.mxu0 0.0
    %297 = vmatpush1.msra.mxu0 0.0
    %298 = vmatprep.subr.mxu0 0.0
    %299 = vmatpush1.msra.mxu0 0.0
    %300 = vmatprep.subr.mxu0 0.0
    %301 = vmatpush1.msra.mxu0 0.0
    %302 = vmatprep.subr.mxu0 0.0
    %303 = vmatpush1.msra.mxu0 0.0
    %304 = vmatprep.subr.mxu0 0.0
    %305 = vmatpush1.msra.mxu0 0.0
    %306 = vmatprep.subr.mxu0 0.0
    %307 = vmatpush1.msra.mxu0 0.0
    %308 = vmatprep.subr.mxu0 0.0
    %309 = vmatpush1.msra.mxu0 0.0
    %310 = vmatprep.subr.mxu0 0.0
    %311 = vmatpush1.msra.mxu0 0.0
    %312 = vmatprep.subr.mxu0 0.0
    %313 = vmatpush1.msra.mxu0 0.0
    %314 = vmatprep.subr.mxu0 0.0
    %315 = vmatpush1.msra.mxu0 0.0
    %316 = vmatprep.subr.mxu0 0.0
    %317 = vmatpush1.msra.mxu0 0.0
    %318 = vmatprep.subr.mxu0 0.0
    %319 = vmatpush1.msra.mxu0 0.0
    %320 = vmatprep.subr.mxu0 0.0
    %321 = vmatpush1.msra.mxu0 0.0
    %322 = vmatprep.subr.mxu0 0.0
    %323 = vmatpush1.msra.mxu0 0.0
    %324 = vmatprep.mubr.f32.mxu0 0.0
    %325 = vmatmul.mubr.f32.gmra.mrb[0].mxu0 %v135
    %v326 = vpop.f32.mrb[0].mxu0
    %v327 = vadd.f32 %v248, %v326
    %v328 = vpop.f32.mrb[0].mxu0
    %v329 = vadd.f32 %v252, %v328
    %330 = vmatprep.mubr.f32.mxu0 0.0
    %331 = vmatmul.mubr.f32.gmra.mrb[0].mxu0 %v136
    %v332 = vpop.f32.mrb[0].mxu0
    %v333 = vadd.f32 %v248, %v332
    %v334 = vpop.f32.mrb[0].mxu0
    %v335 = vadd.f32 %v252, %v334
    %336 = vmatprep.mubr.f32.mxu0 0.0
    %337 = vmatmul.mubr.f32.gmra.mrb[0].mxu0 %v137
    %v338 = vpop.f32.mrb[0].mxu0
    %v339 = vadd.f32 %v248, %v338
    %v340 = vpop.f32.mrb[0].mxu0
    %v341 = vadd.f32 %v252, %v340
    %342 = vmatprep.mubr.f32.mxu0 0.0
    %343 = vmatmul.mubr.f32.gmra.mrb[0].mxu0 %v138
    %v344 = vpop.f32.mrb[0].mxu0
    %v345 = vadd.f32 %v248, %v344
    %v346 = vpop.f32.mrb[0].mxu0
    %v347 = vadd.f32 %v252, %v346
    %348 = vmatprep.mubr.f32.mxu0 0.0
    %349 = vmatmul.mubr.f32.gmra.mrb[0].mxu0 %v139
    %v350 = vpop.f32.mrb[0].mxu0
    %v351 = vadd.f32 %v248, %v350
    %v352 = vpop.f32.mrb[0].mxu0
    %v353 = vadd.f32 %v252, %v352
    %354 = vmatprep.mubr.f32.mxu0 0.0
    %355 = vmatmul.mubr.f32.gmra.mrb[0].mxu0 %v140
    %v356 = vpop.f32.mrb[0].mxu0
    %v357 = vadd.f32 %v248, %v356
    %v358 = vpop.f32.mrb[0].mxu0
    %v359 = vadd.f32 %v252, %v358
    %360 = vmatprep.mubr.f32.mxu0 0.0
    %361 = vmatmul.mubr.f32.gmra.mrb[0].mxu0 %v141
    %v362 = vpop.f32.mrb[0].mxu0
    %v363 = vadd.f32 %v248, %v362
    %v364 = vpop.f32.mrb[0].mxu0
    %v365 = vadd.f32 %v252, %v364
    %366 = vmatprep.mubr.f32.mxu0 0.0
    %367 = vmatmul.mubr.f32.gmra.mrb[0].mxu0 %v142
    %v368 = vpop.f32.mrb[0].mxu0
    %v369 = vadd.f32 %v248, %v368
    %v370 = vpop.f32.mrb[0].mxu0
    %v371 = vadd.f32 %v252, %v370
    %372 = vdwg.mxu0
    %373 = vmatprep.subr.mxu0 0.0
    %374 = vmatpush1.msra.mxu0 %v145
    %375 = vmatprep.subr.mxu0 0.0
    %376 = vmatpush1.msra.mxu0 %v148
    %377 = vmatprep.subr.mxu0 0.0
    %378 = vmatpush1.msra.mxu0 %v151
    %379 = vmatprep.subr.mxu0 0.0
    %380 = vmatpush1.msra.mxu0 %v154
    %381 = vmatprep.subr.mxu0 0.0
    %382 = vmatpush1.msra.mxu0 %v157
    %383 = vmatprep.subr.mxu0 0.0
    %384 = vmatpush1.msra.mxu0 %v160
    %385 = vmatprep.subr.mxu0 0.0
    %386 = vmatpush1.msra.mxu0 %v163
    %387 = vmatprep.subr.mxu0 0.0
    %388 = vmatpush1.msra.mxu0 %v166
    %389 = vmatprep.subr.mxu0 0.0
    %390 = vmatpush1.msra.mxu0 %v169
    %391 = vmatprep.subr.mxu0 0.0
    %392 = vmatpush1.msra.mxu0 %v172
    %393 = vmatprep.subr.mxu0 0.0
    %394 = vmatpush1.msra.mxu0 %v175
    %395 = vmatprep.subr.mxu0 0.0
    %396 = vmatpush1.msra.mxu0 %v178
    %397 = vmatprep.subr.mxu0 0.0
    %398 = vmatpush1.msra.mxu0 %v181
    %399 = vmatprep.subr.mxu0 0.0
    %400 = vmatpush1.msra.mxu0 %v184
    %401 = vmatprep.subr.mxu0 0.0
    %402 = vmatpush1.msra.mxu0 %v187
    %403 = vmatprep.subr.mxu0 0.0
    %404 = vmatpush1.msra.mxu0 %v190
    %405 = vmatprep.subr.mxu0 0.0
    %406 = vmatpush1.msra.mxu0 0.0
    %407 = vmatprep.subr.mxu0 0.0
    %408 = vmatpush1.msra.mxu0 0.0
    %409 = vmatprep.subr.mxu0 0.0
    %410 = vmatpush1.msra.mxu0 0.0
    %411 = vmatprep.subr.mxu0 0.0
    %412 = vmatpush1.msra.mxu0 0.0
    %413 = vmatprep.subr.mxu0 0.0
    %414 = vmatpush1.msra.mxu0 0.0
    %415 = vmatprep.subr.mxu0 0.0
    %416 = vmatpush1.msra.mxu0 0.0
    %417 = vmatprep.subr.mxu0 0.0
    %418 = vmatpush1.msra.mxu0 0.0
    %419 = vmatprep.subr.mxu0 0.0
    %420 = vmatpush1.msra.mxu0 0.0
    %421 = vmatprep.subr.mxu0 0.0
    %422 = vmatpush1.msra.mxu0 0.0
    %423 = vmatprep.subr.mxu0 0.0
    %424 = vmatpush1.msra.mxu0 0.0
    %425 = vmatprep.subr.mxu0 0.0
    %426 = vmatpush1.msra.mxu0 0.0
    %427 = vmatprep.subr.mxu0 0.0
    %428 = vmatpush1.msra.mxu0 0.0
    %429 = vmatprep.subr.mxu0 0.0
    %430 = vmatpush1.msra.mxu0 0.0
    %431 = vmatprep.subr.mxu0 0.0
    %432 = vmatpush1.msra.mxu0 0.0
    %433 = vmatprep.subr.mxu0 0.0
    %434 = vmatpush1.msra.mxu0 0.0
    %435 = vmatprep.subr.mxu0 0.0
    %436 = vmatpush1.msra.mxu0 0.0
    %437 = vmatprep.mubr.f32.mxu0 0.0
    %438 = vmatmul.mubr.f32.gmra.mrb[0].mxu0 %v135
    %v439 = vpop.f32.mrb[0].mxu0
    %v440 = vadd.f32 %v256, %v439
    %v441 = vpop.f32.mrb[0].mxu0
    %442 = vmatprep.mubr.f32.mxu0 0.0
    %443 = vmatmul.mubr.f32.gmra.mrb[0].mxu0 %v136
    %v444 = vpop.f32.mrb[0].mxu0
    %v445 = vadd.f32 %v256, %v444
    %v446 = vpop.f32.mrb[0].mxu0
    %447 = vmatprep.mubr.f32.mxu0 0.0
    %448 = vmatmul.mubr.f32.gmra.mrb[0].mxu0 %v137
    %v449 = vpop.f32.mrb[0].mxu0
    %v450 = vadd.f32 %v256, %v449
    %v451 = vpop.f32.mrb[0].mxu0
    %452 = vmatprep.mubr.f32.mxu0 0.0
    %453 = vmatmul.mubr.f32.gmra.mrb[0].mxu0 %v138
    %v454 = vpop.f32.mrb[0].mxu0
    %v455 = vadd.f32 %v256, %v454
    %v456 = vpop.f32.mrb[0].mxu0
    %457 = vmatprep.mubr.f32.mxu0 0.0
    %458 = vmatmul.mubr.f32.gmra.mrb[0].mxu0 %v139
    %v459 = vpop.f32.mrb[0].mxu0
    %v460 = vadd.f32 %v256, %v459
    %v461 = vpop.f32.mrb[0].mxu0
    %462 = vmatprep.mubr.f32.mxu0 0.0
    %463 = vmatmul.mubr.f32.gmra.mrb[0].mxu0 %v140
    %v464 = vpop.f32.mrb[0].mxu0
    %v465 = vadd.f32 %v256, %v464
    %v466 = vpop.f32.mrb[0].mxu0
    %467 = vmatprep.mubr.f32.mxu0 0.0
    %468 = vmatmul.mubr.f32.gmra.mrb[0].mxu0 %v141
    %v469 = vpop.f32.mrb[0].mxu0
    %v470 = vadd.f32 %v256, %v469
    %v471 = vpop.f32.mrb[0].mxu0
    %472 = vmatprep.mubr.f32.mxu0 0.0
    %473 = vmatmul.mubr.f32.gmra.mrb[0].mxu0 %v142
    %v474 = vpop.f32.mrb[0].mxu0
    %v475 = vadd.f32 %v256, %v474
    %v476 = vpop.f32.mrb[0].mxu0
    %477 = vdwg.mxu0
    %478 = vmatprep.subr.mxu0 %v192
    %479 = vmatpush1.msra.mxu0 %v191
    %480 = vmatprep.subr.mxu0 %v195
    %481 = vmatpush1.msra.mxu0 %v194
    %482 = vmatprep.subr.mxu0 %v198
    %483 = vmatpush1.msra.mxu0 %v197
    %484 = vmatprep.subr.mxu0 %v201
    %485 = vmatpush1.msra.mxu0 %v200
    %486 = vmatprep.subr.mxu0 %v204
    %487 = vmatpush1.msra.mxu0 %v203
    %488 = vmatprep.subr.mxu0 %v207
    %489 = vmatpush1.msra.mxu0 %v206
    %490 = vmatprep.subr.mxu0 %v210
    %491 = vmatpush1.msra.mxu0 %v209
    %492 = vmatprep.subr.mxu0 %v213
    %493 = vmatpush1.msra.mxu0 %v212
    %494 = vmatprep.subr.mxu0 %v216
    %495 = vmatpush1.msra.mxu0 %v215
    %496 = vmatprep.subr.mxu0 %v219
    %497 = vmatpush1.msra.mxu0 %v218
    %498 = vmatprep.subr.mxu0 %v222
    %499 = vmatpush1.msra.mxu0 %v221
    %500 = vmatprep.subr.mxu0 %v225
    %501 = vmatpush1.msra.mxu0 %v224
    %502 = vmatprep.subr.mxu0 %v228
    %503 = vmatpush1.msra.mxu0 %v227
    %504 = vmatprep.subr.mxu0 %v231
    %505 = vmatpush1.msra.mxu0 %v230
    %506 = vmatprep.subr.mxu0 %v234
    %507 = vmatpush1.msra.mxu0 %v233
    %508 = vmatprep.subr.mxu0 %v237
    %509 = vmatpush1.msra.mxu0 %v236
    %510 = vmatprep.subr.mxu0 0.0
    %511 = vmatpush1.msra.mxu0 0.0
    %512 = vmatprep.subr.mxu0 0.0
    %513 = vmatpush1.msra.mxu0 0.0
    %514 = vmatprep.subr.mxu0 0.0
    %515 = vmatpush1.msra.mxu0 0.0
    %516 = vmatprep.subr.mxu0 0.0
    %517 = vmatpush1.msra.mxu0 0.0
    %518 = vmatprep.subr.mxu0 0.0
    %519 = vmatpush1.msra.mxu0 0.0
    %520 = vmatprep.subr.mxu0 0.0
    %521 = vmatpush1.msra.mxu0 0.0
    %522 = vmatprep.subr.mxu0 0.0
    %523 = vmatpush1.msra.mxu0 0.0
    %524 = vmatprep.subr.mxu0 0.0
    %525 = vmatpush1.msra.mxu0 0.0
    %526 = vmatprep.subr.mxu0 0.0
    %527 = vmatpush1.msra.mxu0 0.0
    %528 = vmatprep.subr.mxu0 0.0
    %529 = vmatpush1.msra.mxu0 0.0
    %530 = vmatprep.subr.mxu0 0.0
    %531 = vmatpush1.msra.mxu0 0.0
    %532 = vmatprep.subr.mxu0 0.0
    %533 = vmatpush1.msra.mxu0 0.0
    %534 = vmatprep.subr.mxu0 0.0
    %535 = vmatpush1.msra.mxu0 0.0
    %536 = vmatprep.subr.mxu0 0.0
    %537 = vmatpush1.msra.mxu0 0.0
    %538 = vmatprep.subr.mxu0 0.0
    %539 = vmatpush1.msra.mxu0 0.0
    %540 = vmatprep.subr.mxu0 0.0
    %541 = vmatpush1.msra.mxu0 0.0
    %542 = vmatprep.mubr.f32.mxu0 0.0
    %543 = vmatmul.mubr.f32.gmra.mrb[0].mxu0 0.0
    %v544 = vpop.f32.mrb[0].mxu0
    %v545 = vadd.f32 0.0, %v544
    %v546 = vpop.f32.mrb[0].mxu0
    %v547 = vadd.f32 0.0, %v546
    %548 = vdwg.mxu0
    %549 = vmatprep.subr.mxu0 0.0
    %550 = vmatpush1.msra.mxu0 %v193
    %551 = vmatprep.subr.mxu0 0.0
    %552 = vmatpush1.msra.mxu0 %v196
    %553 = vmatprep.subr.mxu0 0.0
    %554 = vmatpush1.msra.mxu0 %v199
    %555 = vmatprep.subr.mxu0 0.0
    %556 = vmatpush1.msra.mxu0 %v202
    %557 = vmatprep.subr.mxu0 0.0
    %558 = vmatpush1.msra.mxu0 %v205
    %559 = vmatprep.subr.mxu0 0.0
    %560 = vmatpush1.msra.mxu0 %v208
    %561 = vmatprep.subr.mxu0 0.0
    %562 = vmatpush1.msra.mxu0 %v211
    %563 = vmatprep.subr.mxu0 0.0
    %564 = vmatpush1.msra.mxu0 %v214
    %565 = vmatprep.subr.mxu0 0.0
    %566 = vmatpush1.msra.mxu0 %v217
    %567 = vmatprep.subr.mxu0 0.0
    %568 = vmatpush1.msra.mxu0 %v220
    %569 = vmatprep.subr.mxu0 0.0
    %570 = vmatpush1.msra.mxu0 %v223
    %571 = vmatprep.subr.mxu0 0.0
    %572 = vmatpush1.msra.mxu0 %v226
    %573 = vmatprep.subr.mxu0 0.0
    %574 = vmatpush1.msra.mxu0 %v229
    %575 = vmatprep.subr.mxu0 0.0
    %576 = vmatpush1.msra.mxu0 %v232
    %577 = vmatprep.subr.mxu0 0.0
    %578 = vmatpush1.msra.mxu0 %v235
    %579 = vmatprep.subr.mxu0 0.0
    %580 = vmatpush1.msra.mxu0 %v238
    %581 = vmatprep.subr.mxu0 0.0
    %582 = vmatpush1.msra.mxu0 0.0
    %583 = vmatprep.subr.mxu0 0.0
    %584 = vmatpush1.msra.mxu0 0.0
    %585 = vmatprep.subr.mxu0 0.0
    %586 = vmatpush1.msra.mxu0 0.0
    %587 = vmatprep.subr.mxu0 0.0
    %588 = vmatpush1.msra.mxu0 0.0
    %589 = vmatprep.subr.mxu0 0.0
    %590 = vmatpush1.msra.mxu0 0.0
    %591 = vmatprep.subr.mxu0 0.0
    %592 = vmatpush1.msra.mxu0 0.0
    %593 = vmatprep.subr.mxu0 0.0
    %594 = vmatpush1.msra.mxu0 0.0
    %595 = vmatprep.subr.mxu0 0.0
    %596 = vmatpush1.msra.mxu0 0.0
    %597 = vmatprep.subr.mxu0 0.0
    %598 = vmatpush1.msra.mxu0 0.0
    %599 = vmatprep.subr.mxu0 0.0
    %600 = vmatpush1.msra.mxu0 0.0
    %601 = vmatprep.subr.mxu0 0.0
    %602 = vmatpush1.msra.mxu0 0.0
    %603 = vmatprep.subr.mxu0 0.0
    %604 = vmatpush1.msra.mxu0 0.0
    %605 = vmatprep.subr.mxu0 0.0
    %606 = vmatpush1.msra.mxu0 0.0
    %607 = vmatprep.subr.mxu0 0.0
    %608 = vmatpush1.msra.mxu0 0.0
    %609 = vmatprep.subr.mxu0 0.0
    %610 = vmatpush1.msra.mxu0 0.0
    %611 = vmatprep.subr.mxu0 0.0
    %612 = vmatpush1.msra.mxu0 0.0
    %613 = vmatprep.mubr.f32.mxu0 0.0
    %614 = vmatmul.mubr.f32.gmra.mrb[0].mxu0 0.0
    %v615 = vpop.f32.mrb[0].mxu0
    %v616 = vadd.f32 0.0, %v615
    %v617 = vpop.f32.mrb[0].mxu0
    %618 = vdwg.mxu0
    %v619 = vadd.f32 %v327, %v545
    %v620 = vxor.u32 %v619, 2147483648
    %v621 = vmul.f32 %v620, 1.442695
    %v622 = vpow.pop %v621
    %v623 = vadd.f32 %v622, 1.0
    %v624 = vrcp.pop %v623
    %v625 = vmul.f32 1.0, %v624
    %v626 = vadd.f32 %v329, %v547
    %v627 = vxor.u32 %v626, 2147483648
    %v628 = vmul.f32 %v627, 1.442695
    %v629 = vpow.pop %v628
    %v630 = vadd.f32 %v629, 1.0
    %v631 = vrcp.pop %v630
    %v632 = vmul.f32 1.0, %v631
    %v633 = vadd.f32 %v616, %v240
    %v634 = vmul.f32 %v625, %v633
    %v635 = vadd.f32 %v440, %v634
    %v636 = vtanh.pop %v635
    %v637 = vsub.f32 1.0, %v632
    %v638 = vmul.f32 %v637, %v636
    %v639 = vmul.f32 %v632, 0.0
    %v640 = vadd.f32 %v638, %v639
    %641 = vmatprep.subr.mxu0 %v192
    %642 = vmatpush1.msra.mxu0 %v191
    %643 = vmatprep.subr.mxu0 %v195
    %644 = vmatpush1.msra.mxu0 %v194
    %645 = vmatprep.subr.mxu0 %v198
    %646 = vmatpush1.msra.mxu0 %v197
    %647 = vmatprep.subr.mxu0 %v201
    %648 = vmatpush1.msra.mxu0 %v200
    %649 = vmatprep.subr.mxu0 %v204
    %650 = vmatpush1.msra.mxu0 %v203
    %651 = vmatprep.subr.mxu0 %v207
    %652 = vmatpush1.msra.mxu0 %v206
    %653 = vmatprep.subr.mxu0 %v210
    %654 = vmatpush1.msra.mxu0 %v209
    %655 = vmatprep.subr.mxu0 %v213
    %656 = vmatpush1.msra.mxu0 %v212
    %657 = vmatprep.subr.mxu0 %v216
    %658 = vmatpush1.msra.mxu0 %v215
    %659 = vmatprep.subr.mxu0 %v219
    %660 = vmatpush1.msra.mxu0 %v218
    %661 = vmatprep.subr.mxu0 %v222
    %662 = vmatpush1.msra.mxu0 %v221
    %663 = vmatprep.subr.mxu0 %v225
    %664 = vmatpush1.msra.mxu0 %v224
    %665 = vmatprep.subr.mxu0 %v228
    %666 = vmatpush1.msra.mxu0 %v227
    %667 = vmatprep.subr.mxu0 %v231
    %668 = vmatpush1.msra.mxu0 %v230
    %669 = vmatprep.subr.mxu0 %v234
    %670 = vmatpush1.msra.mxu0 %v233
    %671 = vmatprep.subr.mxu0 %v237
    %672 = vmatpush1.msra.mxu0 %v236
    %673 = vmatprep.subr.mxu0 0.0
    %674 = vmatpush1.msra.mxu0 0.0
    %675 = vmatprep.subr.mxu0 0.0
    %676 = vmatpush1.msra.mxu0 0.0
    %677 = vmatprep.subr.mxu0 0.0
    %678 = vmatpush1.msra.mxu0 0.0
    %679 = vmatprep.subr.mxu0 0.0
    %680 = vmatpush1.msra.mxu0 0.0
    %681 = vmatprep.subr.mxu0 0.0
    %682 = vmatpush1.msra.mxu0 0.0
    %683 = vmatprep.subr.mxu0 0.0
    %684 = vmatpush1.msra.mxu0 0.0
    %685 = vmatprep.subr.mxu0 0.0
    %686 = vmatpush1.msra.mxu0 0.0
    %687 = vmatprep.subr.mxu0 0.0
    %688 = vmatpush1.msra.mxu0 0.0
    %689 = vmatprep.subr.mxu0 0.0
    %690 = vmatpush1.msra.mxu0 0.0
    %691 = vmatprep.subr.mxu0 0.0
    %692 = vmatpush1.msra.mxu0 0.0
    %693 = vmatprep.subr.mxu0 0.0
    %694 = vmatpush1.msra.mxu0 0.0
    %695 = vmatprep.subr.mxu0 0.0
    %696 = vmatpush1.msra.mxu0 0.0
    %697 = vmatprep.subr.mxu0 0.0
    %698 = vmatpush1.msra.mxu0 0.0
    %699 = vmatprep.subr.mxu0 0.0
    %700 = vmatpush1.msra.mxu0 0.0
    %701 = vmatprep.subr.mxu0 0.0
    %702 = vmatpush1.msra.mxu0 0.0
    %703 = vmatprep.subr.mxu0 0.0
    %704 = vmatpush1.msra.mxu0 0.0
    %705 = vmatprep.mubr.f32.mxu0 0.0
    %706 = vmatmul.mubr.f32.gmra.mrb[0].mxu0 %v640
    %v707 = vpop.f32.mrb[0].mxu0
    %v708 = vadd.f32 0.0, %v707
    %v709 = vpop.f32.mrb[0].mxu0
    %v710 = vadd.f32 0.0, %v709
    %711 = vdwg.mxu0
    %712 = vmatprep.subr.mxu0 0.0
    %713 = vmatpush1.msra.mxu0 %v193
    %714 = vmatprep.subr.mxu0 0.0
    %715 = vmatpush1.msra.mxu0 %v196
    %716 = vmatprep.subr.mxu0 0.0
    %717 = vmatpush1.msra.mxu0 %v199
    %718 = vmatprep.subr.mxu0 0.0
    %719 = vmatpush1.msra.mxu0 %v202
    %720 = vmatprep.subr.mxu0 0.0
    %721 = vmatpush1.msra.mxu0 %v205
    %722 = vmatprep.subr.mxu0 0.0
    %723 = vmatpush1.msra.mxu0 %v208
    %724 = vmatprep.subr.mxu0 0.0
    %725 = vmatpush1.msra.mxu0 %v211
    %726 = vmatprep.subr.mxu0 0.0
    %727 = vmatpush1.msra.mxu0 %v214
    %728 = vmatprep.subr.mxu0 0.0
    %729 = vmatpush1.msra.mxu0 %v217
    %730 = vmatprep.subr.mxu0 0.0
    %731 = vmatpush1.msra.mxu0 %v220
    %732 = vmatprep.subr.mxu0 0.0
    %733 = vmatpush1.msra.mxu0 %v223
    %734 = vmatprep.subr.mxu0 0.0
    %735 = vmatpush1.msra.mxu0 %v226
    %736 = vmatprep.subr.mxu0 0.0
    %737 = vmatpush1.msra.mxu0 %v229
    %738 = vmatprep.subr.mxu0 0.0
    %739 = vmatpush1.msra.mxu0 %v232
    %740 = vmatprep.subr.mxu0 0.0
    %741 = vmatpush1.msra.mxu0 %v235
    %742 = vmatprep.subr.mxu0 0.0
    %743 = vmatpush1.msra.mxu0 %v238
    %744 = vmatprep.subr.mxu0 0.0
    %745 = vmatpush1.msra.mxu0 0.0
    %746 = vmatprep.subr.mxu0 0.0
    %747 = vmatpush1.msra.mxu0 0.0
    %748 = vmatprep.subr.mxu0 0.0
    %749 = vmatpush1.msra.mxu0 0.0
    %750 = vmatprep.subr.mxu0 0.0
    %751 = vmatpush1.msra.mxu0 0.0
    %752 = vmatprep.subr.mxu0 0.0
    %753 = vmatpush1.msra.mxu0 0.0
    %754 = vmatprep.subr.mxu0 0.0
    %755 = vmatpush1.msra.mxu0 0.0
    %756 = vmatprep.subr.mxu0 0.0
    %757 = vmatpush1.msra.mxu0 0.0
    %758 = vmatprep.subr.mxu0 0.0
    %759 = vmatpush1.msra.mxu0 0.0
    %760 = vmatprep.subr.mxu0 0.0
    %761 = vmatpush1.msra.mxu0 0.0
    %762 = vmatprep.subr.mxu0 0.0
    %763 = vmatpush1.msra.mxu0 0.0
    %764 = vmatprep.subr.mxu0 0.0
    %765 = vmatpush1.msra.mxu0 0.0
    %766 = vmatprep.subr.mxu0 0.0
    %767 = vmatpush1.msra.mxu0 0.0
    %768 = vmatprep.subr.mxu0 0.0
    %769 = vmatpush1.msra.mxu0 0.0
    %770 = vmatprep.subr.mxu0 0.0
    %771 = vmatpush1.msra.mxu0 0.0
    %772 = vmatprep.subr.mxu0 0.0
    %773 = vmatpush1.msra.mxu0 0.0
    %774 = vmatprep.subr.mxu0 0.0
    %775 = vmatpush1.msra.mxu0 0.0
    %776 = vmatprep.mubr.f32.mxu0 0.0
    %777 = vmatmul.mubr.f32.gmra.mrb[0].mxu0 %v640
    %v778 = vpop.f32.mrb[0].mxu0
    %v779 = vadd.f32 0.0, %v778
    %v780 = vpop.f32.mrb[0].mxu0
    %781 = vdwg.mxu0
    %v782 = vadd.f32 %v333, %v708
    %v783 = vxor.u32 %v782, 2147483648
    %v784 = vmul.f32 %v783, 1.442695
    %v785 = vpow.pop %v784
    %v786 = vadd.f32 %v785, 1.0
    %v787 = vrcp.pop %v786
    %v788 = vmul.f32 1.0, %v787
    %v789 = vadd.f32 %v335, %v710
    %v790 = vxor.u32 %v789, 2147483648
    %v791 = vmul.f32 %v790, 1.442695
    %v792 = vpow.pop %v791
    %v793 = vadd.f32 %v792, 1.0
    %v794 = vrcp.pop %v793
    %v795 = vmul.f32 1.0, %v794
    %v796 = vadd.f32 %v779, %v240
    %v797 = vmul.f32 %v788, %v796
    %v798 = vadd.f32 %v445, %v797
    %v799 = vtanh.pop %v798
    %v800 = vsub.f32 1.0, %v795
    %v801 = vmul.f32 %v800, %v799
    %v802 = vmul.f32 %v795, %v640
    %v803 = vadd.f32 %v801, %v802
    %804 = vmatprep.subr.mxu0 %v192
    %805 = vmatpush1.msra.mxu0 %v191
    %806 = vmatprep.subr.mxu0 %v195
    %807 = vmatpush1.msra.mxu0 %v194
    %808 = vmatprep.subr.mxu0 %v198
    %809 = vmatpush1.msra.mxu0 %v197
    %810 = vmatprep.subr.mxu0 %v201
    %811 = vmatpush1.msra.mxu0 %v200
    %812 = vmatprep.subr.mxu0 %v204
    %813 = vmatpush1.msra.mxu0 %v203
    %814 = vmatprep.subr.mxu0 %v207
    %815 = vmatpush1.msra.mxu0 %v206
    %816 = vmatprep.subr.mxu0 %v210
    %817 = vmatpush1.msra.mxu0 %v209
    %818 = vmatprep.subr.mxu0 %v213
    %819 = vmatpush1.msra.mxu0 %v212
    %820 = vmatprep.subr.mxu0 %v216
    %821 = vmatpush1.msra.mxu0 %v215
    %822 = vmatprep.subr.mxu0 %v219
    %823 = vmatpush1.msra.mxu0 %v218
    %824 = vmatprep.subr.mxu0 %v222
    %825 = vmatpush1.msra.mxu0 %v221
    %826 = vmatprep.subr.mxu0 %v225
    %827 = vmatpush1.msra.mxu0 %v224
    %828 = vmatprep.subr.mxu0 %v228
    %829 = vmatpush1.msra.mxu0 %v227
    %830 = vmatprep.subr.mxu0 %v231
    %831 = vmatpush1.msra.mxu0 %v230
    %832 = vmatprep.subr.mxu0 %v234
    %833 = vmatpush1.msra.mxu0 %v233
    %834 = vmatprep.subr.mxu0 %v237
    %835 = vmatpush1.msra.mxu0 %v236
    %836 = vmatprep.subr.mxu0 0.0
    %837 = vmatpush1.msra.mxu0 0.0
    %838 = vmatprep.subr.mxu0 0.0
    %839 = vmatpush1.msra.mxu0 0.0
    %840 = vmatprep.subr.mxu0 0.0
    %841 = vmatpush1.msra.mxu0 0.0
    %842 = vmatprep.subr.mxu0 0.0
    %843 = vmatpush1.msra.mxu0 0.0
    %844 = vmatprep.subr.mxu0 0.0
    %845 = vmatpush1.msra.mxu0 0.0
    %846 = vmatprep.subr.mxu0 0.0
    %847 = vmatpush1.msra.mxu0 0.0
    %848 = vmatprep.subr.mxu0 0.0
    %849 = vmatpush1.msra.mxu0 0.0
    %850 = vmatprep.subr.mxu0 0.0
    %851 = vmatpush1.msra.mxu0 0.0
    %852 = vmatprep.subr.mxu0 0.0
    %853 = vmatpush1.msra.mxu0 0.0
    %854 = vmatprep.subr.mxu0 0.0
    %855 = vmatpush1.msra.mxu0 0.0
    %856 = vmatprep.subr.mxu0 0.0
    %857 = vmatpush1.msra.mxu0 0.0
    %858 = vmatprep.subr.mxu0 0.0
    %859 = vmatpush1.msra.mxu0 0.0
    %860 = vmatprep.subr.mxu0 0.0
    %861 = vmatpush1.msra.mxu0 0.0
    %862 = vmatprep.subr.mxu0 0.0
    %863 = vmatpush1.msra.mxu0 0.0
    %864 = vmatprep.subr.mxu0 0.0
    %865 = vmatpush1.msra.mxu0 0.0
    %866 = vmatprep.subr.mxu0 0.0
    %867 = vmatpush1.msra.mxu0 0.0
    %868 = vmatprep.mubr.f32.mxu0 0.0
    %869 = vmatmul.mubr.f32.gmra.mrb[0].mxu0 %v803
    %v870 = vpop.f32.mrb[0].mxu0
    %v871 = vadd.f32 0.0, %v870
    %v872 = vpop.f32.mrb[0].mxu0
    %v873 = vadd.f32 0.0, %v872
    %874 = vdwg.mxu0
    %875 = vmatprep.subr.mxu0 0.0
    %876 = vmatpush1.msra.mxu0 %v193
    %877 = vmatprep.subr.mxu0 0.0
    %878 = vmatpush1.msra.mxu0 %v196
    %879 = vmatprep.subr.mxu0 0.0
    %880 = vmatpush1.msra.mxu0 %v199
    %881 = vmatprep.subr.mxu0 0.0
    %882 = vmatpush1.msra.mxu0 %v202
    %883 = vmatprep.subr.mxu0 0.0
    %884 = vmatpush1.msra.mxu0 %v205
    %885 = vmatprep.subr.mxu0 0.0
    %886 = vmatpush1.msra.mxu0 %v208
    %887 = vmatprep.subr.mxu0 0.0
    %888 = vmatpush1.msra.mxu0 %v211
    %889 = vmatprep.subr.mxu0 0.0
    %890 = vmatpush1.msra.mxu0 %v214
    %891 = vmatprep.subr.mxu0 0.0
    %892 = vmatpush1.msra.mxu0 %v217
    %893 = vmatprep.subr.mxu0 0.0
    %894 = vmatpush1.msra.mxu0 %v220
    %895 = vmatprep.subr.mxu0 0.0
    %896 = vmatpush1.msra.mxu0 %v223
    %897 = vmatprep.subr.mxu0 0.0
    %898 = vmatpush1.msra.mxu0 %v226
    %899 = vmatprep.subr.mxu0 0.0
    %900 = vmatpush1.msra.mxu0 %v229
    %901 = vmatprep.subr.mxu0 0.0
    %902 = vmatpush1.msra.mxu0 %v232
    %903 = vmatprep.subr.mxu0 0.0
    %904 = vmatpush1.msra.mxu0 %v235
    %905 = vmatprep.subr.mxu0 0.0
    %906 = vmatpush1.msra.mxu0 %v238
    %907 = vmatprep.subr.mxu0 0.0
    %908 = vmatpush1.msra.mxu0 0.0
    %909 = vmatprep.subr.mxu0 0.0
    %910 = vmatpush1.msra.mxu0 0.0
    %911 = vmatprep.subr.mxu0 0.0
    %912 = vmatpush1.msra.mxu0 0.0
    %913 = vmatprep.subr.mxu0 0.0
    %914 = vmatpush1.msra.mxu0 0.0
    %915 = vmatprep.subr.mxu0 0.0
    %916 = vmatpush1.msra.mxu0 0.0
    %917 = vmatprep.subr.mxu0 0.0
    %918 = vmatpush1.msra.mxu0 0.0
    %919 = vmatprep.subr.mxu0 0.0
    %920 = vmatpush1.msra.mxu0 0.0
    %921 = vmatprep.subr.mxu0 0.0
    %922 = vmatpush1.msra.mxu0 0.0
    %923 = vmatprep.subr.mxu0 0.0
    %924 = vmatpush1.msra.mxu0 0.0
    %925 = vmatprep.subr.mxu0 0.0
    %926 = vmatpush1.msra.mxu0 0.0
    %927 = vmatprep.subr.mxu0 0.0
    %928 = vmatpush1.msra.mxu0 0.0
    %929 = vmatprep.subr.mxu0 0.0
    %930 = vmatpush1.msra.mxu0 0.0
    %931 = vmatprep.subr.mxu0 0.0
    %932 = vmatpush1.msra.mxu0 0.0
    %933 = vmatprep.subr.mxu0 0.0
    %934 = vmatpush1.msra.mxu0 0.0
    %935 = vmatprep.subr.mxu0 0.0
    %936 = vmatpush1.msra.mxu0 0.0
    %937 = vmatprep.subr.mxu0 0.0
    %938 = vmatpush1.msra.mxu0 0.0
    %939 = vmatprep.mubr.f32.mxu0 0.0
    %940 = vmatmul.mubr.f32.gmra.mrb[0].mxu0 %v803
    %v941 = vpop.f32.mrb[0].mxu0
    %v942 = vadd.f32 0.0, %v941
    %v943 = vpop.f32.mrb[0].mxu0
    %944 = vdwg.mxu0
    %v945 = vadd.f32 %v339, %v871
    %v946 = vxor.u32 %v945, 2147483648
    %v947 = vmul.f32 %v946, 1.442695
    %v948 = vpow.pop %v947
    %v949 = vadd.f32 %v948, 1.0
    %v950 = vrcp.pop %v949
    %v951 = vmul.f32 1.0, %v950
    %v952 = vadd.f32 %v341, %v873
    %v953 = vxor.u32 %v952, 2147483648
    %v954 = vmul.f32 %v953, 1.442695
    %v955 = vpow.pop %v954
    %v956 = vadd.f32 %v955, 1.0
    %v957 = vrcp.pop %v956
    %v958 = vmul.f32 1.0, %v957
    %v959 = vadd.f32 %v942, %v240
    %v960 = vmul.f32 %v951, %v959
    %v961 = vadd.f32 %v450, %v960
    %v962 = vtanh.pop %v961
    %v963 = vsub.f32 1.0, %v958
    %v964 = vmul.f32 %v963, %v962
    %v965 = vmul.f32 %v958, %v803
    %v966 = vadd.f32 %v964, %v965
    %967 = vmatprep.subr.mxu0 %v192
    %968 = vmatpush1.msra.mxu0 %v191
    %969 = vmatprep.subr.mxu0 %v195
    %970 = vmatpush1.msra.mxu0 %v194
    %971 = vmatprep.subr.mxu0 %v198
    %972 = vmatpush1.msra.mxu0 %v197
    %973 = vmatprep.subr.mxu0 %v201
    %974 = vmatpush1.msra.mxu0 %v200
    %975 = vmatprep.subr.mxu0 %v204
    %976 = vmatpush1.msra.mxu0 %v203
    %977 = vmatprep.subr.mxu0 %v207
    %978 = vmatpush1.msra.mxu0 %v206
    %979 = vmatprep.subr.mxu0 %v210
    %980 = vmatpush1.msra.mxu0 %v209
    %981 = vmatprep.subr.mxu0 %v213
    %982 = vmatpush1.msra.mxu0 %v212
    %983 = vmatprep.subr.mxu0 %v216
    %984 = vmatpush1.msra.mxu0 %v215
    %985 = vmatprep.subr.mxu0 %v219
    %986 = vmatpush1.msra.mxu0 %v218
    %987 = vmatprep.subr.mxu0 %v222
    %988 = vmatpush1.msra.mxu0 %v221
    %989 = vmatprep.subr.mxu0 %v225
    %990 = vmatpush1.msra.mxu0 %v224
    %991 = vmatprep.subr.mxu0 %v228
    %992 = vmatpush1.msra.mxu0 %v227
    %993 = vmatprep.subr.mxu0 %v231
    %994 = vmatpush1.msra.mxu0 %v230
    %995 = vmatprep.subr.mxu0 %v234
    %996 = vmatpush1.msra.mxu0 %v233
    %997 = vmatprep.subr.mxu0 %v237
    %998 = vmatpush1.msra.mxu0 %v236
    %999 = vmatprep.subr.mxu0 0.0
    %1000 = vmatpush1.msra.mxu0 0.0
    %1001 = vmatprep.subr.mxu0 0.0
    %1002 = vmatpush1.msra.mxu0 0.0
    %1003 = vmatprep.subr.mxu0 0.0
    %1004 = vmatpush1.msra.mxu0 0.0
    %1005 = vmatprep.subr.mxu0 0.0
    %1006 = vmatpush1.msra.mxu0 0.0
    %1007 = vmatprep.subr.mxu0 0.0
    %1008 = vmatpush1.msra.mxu0 0.0
    %1009 = vmatprep.subr.mxu0 0.0
    %1010 = vmatpush1.msra.mxu0 0.0
    %1011 = vmatprep.subr.mxu0 0.0
    %1012 = vmatpush1.msra.mxu0 0.0
    %1013 = vmatprep.subr.mxu0 0.0
    %1014 = vmatpush1.msra.mxu0 0.0
    %1015 = vmatprep.subr.mxu0 0.0
    %1016 = vmatpush1.msra.mxu0 0.0
    %1017 = vmatprep.subr.mxu0 0.0
    %1018 = vmatpush1.msra.mxu0 0.0
    %1019 = vmatprep.subr.mxu0 0.0
    %1020 = vmatpush1.msra.mxu0 0.0
    %1021 = vmatprep.subr.mxu0 0.0
    %1022 = vmatpush1.msra.mxu0 0.0
    %1023 = vmatprep.subr.mxu0 0.0
    %1024 = vmatpush1.msra.mxu0 0.0
    %1025 = vmatprep.subr.mxu0 0.0
    %1026 = vmatpush1.msra.mxu0 0.0
    %1027 = vmatprep.subr.mxu0 0.0
    %1028 = vmatpush1.msra.mxu0 0.0
    %1029 = vmatprep.subr.mxu0 0.0
    %1030 = vmatpush1.msra.mxu0 0.0
    %1031 = vmatprep.mubr.f32.mxu0 0.0
    %1032 = vmatmul.mubr.f32.gmra.mrb[0].mxu0 %v966
    %v1033 = vpop.f32.mrb[0].mxu0
    %v1034 = vadd.f32 0.0, %v1033
    %v1035 = vpop.f32.mrb[0].mxu0
    %v1036 = vadd.f32 0.0, %v1035
    %1037 = vdwg.mxu0
    %1038 = vmatprep.subr.mxu0 0.0
    %1039 = vmatpush1.msra.mxu0 %v193
    %1040 = vmatprep.subr.mxu0 0.0
    %1041 = vmatpush1.msra.mxu0 %v196
    %1042 = vmatprep.subr.mxu0 0.0
    %1043 = vmatpush1.msra.mxu0 %v199
    %1044 = vmatprep.subr.mxu0 0.0
    %1045 = vmatpush1.msra.mxu0 %v202
    %1046 = vmatprep.subr.mxu0 0.0
    %1047 = vmatpush1.msra.mxu0 %v205
    %1048 = vmatprep.subr.mxu0 0.0
    %1049 = vmatpush1.msra.mxu0 %v208
    %1050 = vmatprep.subr.mxu0 0.0
    %1051 = vmatpush1.msra.mxu0 %v211
    %1052 = vmatprep.subr.mxu0 0.0
    %1053 = vmatpush1.msra.mxu0 %v214
    %1054 = vmatprep.subr.mxu0 0.0
    %1055 = vmatpush1.msra.mxu0 %v217
    %1056 = vmatprep.subr.mxu0 0.0
    %1057 = vmatpush1.msra.mxu0 %v220
    %1058 = vmatprep.subr.mxu0 0.0
    %1059 = vmatpush1.msra.mxu0 %v223
    %1060 = vmatprep.subr.mxu0 0.0
    %1061 = vmatpush1.msra.mxu0 %v226
    %1062 = vmatprep.subr.mxu0 0.0
    %1063 = vmatpush1.msra.mxu0 %v229
    %1064 = vmatprep.subr.mxu0 0.0
    %1065 = vmatpush1.msra.mxu0 %v232
    %1066 = vmatprep.subr.mxu0 0.0
    %1067 = vmatpush1.msra.mxu0 %v235
    %1068 = vmatprep.subr.mxu0 0.0
    %1069 = vmatpush1.msra.mxu0 %v238
    %1070 = vmatprep.subr.mxu0 0.0
    %1071 = vmatpush1.msra.mxu0 0.0
    %1072 = vmatprep.subr.mxu0 0.0
    %1073 = vmatpush1.msra.mxu0 0.0
    %1074 = vmatprep.subr.mxu0 0.0
    %1075 = vmatpush1.msra.mxu0 0.0
    %1076 = vmatprep.subr.mxu0 0.0
    %1077 = vmatpush1.msra.mxu0 0.0
    %1078 = vmatprep.subr.mxu0 0.0
    %1079 = vmatpush1.msra.mxu0 0.0
    %1080 = vmatprep.subr.mxu0 0.0
    %1081 = vmatpush1.msra.mxu0 0.0
    %1082 = vmatprep.subr.mxu0 0.0
    %1083 = vmatpush1.msra.mxu0 0.0
    %1084 = vmatprep.subr.mxu0 0.0
    %1085 = vmatpush1.msra.mxu0 0.0
    %1086 = vmatprep.subr.mxu0 0.0
    %1087 = vmatpush1.msra.mxu0 0.0
    %1088 = vmatprep.subr.mxu0 0.0
    %1089 = vmatpush1.msra.mxu0 0.0
    %1090 = vmatprep.subr.mxu0 0.0
    %1091 = vmatpush1.msra.mxu0 0.0
    %1092 = vmatprep.subr.mxu0 0.0
    %1093 = vmatpush1.msra.mxu0 0.0
    %1094 = vmatprep.subr.mxu0 0.0
    %1095 = vmatpush1.msra.mxu0 0.0
    %1096 = vmatprep.subr.mxu0 0.0
    %1097 = vmatpush1.msra.mxu0 0.0
    %1098 = vmatprep.subr.mxu0 0.0
    %1099 = vmatpush1.msra.mxu0 0.0
    %1100 = vmatprep.subr.mxu0 0.0
    %1101 = vmatpush1.msra.mxu0 0.0
    %1102 = vmatprep.mubr.f32.mxu0 0.0
    %1103 = vmatmul.mubr.f32.gmra.mrb[0].mxu0 %v966
    %v1104 = vpop.f32.mrb[0].mxu0
    %v1105 = vadd.f32 0.0, %v1104
    %v1106 = vpop.f32.mrb[0].mxu0
    %1107 = vdwg.mxu0
    %v1108 = vadd.f32 %v345, %v1034
    %v1109 = vxor.u32 %v1108, 2147483648
    %v1110 = vmul.f32 %v1109, 1.442695
    %v1111 = vpow.pop %v1110
    %v1112 = vadd.f32 %v1111, 1.0
    %v1113 = vrcp.pop %v1112
    %v1114 = vmul.f32 1.0, %v1113
    %v1115 = vadd.f32 %v347, %v1036
    %v1116 = vxor.u32 %v1115, 2147483648
    %v1117 = vmul.f32 %v1116, 1.442695
    %v1118 = vpow.pop %v1117
    %v1119 = vadd.f32 %v1118, 1.0
    %v1120 = vrcp.pop %v1119
    %v1121 = vmul.f32 1.0, %v1120
    %v1122 = vadd.f32 %v1105, %v240
    %v1123 = vmul.f32 %v1114, %v1122
    %v1124 = vadd.f32 %v455, %v1123
    %v1125 = vtanh.pop %v1124
    %v1126 = vsub.f32 1.0, %v1121
    %v1127 = vmul.f32 %v1126, %v1125
    %v1128 = vmul.f32 %v1121, %v966
    %v1129 = vadd.f32 %v1127, %v1128
    %1130 = vmatprep.subr.mxu0 %v192
    %1131 = vmatpush1.msra.mxu0 %v191
    %1132 = vmatprep.subr.mxu0 %v195
    %1133 = vmatpush1.msra.mxu0 %v194
    %1134 = vmatprep.subr.mxu0 %v198
    %1135 = vmatpush1.msra.mxu0 %v197
    %1136 = vmatprep.subr.mxu0 %v201
    %1137 = vmatpush1.msra.mxu0 %v200
    %1138 = vmatprep.subr.mxu0 %v204
    %1139 = vmatpush1.msra.mxu0 %v203
    %1140 = vmatprep.subr.mxu0 %v207
    %1141 = vmatpush1.msra.mxu0 %v206
    %1142 = vmatprep.subr.mxu0 %v210
    %1143 = vmatpush1.msra.mxu0 %v209
    %1144 = vmatprep.subr.mxu0 %v213
    %1145 = vmatpush1.msra.mxu0 %v212
    %1146 = vmatprep.subr.mxu0 %v216
    %1147 = vmatpush1.msra.mxu0 %v215
    %1148 = vmatprep.subr.mxu0 %v219
    %1149 = vmatpush1.msra.mxu0 %v218
    %1150 = vmatprep.subr.mxu0 %v222
    %1151 = vmatpush1.msra.mxu0 %v221
    %1152 = vmatprep.subr.mxu0 %v225
    %1153 = vmatpush1.msra.mxu0 %v224
    %1154 = vmatprep.subr.mxu0 %v228
    %1155 = vmatpush1.msra.mxu0 %v227
    %1156 = vmatprep.subr.mxu0 %v231
    %1157 = vmatpush1.msra.mxu0 %v230
    %1158 = vmatprep.subr.mxu0 %v234
    %1159 = vmatpush1.msra.mxu0 %v233
    %1160 = vmatprep.subr.mxu0 %v237
    %1161 = vmatpush1.msra.mxu0 %v236
    %1162 = vmatprep.subr.mxu0 0.0
    %1163 = vmatpush1.msra.mxu0 0.0
    %1164 = vmatprep.subr.mxu0 0.0
    %1165 = vmatpush1.msra.mxu0 0.0
    %1166 = vmatprep.subr.mxu0 0.0
    %1167 = vmatpush1.msra.mxu0 0.0
    %1168 = vmatprep.subr.mxu0 0.0
    %1169 = vmatpush1.msra.mxu0 0.0
    %1170 = vmatprep.subr.mxu0 0.0
    %1171 = vmatpush1.msra.mxu0 0.0
    %1172 = vmatprep.subr.mxu0 0.0
    %1173 = vmatpush1.msra.mxu0 0.0
    %1174 = vmatprep.subr.mxu0 0.0
    %1175 = vmatpush1.msra.mxu0 0.0
    %1176 = vmatprep.subr.mxu0 0.0
    %1177 = vmatpush1.msra.mxu0 0.0
    %1178 = vmatprep.subr.mxu0 0.0
    %1179 = vmatpush1.msra.mxu0 0.0
    %1180 = vmatprep.subr.mxu0 0.0
    %1181 = vmatpush1.msra.mxu0 0.0
    %1182 = vmatprep.subr.mxu0 0.0
    %1183 = vmatpush1.msra.mxu0 0.0
    %1184 = vmatprep.subr.mxu0 0.0
    %1185 = vmatpush1.msra.mxu0 0.0
    %1186 = vmatprep.subr.mxu0 0.0
    %1187 = vmatpush1.msra.mxu0 0.0
    %1188 = vmatprep.subr.mxu0 0.0
    %1189 = vmatpush1.msra.mxu0 0.0
    %1190 = vmatprep.subr.mxu0 0.0
    %1191 = vmatpush1.msra.mxu0 0.0
    %1192 = vmatprep.subr.mxu0 0.0
    %1193 = vmatpush1.msra.mxu0 0.0
    %1194 = vmatprep.mubr.f32.mxu0 0.0
    %1195 = vmatmul.mubr.f32.gmra.mrb[0].mxu0 %v1129
    %v1196 = vpop.f32.mrb[0].mxu0
    %v1197 = vadd.f32 0.0, %v1196
    %v1198 = vpop.f32.mrb[0].mxu0
    %v1199 = vadd.f32 0.0, %v1198
    %1200 = vdwg.mxu0
    %1201 = vmatprep.subr.mxu0 0.0
    %1202 = vmatpush1.msra.mxu0 %v193
    %1203 = vmatprep.subr.mxu0 0.0
    %1204 = vmatpush1.msra.mxu0 %v196
    %1205 = vmatprep.subr.mxu0 0.0
    %1206 = vmatpush1.msra.mxu0 %v199
    %1207 = vmatprep.subr.mxu0 0.0
    %1208 = vmatpush1.msra.mxu0 %v202
    %1209 = vmatprep.subr.mxu0 0.0
    %1210 = vmatpush1.msra.mxu0 %v205
    %1211 = vmatprep.subr.mxu0 0.0
    %1212 = vmatpush1.msra.mxu0 %v208
    %1213 = vmatprep.subr.mxu0 0.0
    %1214 = vmatpush1.msra.mxu0 %v211
    %1215 = vmatprep.subr.mxu0 0.0
    %1216 = vmatpush1.msra.mxu0 %v214
    %1217 = vmatprep.subr.mxu0 0.0
    %1218 = vmatpush1.msra.mxu0 %v217
    %1219 = vmatprep.subr.mxu0 0.0
    %1220 = vmatpush1.msra.mxu0 %v220
    %1221 = vmatprep.subr.mxu0 0.0
    %1222 = vmatpush1.msra.mxu0 %v223
    %1223 = vmatprep.subr.mxu0 0.0
    %1224 = vmatpush1.msra.mxu0 %v226
    %1225 = vmatprep.subr.mxu0 0.0
    %1226 = vmatpush1.msra.mxu0 %v229
    %1227 = vmatprep.subr.mxu0 0.0
    %1228 = vmatpush1.msra.mxu0 %v232
    %1229 = vmatprep.subr.mxu0 0.0
    %1230 = vmatpush1.msra.mxu0 %v235
    %1231 = vmatprep.subr.mxu0 0.0
    %1232 = vmatpush1.msra.mxu0 %v238
    %1233 = vmatprep.subr.mxu0 0.0
    %1234 = vmatpush1.msra.mxu0 0.0
    %1235 = vmatprep.subr.mxu0 0.0
    %1236 = vmatpush1.msra.mxu0 0.0
    %1237 = vmatprep.subr.mxu0 0.0
    %1238 = vmatpush1.msra.mxu0 0.0
    %1239 = vmatprep.subr.mxu0 0.0
    %1240 = vmatpush1.msra.mxu0 0.0
    %1241 = vmatprep.subr.mxu0 0.0
    %1242 = vmatpush1.msra.mxu0 0.0
    %1243 = vmatprep.subr.mxu0 0.0
    %1244 = vmatpush1.msra.mxu0 0.0
    %1245 = vmatprep.subr.mxu0 0.0
    %1246 = vmatpush1.msra.mxu0 0.0
    %1247 = vmatprep.subr.mxu0 0.0
    %1248 = vmatpush1.msra.mxu0 0.0
    %1249 = vmatprep.subr.mxu0 0.0
    %1250 = vmatpush1.msra.mxu0 0.0
    %1251 = vmatprep.subr.mxu0 0.0
    %1252 = vmatpush1.msra.mxu0 0.0
    %1253 = vmatprep.subr.mxu0 0.0
    %1254 = vmatpush1.msra.mxu0 0.0
    %1255 = vmatprep.subr.mxu0 0.0
    %1256 = vmatpush1.msra.mxu0 0.0
    %1257 = vmatprep.subr.mxu0 0.0
    %1258 = vmatpush1.msra.mxu0 0.0
    %1259 = vmatprep.subr.mxu0 0.0
    %1260 = vmatpush1.msra.mxu0 0.0
    %1261 = vmatprep.subr.mxu0 0.0
    %1262 = vmatpush1.msra.mxu0 0.0
    %1263 = vmatprep.subr.mxu0 0.0
    %1264 = vmatpush1.msra.mxu0 0.0
    %1265 = vmatprep.mubr.f32.mxu0 0.0
    %1266 = vmatmul.mubr.f32.gmra.mrb[0].mxu0 %v1129
    %v1267 = vpop.f32.mrb[0].mxu0
    %v1268 = vadd.f32 0.0, %v1267
    %v1269 = vpop.f32.mrb[0].mxu0
    %1270 = vdwg.mxu0
    %v1271 = vadd.f32 %v351, %v1197
    %v1272 = vxor.u32 %v1271, 2147483648
    %v1273 = vmul.f32 %v1272, 1.442695
    %v1274 = vpow.pop %v1273
    %v1275 = vadd.f32 %v1274, 1.0
    %v1276 = vrcp.pop %v1275
    %v1277 = vmul.f32 1.0, %v1276
    %v1278 = vadd.f32 %v353, %v1199
    %v1279 = vxor.u32 %v1278, 2147483648
    %v1280 = vmul.f32 %v1279, 1.442695
    %v1281 = vpow.pop %v1280
    %v1282 = vadd.f32 %v1281, 1.0
    %v1283 = vrcp.pop %v1282
    %v1284 = vmul.f32 1.0, %v1283
    %v1285 = vadd.f32 %v1268, %v240
    %v1286 = vmul.f32 %v1277, %v1285
    %v1287 = vadd.f32 %v460, %v1286
    %v1288 = vtanh.pop %v1287
    %v1289 = vsub.f32 1.0, %v1284
    %v1290 = vmul.f32 %v1289, %v1288
    %v1291 = vmul.f32 %v1284, %v1129
    %v1292 = vadd.f32 %v1290, %v1291
    %1293 = vmatprep.subr.mxu0 %v192
    %1294 = vmatpush1.msra.mxu0 %v191
    %1295 = vmatprep.subr.mxu0 %v195
    %1296 = vmatpush1.msra.mxu0 %v194
    %1297 = vmatprep.subr.mxu0 %v198
    %1298 = vmatpush1.msra.mxu0 %v197
    %1299 = vmatprep.subr.mxu0 %v201
    %1300 = vmatpush1.msra.mxu0 %v200
    %1301 = vmatprep.subr.mxu0 %v204
    %1302 = vmatpush1.msra.mxu0 %v203
    %1303 = vmatprep.subr.mxu0 %v207
    %1304 = vmatpush1.msra.mxu0 %v206
    %1305 = vmatprep.subr.mxu0 %v210
    %1306 = vmatpush1.msra.mxu0 %v209
    %1307 = vmatprep.subr.mxu0 %v213
    %1308 = vmatpush1.msra.mxu0 %v212
    %1309 = vmatprep.subr.mxu0 %v216
    %1310 = vmatpush1.msra.mxu0 %v215
    %1311 = vmatprep.subr.mxu0 %v219
    %1312 = vmatpush1.msra.mxu0 %v218
    %1313 = vmatprep.subr.mxu0 %v222
    %1314 = vmatpush1.msra.mxu0 %v221
    %1315 = vmatprep.subr.mxu0 %v225
    %1316 = vmatpush1.msra.mxu0 %v224
    %1317 = vmatprep.subr.mxu0 %v228
    %1318 = vmatpush1.msra.mxu0 %v227
    %1319 = vmatprep.subr.mxu0 %v231
    %1320 = vmatpush1.msra.mxu0 %v230
    %1321 = vmatprep.subr.mxu0 %v234
    %1322 = vmatpush1.msra.mxu0 %v233
    %1323 = vmatprep.subr.mxu0 %v237
    %1324 = vmatpush1.msra.mxu0 %v236
    %1325 = vmatprep.subr.mxu0 0.0
    %1326 = vmatpush1.msra.mxu0 0.0
    %1327 = vmatprep.subr.mxu0 0.0
    %1328 = vmatpush1.msra.mxu0 0.0
    %1329 = vmatprep.subr.mxu0 0.0
    %1330 = vmatpush1.msra.mxu0 0.0
    %1331 = vmatprep.subr.mxu0 0.0
    %1332 = vmatpush1.msra.mxu0 0.0
    %1333 = vmatprep.subr.mxu0 0.0
    %1334 = vmatpush1.msra.mxu0 0.0
    %1335 = vmatprep.subr.mxu0 0.0
    %1336 = vmatpush1.msra.mxu0 0.0
    %1337 = vmatprep.subr.mxu0 0.0
    %1338 = vmatpush1.msra.mxu0 0.0
    %1339 = vmatprep.subr.mxu0 0.0
    %1340 = vmatpush1.msra.mxu0 0.0
    %1341 = vmatprep.subr.mxu0 0.0
    %1342 = vmatpush1.msra.mxu0 0.0
    %1343 = vmatprep.subr.mxu0 0.0
    %1344 = vmatpush1.msra.mxu0 0.0
    %1345 = vmatprep.subr.mxu0 0.0
    %1346 = vmatpush1.msra.mxu0 0.0
    %1347 = vmatprep.subr.mxu0 0.0
    %1348 = vmatpush1.msra.mxu0 0.0
    %1349 = vmatprep.subr.mxu0 0.0
    %1350 = vmatpush1.msra.mxu0 0.0
    %1351 = vmatprep.subr.mxu0 0.0
    %1352 = vmatpush1.msra.mxu0 0.0
    %1353 = vmatprep.subr.mxu0 0.0
    %1354 = vmatpush1.msra.mxu0 0.0
    %1355 = vmatprep.subr.mxu0 0.0
    %1356 = vmatpush1.msra.mxu0 0.0
    %1357 = vmatprep.mubr.f32.mxu0 0.0
    %1358 = vmatmul.mubr.f32.gmra.mrb[0].mxu0 %v1292
    %v1359 = vpop.f32.mrb[0].mxu0
    %v1360 = vadd.f32 0.0, %v1359
    %v1361 = vpop.f32.mrb[0].mxu0
    %v1362 = vadd.f32 0.0, %v1361
    %1363 = vdwg.mxu0
    %1364 = vmatprep.subr.mxu0 0.0
    %1365 = vmatpush1.msra.mxu0 %v193
    %1366 = vmatprep.subr.mxu0 0.0
    %1367 = vmatpush1.msra.mxu0 %v196
    %1368 = vmatprep.subr.mxu0 0.0
    %1369 = vmatpush1.msra.mxu0 %v199
    %1370 = vmatprep.subr.mxu0 0.0
    %1371 = vmatpush1.msra.mxu0 %v202
    %1372 = vmatprep.subr.mxu0 0.0
    %1373 = vmatpush1.msra.mxu0 %v205
    %1374 = vmatprep.subr.mxu0 0.0
    %1375 = vmatpush1.msra.mxu0 %v208
    %1376 = vmatprep.subr.mxu0 0.0
    %1377 = vmatpush1.msra.mxu0 %v211
    %1378 = vmatprep.subr.mxu0 0.0
    %1379 = vmatpush1.msra.mxu0 %v214
    %1380 = vmatprep.subr.mxu0 0.0
    %1381 = vmatpush1.msra.mxu0 %v217
    %1382 = vmatprep.subr.mxu0 0.0
    %1383 = vmatpush1.msra.mxu0 %v220
    %1384 = vmatprep.subr.mxu0 0.0
    %1385 = vmatpush1.msra.mxu0 %v223
    %1386 = vmatprep.subr.mxu0 0.0
    %1387 = vmatpush1.msra.mxu0 %v226
    %1388 = vmatprep.subr.mxu0 0.0
    %1389 = vmatpush1.msra.mxu0 %v229
    %1390 = vmatprep.subr.mxu0 0.0
    %1391 = vmatpush1.msra.mxu0 %v232
    %1392 = vmatprep.subr.mxu0 0.0
    %1393 = vmatpush1.msra.mxu0 %v235
    %1394 = vmatprep.subr.mxu0 0.0
    %1395 = vmatpush1.msra.mxu0 %v238
    %1396 = vmatprep.subr.mxu0 0.0
    %1397 = vmatpush1.msra.mxu0 0.0
    %1398 = vmatprep.subr.mxu0 0.0
    %1399 = vmatpush1.msra.mxu0 0.0
    %1400 = vmatprep.subr.mxu0 0.0
    %1401 = vmatpush1.msra.mxu0 0.0
    %1402 = vmatprep.subr.mxu0 0.0
    %1403 = vmatpush1.msra.mxu0 0.0
    %1404 = vmatprep.subr.mxu0 0.0
    %1405 = vmatpush1.msra.mxu0 0.0
    %1406 = vmatprep.subr.mxu0 0.0
    %1407 = vmatpush1.msra.mxu0 0.0
    %1408 = vmatprep.subr.mxu0 0.0
    %1409 = vmatpush1.msra.mxu0 0.0
    %1410 = vmatprep.subr.mxu0 0.0
    %1411 = vmatpush1.msra.mxu0 0.0
    %1412 = vmatprep.subr.mxu0 0.0
    %1413 = vmatpush1.msra.mxu0 0.0
    %1414 = vmatprep.subr.mxu0 0.0
    %1415 = vmatpush1.msra.mxu0 0.0
    %1416 = vmatprep.subr.mxu0 0.0
    %1417 = vmatpush1.msra.mxu0 0.0
    %1418 = vmatprep.subr.mxu0 0.0
    %1419 = vmatpush1.msra.mxu0 0.0
    %1420 = vmatprep.subr.mxu0 0.0
    %1421 = vmatpush1.msra.mxu0 0.0
    %1422 = vmatprep.subr.mxu0 0.0
    %1423 = vmatpush1.msra.mxu0 0.0
    %1424 = vmatprep.subr.mxu0 0.0
    %1425 = vmatpush1.msra.mxu0 0.0
    %1426 = vmatprep.subr.mxu0 0.0
    %1427 = vmatpush1.msra.mxu0 0.0
    %1428 = vmatprep.mubr.f32.mxu0 0.0
    %1429 = vmatmul.mubr.f32.gmra.mrb[0].mxu0 %v1292
    %v1430 = vpop.f32.mrb[0].mxu0
    %v1431 = vadd.f32 0.0, %v1430
    %v1432 = vpop.f32.mrb[0].mxu0
    %1433 = vdwg.mxu0
    %v1434 = vadd.f32 %v357, %v1360
    %v1435 = vxor.u32 %v1434, 2147483648
    %v1436 = vmul.f32 %v1435, 1.442695
    %v1437 = vpow.pop %v1436
    %v1438 = vadd.f32 %v1437, 1.0
    %v1439 = vrcp.pop %v1438
    %v1440 = vmul.f32 1.0, %v1439
    %v1441 = vadd.f32 %v359, %v1362
    %v1442 = vxor.u32 %v1441, 2147483648
    %v1443 = vmul.f32 %v1442, 1.442695
    %v1444 = vpow.pop %v1443
    %v1445 = vadd.f32 %v1444, 1.0
    %v1446 = vrcp.pop %v1445
    %v1447 = vmul.f32 1.0, %v1446
    %v1448 = vadd.f32 %v1431, %v240
    %v1449 = vmul.f32 %v1440, %v1448
    %v1450 = vadd.f32 %v465, %v1449
    %v1451 = vtanh.pop %v1450
    %v1452 = vsub.f32 1.0, %v1447
    %v1453 = vmul.f32 %v1452, %v1451
    %v1454 = vmul.f32 %v1447, %v1292
    %v1455 = vadd.f32 %v1453, %v1454
    %1456 = vmatprep.subr.mxu0 %v192
    %1457 = vmatpush1.msra.mxu0 %v191
    %1458 = vmatprep.subr.mxu0 %v195
    %1459 = vmatpush1.msra.mxu0 %v194
    %1460 = vmatprep.subr.mxu0 %v198
    %1461 = vmatpush1.msra.mxu0 %v197
    %1462 = vmatprep.subr.mxu0 %v201
    %1463 = vmatpush1.msra.mxu0 %v200
    %1464 = vmatprep.subr.mxu0 %v204
    %1465 = vmatpush1.msra.mxu0 %v203
    %1466 = vmatprep.subr.mxu0 %v207
    %1467 = vmatpush1.msra.mxu0 %v206
    %1468 = vmatprep.subr.mxu0 %v210
    %1469 = vmatpush1.msra.mxu0 %v209
    %1470 = vmatprep.subr.mxu0 %v213
    %1471 = vmatpush1.msra.mxu0 %v212
    %1472 = vmatprep.subr.mxu0 %v216
    %1473 = vmatpush1.msra.mxu0 %v215
    %1474 = vmatprep.subr.mxu0 %v219
    %1475 = vmatpush1.msra.mxu0 %v218
    %1476 = vmatprep.subr.mxu0 %v222
    %1477 = vmatpush1.msra.mxu0 %v221
    %1478 = vmatprep.subr.mxu0 %v225
    %1479 = vmatpush1.msra.mxu0 %v224
    %1480 = vmatprep.subr.mxu0 %v228
    %1481 = vmatpush1.msra.mxu0 %v227
    %1482 = vmatprep.subr.mxu0 %v231
    %1483 = vmatpush1.msra.mxu0 %v230
    %1484 = vmatprep.subr.mxu0 %v234
    %1485 = vmatpush1.msra.mxu0 %v233
    %1486 = vmatprep.subr.mxu0 %v237
    %1487 = vmatpush1.msra.mxu0 %v236
    %1488 = vmatprep.subr.mxu0 0.0
    %1489 = vmatpush1.msra.mxu0 0.0
    %1490 = vmatprep.subr.mxu0 0.0
    %1491 = vmatpush1.msra.mxu0 0.0
    %1492 = vmatprep.subr.mxu0 0.0
    %1493 = vmatpush1.msra.mxu0 0.0
    %1494 = vmatprep.subr.mxu0 0.0
    %1495 = vmatpush1.msra.mxu0 0.0
    %1496 = vmatprep.subr.mxu0 0.0
    %1497 = vmatpush1.msra.mxu0 0.0
    %1498 = vmatprep.subr.mxu0 0.0
    %1499 = vmatpush1.msra.mxu0 0.0
    %1500 = vmatprep.subr.mxu0 0.0
    %1501 = vmatpush1.msra.mxu0 0.0
    %1502 = vmatprep.subr.mxu0 0.0
    %1503 = vmatpush1.msra.mxu0 0.0
    %1504 = vmatprep.subr.mxu0 0.0
    %1505 = vmatpush1.msra.mxu0 0.0
    %1506 = vmatprep.subr.mxu0 0.0
    %1507 = vmatpush1.msra.mxu0 0.0
    %1508 = vmatprep.subr.mxu0 0.0
    %1509 = vmatpush1.msra.mxu0 0.0
    %1510 = vmatprep.subr.mxu0 0.0
    %1511 = vmatpush1.msra.mxu0 0.0
    %1512 = vmatprep.subr.mxu0 0.0
    %1513 = vmatpush1.msra.mxu0 0.0
    %1514 = vmatprep.subr.mxu0 0.0
    %1515 = vmatpush1.msra.mxu0 0.0
    %1516 = vmatprep.subr.mxu0 0.0
    %1517 = vmatpush1.msra.mxu0 0.0
    %1518 = vmatprep.subr.mxu0 0.0
    %1519 = vmatpush1.msra.mxu0 0.0
    %1520 = vmatprep.mubr.f32.mxu0 0.0
    %1521 = vmatmul.mubr.f32.gmra.mrb[0].mxu0 %v1455
    %v1522 = vpop.f32.mrb[0].mxu0
    %v1523 = vadd.f32 0.0, %v1522
    %v1524 = vpop.f32.mrb[0].mxu0
    %v1525 = vadd.f32 0.0, %v1524
    %1526 = vdwg.mxu0
    %1527 = vmatprep.subr.mxu0 0.0
    %1528 = vmatpush1.msra.mxu0 %v193
    %1529 = vmatprep.subr.mxu0 0.0
    %1530 = vmatpush1.msra.mxu0 %v196
    %1531 = vmatprep.subr.mxu0 0.0
    %1532 = vmatpush1.msra.mxu0 %v199
    %1533 = vmatprep.subr.mxu0 0.0
    %1534 = vmatpush1.msra.mxu0 %v202
    %1535 = vmatprep.subr.mxu0 0.0
    %1536 = vmatpush1.msra.mxu0 %v205
    %1537 = vmatprep.subr.mxu0 0.0
    %1538 = vmatpush1.msra.mxu0 %v208
    %1539 = vmatprep.subr.mxu0 0.0
    %1540 = vmatpush1.msra.mxu0 %v211
    %1541 = vmatprep.subr.mxu0 0.0
    %1542 = vmatpush1.msra.mxu0 %v214
    %1543 = vmatprep.subr.mxu0 0.0
    %1544 = vmatpush1.msra.mxu0 %v217
    %1545 = vmatprep.subr.mxu0 0.0
    %1546 = vmatpush1.msra.mxu0 %v220
    %1547 = vmatprep.subr.mxu0 0.0
    %1548 = vmatpush1.msra.mxu0 %v223
    %1549 = vmatprep.subr.mxu0 0.0
    %1550 = vmatpush1.msra.mxu0 %v226
    %1551 = vmatprep.subr.mxu0 0.0
    %1552 = vmatpush1.msra.mxu0 %v229
    %1553 = vmatprep.subr.mxu0 0.0
    %1554 = vmatpush1.msra.mxu0 %v232
    %1555 = vmatprep.subr.mxu0 0.0
    %1556 = vmatpush1.msra.mxu0 %v235
    %1557 = vmatprep.subr.mxu0 0.0
    %1558 = vmatpush1.msra.mxu0 %v238
    %1559 = vmatprep.subr.mxu0 0.0
    %1560 = vmatpush1.msra.mxu0 0.0
    %1561 = vmatprep.subr.mxu0 0.0
    %1562 = vmatpush1.msra.mxu0 0.0
    %1563 = vmatprep.subr.mxu0 0.0
    %1564 = vmatpush1.msra.mxu0 0.0
    %1565 = vmatprep.subr.mxu0 0.0
    %1566 = vmatpush1.msra.mxu0 0.0
    %1567 = vmatprep.subr.mxu0 0.0
    %1568 = vmatpush1.msra.mxu0 0.0
    %1569 = vmatprep.subr.mxu0 0.0
    %1570 = vmatpush1.msra.mxu0 0.0
    %1571 = vmatprep.subr.mxu0 0.0
    %1572 = vmatpush1.msra.mxu0 0.0
    %1573 = vmatprep.subr.mxu0 0.0
    %1574 = vmatpush1.msra.mxu0 0.0
    %1575 = vmatprep.subr.mxu0 0.0
    %1576 = vmatpush1.msra.mxu0 0.0
    %1577 = vmatprep.subr.mxu0 0.0
    %1578 = vmatpush1.msra.mxu0 0.0
    %1579 = vmatprep.subr.mxu0 0.0
    %1580 = vmatpush1.msra.mxu0 0.0
    %1581 = vmatprep.subr.mxu0 0.0
    %1582 = vmatpush1.msra.mxu0 0.0
    %1583 = vmatprep.subr.mxu0 0.0
    %1584 = vmatpush1.msra.mxu0 0.0
    %1585 = vmatprep.subr.mxu0 0.0
    %1586 = vmatpush1.msra.mxu0 0.0
    %1587 = vmatprep.subr.mxu0 0.0
    %1588 = vmatpush1.msra.mxu0 0.0
    %1589 = vmatprep.subr.mxu0 0.0
    %1590 = vmatpush1.msra.mxu0 0.0
    %1591 = vmatprep.mubr.f32.mxu0 0.0
    %1592 = vmatmul.mubr.f32.gmra.mrb[0].mxu0 %v1455
    %v1593 = vpop.f32.mrb[0].mxu0
    %v1594 = vadd.f32 0.0, %v1593
    %v1595 = vpop.f32.mrb[0].mxu0
    %1596 = vdwg.mxu0
    %v1597 = vadd.f32 %v363, %v1523
    %v1598 = vxor.u32 %v1597, 2147483648
    %v1599 = vmul.f32 %v1598, 1.442695
    %v1600 = vpow.pop %v1599
    %v1601 = vadd.f32 %v1600, 1.0
    %v1602 = vrcp.pop %v1601
    %v1603 = vmul.f32 1.0, %v1602
    %v1604 = vadd.f32 %v365, %v1525
    %v1605 = vxor.u32 %v1604, 2147483648
    %v1606 = vmul.f32 %v1605, 1.442695
    %v1607 = vpow.pop %v1606
    %v1608 = vadd.f32 %v1607, 1.0
    %v1609 = vrcp.pop %v1608
    %v1610 = vmul.f32 1.0, %v1609
    %v1611 = vadd.f32 %v1594, %v240
    %v1612 = vmul.f32 %v1603, %v1611
    %v1613 = vadd.f32 %v470, %v1612
    %v1614 = vtanh.pop %v1613
    %v1615 = vsub.f32 1.0, %v1610
    %v1616 = vmul.f32 %v1615, %v1614
    %v1617 = vmul.f32 %v1610, %v1455
    %v1618 = vadd.f32 %v1616, %v1617
    %1619 = vmatprep.subr.mxu0 %v192
    %1620 = vmatpush1.msra.mxu0 %v191
    %1621 = vmatprep.subr.mxu0 %v195
    %1622 = vmatpush1.msra.mxu0 %v194
    %1623 = vmatprep.subr.mxu0 %v198
    %1624 = vmatpush1.msra.mxu0 %v197
    %1625 = vmatprep.subr.mxu0 %v201
    %1626 = vmatpush1.msra.mxu0 %v200
    %1627 = vmatprep.subr.mxu0 %v204
    %1628 = vmatpush1.msra.mxu0 %v203
    %1629 = vmatprep.subr.mxu0 %v207
    %1630 = vmatpush1.msra.mxu0 %v206
    %1631 = vmatprep.subr.mxu0 %v210
    %1632 = vmatpush1.msra.mxu0 %v209
    %1633 = vmatprep.subr.mxu0 %v213
    %1634 = vmatpush1.msra.mxu0 %v212
    %1635 = vmatprep.subr.mxu0 %v216
    %1636 = vmatpush1.msra.mxu0 %v215
    %1637 = vmatprep.subr.mxu0 %v219
    %1638 = vmatpush1.msra.mxu0 %v218
    %1639 = vmatprep.subr.mxu0 %v222
    %1640 = vmatpush1.msra.mxu0 %v221
    %1641 = vmatprep.subr.mxu0 %v225
    %1642 = vmatpush1.msra.mxu0 %v224
    %1643 = vmatprep.subr.mxu0 %v228
    %1644 = vmatpush1.msra.mxu0 %v227
    %1645 = vmatprep.subr.mxu0 %v231
    %1646 = vmatpush1.msra.mxu0 %v230
    %1647 = vmatprep.subr.mxu0 %v234
    %1648 = vmatpush1.msra.mxu0 %v233
    %1649 = vmatprep.subr.mxu0 %v237
    %1650 = vmatpush1.msra.mxu0 %v236
    %1651 = vmatprep.subr.mxu0 0.0
    %1652 = vmatpush1.msra.mxu0 0.0
    %1653 = vmatprep.subr.mxu0 0.0
    %1654 = vmatpush1.msra.mxu0 0.0
    %1655 = vmatprep.subr.mxu0 0.0
    %1656 = vmatpush1.msra.mxu0 0.0
    %1657 = vmatprep.subr.mxu0 0.0
    %1658 = vmatpush1.msra.mxu0 0.0
    %1659 = vmatprep.subr.mxu0 0.0
    %1660 = vmatpush1.msra.mxu0 0.0
    %1661 = vmatprep.subr.mxu0 0.0
    %1662 = vmatpush1.msra.mxu0 0.0
    %1663 = vmatprep.subr.mxu0 0.0
    %1664 = vmatpush1.msra.mxu0 0.0
    %1665 = vmatprep.subr.mxu0 0.0
    %1666 = vmatpush1.msra.mxu0 0.0
    %1667 = vmatprep.subr.mxu0 0.0
    %1668 = vmatpush1.msra.mxu0 0.0
    %1669 = vmatprep.subr.mxu0 0.0
    %1670 = vmatpush1.msra.mxu0 0.0
    %1671 = vmatprep.subr.mxu0 0.0
    %1672 = vmatpush1.msra.mxu0 0.0
    %1673 = vmatprep.subr.mxu0 0.0
    %1674 = vmatpush1.msra.mxu0 0.0
    %1675 = vmatprep.subr.mxu0 0.0
    %1676 = vmatpush1.msra.mxu0 0.0
    %1677 = vmatprep.subr.mxu0 0.0
    %1678 = vmatpush1.msra.mxu0 0.0
    %1679 = vmatprep.subr.mxu0 0.0
    %1680 = vmatpush1.msra.mxu0 0.0
    %1681 = vmatprep.subr.mxu0 0.0
    %1682 = vmatpush1.msra.mxu0 0.0
    %1683 = vmatprep.mubr.f32.mxu0 0.0
    %1684 = vmatmul.mubr.f32.gmra.mrb[0].mxu0 %v1618
    %v1685 = vpop.f32.mrb[0].mxu0
    %v1686 = vadd.f32 0.0, %v1685
    %v1687 = vpop.f32.mrb[0].mxu0
    %v1688 = vadd.f32 0.0, %v1687
    %1689 = vdwg.mxu0
    %1690 = vmatprep.subr.mxu0 0.0
    %1691 = vmatpush1.msra.mxu0 %v193
    %1692 = vmatprep.subr.mxu0 0.0
    %1693 = vmatpush1.msra.mxu0 %v196
    %1694 = vmatprep.subr.mxu0 0.0
    %1695 = vmatpush1.msra.mxu0 %v199
    %1696 = vmatprep.subr.mxu0 0.0
    %1697 = vmatpush1.msra.mxu0 %v202
    %1698 = vmatprep.subr.mxu0 0.0
    %1699 = vmatpush1.msra.mxu0 %v205
    %1700 = vmatprep.subr.mxu0 0.0
    %1701 = vmatpush1.msra.mxu0 %v208
    %1702 = vmatprep.subr.mxu0 0.0
    %1703 = vmatpush1.msra.mxu0 %v211
    %1704 = vmatprep.subr.mxu0 0.0
    %1705 = vmatpush1.msra.mxu0 %v214
    %1706 = vmatprep.subr.mxu0 0.0
    %1707 = vmatpush1.msra.mxu0 %v217
    %1708 = vmatprep.subr.mxu0 0.0
    %1709 = vmatpush1.msra.mxu0 %v220
    %1710 = vmatprep.subr.mxu0 0.0
    %1711 = vmatpush1.msra.mxu0 %v223
    %1712 = vmatprep.subr.mxu0 0.0
    %1713 = vmatpush1.msra.mxu0 %v226
    %1714 = vmatprep.subr.mxu0 0.0
    %1715 = vmatpush1.msra.mxu0 %v229
    %1716 = vmatprep.subr.mxu0 0.0
    %1717 = vmatpush1.msra.mxu0 %v232
    %1718 = vmatprep.subr.mxu0 0.0
    %1719 = vmatpush1.msra.mxu0 %v235
    %1720 = vmatprep.subr.mxu0 0.0
    %1721 = vmatpush1.msra.mxu0 %v238
    %1722 = vmatprep.subr.mxu0 0.0
    %1723 = vmatpush1.msra.mxu0 0.0
    %1724 = vmatprep.subr.mxu0 0.0
    %1725 = vmatpush1.msra.mxu0 0.0
    %1726 = vmatprep.subr.mxu0 0.0
    %1727 = vmatpush1.msra.mxu0 0.0
    %1728 = vmatprep.subr.mxu0 0.0
    %1729 = vmatpush1.msra.mxu0 0.0
    %1730 = vmatprep.subr.mxu0 0.0
    %1731 = vmatpush1.msra.mxu0 0.0
    %1732 = vmatprep.subr.mxu0 0.0
    %1733 = vmatpush1.msra.mxu0 0.0
    %1734 = vmatprep.subr.mxu0 0.0
    %1735 = vmatpush1.msra.mxu0 0.0
    %1736 = vmatprep.subr.mxu0 0.0
    %1737 = vmatpush1.msra.mxu0 0.0
    %1738 = vmatprep.subr.mxu0 0.0
    %1739 = vmatpush1.msra.mxu0 0.0
    %1740 = vmatprep.subr.mxu0 0.0
    %1741 = vmatpush1.msra.mxu0 0.0
    %1742 = vmatprep.subr.mxu0 0.0
    %1743 = vmatpush1.msra.mxu0 0.0
    %1744 = vmatprep.subr.mxu0 0.0
    %1745 = vmatpush1.msra.mxu0 0.0
    %1746 = vmatprep.subr.mxu0 0.0
    %1747 = vmatpush1.msra.mxu0 0.0
    %1748 = vmatprep.subr.mxu0 0.0
    %1749 = vmatpush1.msra.mxu0 0.0
    %1750 = vmatprep.subr.mxu0 0.0
    %1751 = vmatpush1.msra.mxu0 0.0
    %1752 = vmatprep.subr.mxu0 0.0
    %1753 = vmatpush1.msra.mxu0 0.0
    %1754 = vmatprep.mubr.f32.mxu0 0.0
    %1755 = vmatmul.mubr.f32.gmra.mrb[0].mxu0 %v1618
    %v1756 = vpop.f32.mrb[0].mxu0
    %v1757 = vadd.f32 0.0, %v1756
    %v1758 = vpop.f32.mrb[0].mxu0
    %1759 = vdwg.mxu0
    %v1760 = vadd.f32 %v369, %v1686
    %v1761 = vxor.u32 %v1760, 2147483648
    %v1762 = vmul.f32 %v1761, 1.442695
    %v1763 = vpow.pop %v1762
    %v1764 = vadd.f32 %v1763, 1.0
    %v1765 = vrcp.pop %v1764
    %v1766 = vmul.f32 1.0, %v1765
    %v1767 = vadd.f32 %v371, %v1688
    %v1768 = vxor.u32 %v1767, 2147483648
    %v1769 = vmul.f32 %v1768, 1.442695
    %v1770 = vpow.pop %v1769
    %v1771 = vadd.f32 %v1770, 1.0
    %v1772 = vrcp.pop %v1771
    %v1773 = vmul.f32 1.0, %v1772
    %v1774 = vadd.f32 %v1757, %v240
    %v1775 = vmul.f32 %v1766, %v1774
    %v1776 = vadd.f32 %v475, %v1775
    %v1777 = vtanh.pop %v1776
    %v1778 = vsub.f32 1.0, %v1773
    %v1779 = vmul.f32 %v1778, %v1777
    %v1780 = vmul.f32 %v1773, %v1618
    %v1781 = vadd.f32 %v1779, %v1780
    %v1782 = vld [vmem:[#allocation2] sm:$0xff]
    %v1783 = vld [vmem:[#allocation2 + $0x8] sm:$0xff]
    %v1784 = vld [vmem:[#allocation2 + $0x10] sm:$0xff]
    %v1785 = vld [vmem:[#allocation2 + $0x18] sm:$0xff]
    %v1786 = vld [vmem:[#allocation2 + $0x20] sm:$0xff]
    %v1787 = vld [vmem:[#allocation2 + $0x28] sm:$0xff]
    %v1788 = vld [vmem:[#allocation2 + $0x30] sm:$0xff]
    %v1789 = vld [vmem:[#allocation2 + $0x38] sm:$0xff]
    %v1790 = vld [vmem:[#allocation2 + $0x40] sm:$0xff]
    %v1791 = vld [vmem:[#allocation2 + $0x48] sm:$0xff]
    %v1792 = vld [vmem:[#allocation2 + $0x50] sm:$0xff]
    %v1793 = vld [vmem:[#allocation2 + $0x58] sm:$0xff]
    %v1794 = vld [vmem:[#allocation2 + $0x60] sm:$0xff]
    %v1795 = vld [vmem:[#allocation2 + $0x68] sm:$0xff]
    %v1796 = vld [vmem:[#allocation2 + $0x70] sm:$0xff]
    %v1797 = vld [vmem:[#allocation2 + $0x78] sm:$0xff]
    %v1798 = vld [vmem:[#allocation2 + $0x80] sm:$0xff]
    %v1799 = vld [vmem:[#allocation2 + $0x88] sm:$0xff]
    %v1800 = vld [vmem:[#allocation2 + $0x90] sm:$0xff]
    %v1801 = vld [vmem:[#allocation2 + $0x98] sm:$0xff]
    %v1802 = vld [vmem:[#allocation2 + $0xa0] sm:$0xff]
    %v1803 = vld [vmem:[#allocation2 + $0xa8] sm:$0xff]
    %v1804 = vld [vmem:[#allocation2 + $0xb0] sm:$0xff]
    %v1805 = vld [vmem:[#allocation2 + $0xb8] sm:$0xff]
    %v1806 = vld [vmem:[#allocation2 + $0xc0] sm:$0xff]
    %v1807 = vld [vmem:[#allocation2 + $0xc8] sm:$0xff]
    %v1808 = vld [vmem:[#allocation2 + $0xd0] sm:$0xff]
    %v1809 = vld [vmem:[#allocation2 + $0xd8] sm:$0xff]
    %v1810 = vld [vmem:[#allocation2 + $0xe0] sm:$0xff]
    %v1811 = vld [vmem:[#allocation2 + $0xe8] sm:$0xff]
    %v1812 = vld [vmem:[#allocation2 + $0xf0] sm:$0xff]
    %v1813 = vld [vmem:[#allocation2 + $0xf8] sm:$0xff]
    %v1814 = vld [vmem:[#allocation2 + $0x100] sm:$0xff]
    %v1815 = vld [vmem:[#allocation2 + $0x108] sm:$0xff]
    %v1816 = vld [vmem:[#allocation2 + $0x110] sm:$0xff]
    %v1817 = vld [vmem:[#allocation2 + $0x118] sm:$0xff]
    %v1818 = vld [vmem:[#allocation2 + $0x120] sm:$0xff]
    %v1819 = vld [vmem:[#allocation2 + $0x128] sm:$0xff]
    %v1820 = vld [vmem:[#allocation2 + $0x130] sm:$0xff]
    %v1821 = vld [vmem:[#allocation2 + $0x138] sm:$0xff]
    %v1822 = vld [vmem:[#allocation2 + $0x140] sm:$0xff]
    %v1823 = vld [vmem:[#allocation2 + $0x148] sm:$0xff]
    %v1824 = vld [vmem:[#allocation2 + $0x150] sm:$0xff]
    %v1825 = vld [vmem:[#allocation2 + $0x158] sm:$0xff]
    %v1826 = vld [vmem:[#allocation2 + $0x160] sm:$0xff]
    %v1827 = vld [vmem:[#allocation2 + $0x168] sm:$0xff]
    %v1828 = vld [vmem:[#allocation2 + $0x170] sm:$0xff]
    %v1829 = vld [vmem:[#allocation2 + $0x178] sm:$0xff]
    %v1830 = vld [vmem:[#allocation2 + $0x180] sm:$0xff]
    %v1831 = vld [vmem:[#allocation2 + $0x188] sm:$0xff]
    %v1832 = vld [vmem:[#allocation2 + $0x190] sm:$0xff]
    %v1833 = vld [vmem:[#allocation2 + $0x198] sm:$0xff]
    %v1834 = vld [vmem:[#allocation2 + $0x1a0] sm:$0xff]
    %v1835 = vld [vmem:[#allocation2 + $0x1a8] sm:$0xff]
    %v1836 = vld [vmem:[#allocation2 + $0x1b0] sm:$0xff]
    %v1837 = vld [vmem:[#allocation2 + $0x1b8] sm:$0xff]
    %v1838 = vld [vmem:[#allocation2 + $0x1c0] sm:$0xff]
    %v1839 = vld [vmem:[#allocation2 + $0x1c8] sm:$0xff]
    %v1840 = vld [vmem:[#allocation2 + $0x1d0] sm:$0xff]
    %v1841 = vld [vmem:[#allocation2 + $0x1d8] sm:$0xff]
    %v1842 = vld [vmem:[#allocation2 + $0x1e0] sm:$0xff]
    %v1843 = vld [vmem:[#allocation2 + $0x1e8] sm:$0xff]
    %v1844 = vld [vmem:[#allocation2 + $0x1f0] sm:$0xff]
    %v1845 = vld [vmem:[#allocation2 + $0x1f8] sm:$0xff]
    %v1846 = vld [vmem:[#allocation2 + $0x200] sm:$0xff]
    %v1847 = vld [vmem:[#allocation2 + $0x208] sm:$0xff]
    %v1848 = vld [vmem:[#allocation2 + $0x210] sm:$0xff]
    %v1849 = vld [vmem:[#allocation2 + $0x218] sm:$0xff]
    %v1850 = vld [vmem:[#allocation2 + $0x220] sm:$0xff]
    %v1851 = vld [vmem:[#allocation2 + $0x228] sm:$0xff]
    %v1852 = vld [vmem:[#allocation2 + $0x230] sm:$0xff]
    %v1853 = vld [vmem:[#allocation2 + $0x238] sm:$0xff]
    %v1854 = vld [vmem:[#allocation2 + $0x240] sm:$0xff]
    %v1855 = vld [vmem:[#allocation2 + $0x248] sm:$0xff]
    %v1856 = vld [vmem:[#allocation2 + $0x250] sm:$0xff]
    %v1857 = vld [vmem:[#allocation2 + $0x258] sm:$0xff]
    %v1858 = vld [vmem:[#allocation2 + $0x260] sm:$0xff]
    %v1859 = vld [vmem:[#allocation2 + $0x268] sm:$0xff]
    %v1860 = vld [vmem:[#allocation2 + $0x270] sm:$0xff]
    %v1861 = vld [vmem:[#allocation2 + $0x278] sm:$0xff]
    %v1862 = vld [vmem:[#allocation2 + $0x280] sm:$0xff]
    %v1863 = vld [vmem:[#allocation2 + $0x288] sm:$0xff]
    %v1864 = vld [vmem:[#allocation2 + $0x290] sm:$0xff]
    %v1865 = vld [vmem:[#allocation2 + $0x298] sm:$0xff]
    %v1866 = vld [vmem:[#allocation2 + $0x2a0] sm:$0xff]
    %v1867 = vld [vmem:[#allocation2 + $0x2a8] sm:$0xff]
    %v1868 = vld [vmem:[#allocation2 + $0x2b0] sm:$0xff]
    %v1869 = vld [vmem:[#allocation2 + $0x2b8] sm:$0xff]
    %v1870 = vld [vmem:[#allocation2 + $0x2c0] sm:$0xff]
    %v1871 = vld [vmem:[#allocation2 + $0x2c8] sm:$0xff]
    %v1872 = vld [vmem:[#allocation2 + $0x2d0] sm:$0xff]
    %v1873 = vld [vmem:[#allocation2 + $0x2d8] sm:$0xff]
    %v1874 = vld [vmem:[#allocation2 + $0x2e0] sm:$0xff]
    %v1875 = vld [vmem:[#allocation2 + $0x2e8] sm:$0xff]
    %v1876 = vld [vmem:[#allocation2 + $0x2f0] sm:$0xff]
    %v1877 = vld [vmem:[#allocation2 + $0x2f8] sm:$0xff]
    %v1878 = vld [vmem:[#allocation2 + $0x300] sm:$0xff]
    %v1879 = vld [vmem:[#allocation2 + $0x308] sm:$0xff]
    %v1880 = vld [vmem:[#allocation2 + $0x310] sm:$0xff]
    %v1881 = vld [vmem:[#allocation2 + $0x318] sm:$0xff]
    %v1882 = vld [vmem:[#allocation2 + $0x320] sm:$0xff]
    %v1883 = vld [vmem:[#allocation2 + $0x328] sm:$0xff]
    %v1884 = vld [vmem:[#allocation2 + $0x330] sm:$0xff]
    %v1885 = vld [vmem:[#allocation2 + $0x338] sm:$0xff]
    %v1886 = vld [vmem:[#allocation2 + $0x340] sm:$0xff]
    %v1887 = vld [vmem:[#allocation2 + $0x348] sm:$0xff]
    %v1888 = vld [vmem:[#allocation2 + $0x350] sm:$0xff]
    %v1889 = vld [vmem:[#allocation2 + $0x358] sm:$0xff]
    %v1890 = vld [vmem:[#allocation2 + $0x360] sm:$0xff]
    %v1891 = vld [vmem:[#allocation2 + $0x368] sm:$0xff]
    %v1892 = vld [vmem:[#allocation2 + $0x370] sm:$0xff]
    %v1893 = vld [vmem:[#allocation2 + $0x378] sm:$0xff]
    %v1894 = vld [vmem:[#allocation2 + $0x380] sm:$0xff]
    %v1895 = vld [vmem:[#allocation2 + $0x388] sm:$0xff]
    %v1896 = vld [vmem:[#allocation2 + $0x390] sm:$0xff]
    %v1897 = vld [vmem:[#allocation2 + $0x398] sm:$0xff]
    %v1898 = vld [vmem:[#allocation2 + $0x3a0] sm:$0xff]
    %v1899 = vld [vmem:[#allocation2 + $0x3a8] sm:$0xff]
    %v1900 = vld [vmem:[#allocation2 + $0x3b0] sm:$0xff]
    %v1901 = vld [vmem:[#allocation2 + $0x3b8] sm:$0xff]
    %v1902 = vld [vmem:[#allocation2 + $0x3c0] sm:$0xff]
    %v1903 = vld [vmem:[#allocation2 + $0x3c8] sm:$0xff]
    %v1904 = vld [vmem:[#allocation2 + $0x3d0] sm:$0xff]
    %v1905 = vld [vmem:[#allocation2 + $0x3d8] sm:$0xff]
    %v1906 = vld [vmem:[#allocation2 + $0x3e0] sm:$0xff]
    %v1907 = vld [vmem:[#allocation2 + $0x3e8] sm:$0xff]
    %v1908 = vld [vmem:[#allocation2 + $0x3f0] sm:$0xff]
    %v1909 = vld [vmem:[#allocation2 + $0x3f8] sm:$0xff]
    %1910 = vmatprep.subr.mxu0 %v1847
    %1911 = vmatpush1.msra.mxu0 %v1846
    %1912 = vmatprep.subr.mxu0 %v1851
    %1913 = vmatpush1.msra.mxu0 %v1850
    %1914 = vmatprep.subr.mxu0 %v1855
    %1915 = vmatpush1.msra.mxu0 %v1854
    %1916 = vmatprep.subr.mxu0 %v1859
    %1917 = vmatpush1.msra.mxu0 %v1858
    %1918 = vmatprep.subr.mxu0 %v1863
    %1919 = vmatpush1.msra.mxu0 %v1862
    %1920 = vmatprep.subr.mxu0 %v1867
    %1921 = vmatpush1.msra.mxu0 %v1866
    %1922 = vmatprep.subr.mxu0 %v1871
    %1923 = vmatpush1.msra.mxu0 %v1870
    %1924 = vmatprep.subr.mxu0 %v1875
    %1925 = vmatpush1.msra.mxu0 %v1874
    %1926 = vmatprep.subr.mxu0 %v1879
    %1927 = vmatpush1.msra.mxu0 %v1878
    %1928 = vmatprep.subr.mxu0 %v1883
    %1929 = vmatpush1.msra.mxu0 %v1882
    %1930 = vmatprep.subr.mxu0 %v1887
    %1931 = vmatpush1.msra.mxu0 %v1886
    %1932 = vmatprep.subr.mxu0 %v1891
    %1933 = vmatpush1.msra.mxu0 %v1890
    %1934 = vmatprep.subr.mxu0 %v1895
    %1935 = vmatpush1.msra.mxu0 %v1894
    %1936 = vmatprep.subr.mxu0 %v1899
    %1937 = vmatpush1.msra.mxu0 %v1898
    %1938 = vmatprep.subr.mxu0 %v1903
    %1939 = vmatpush1.msra.mxu0 %v1902
    %1940 = vmatprep.subr.mxu0 %v1907
    %1941 = vmatpush1.msra.mxu0 %v1906
    %1942 = vmatprep.subr.mxu0 0.0
    %1943 = vmatpush1.msra.mxu0 0.0
    %1944 = vmatprep.subr.mxu0 0.0
    %1945 = vmatpush1.msra.mxu0 0.0
    %1946 = vmatprep.subr.mxu0 0.0
    %1947 = vmatpush1.msra.mxu0 0.0
    %1948 = vmatprep.subr.mxu0 0.0
    %1949 = vmatpush1.msra.mxu0 0.0
    %1950 = vmatprep.subr.mxu0 0.0
    %1951 = vmatpush1.msra.mxu0 0.0
    %1952 = vmatprep.subr.mxu0 0.0
    %1953 = vmatpush1.msra.mxu0 0.0
    %1954 = vmatprep.subr.mxu0 0.0
    %1955 = vmatpush1.msra.mxu0 0.0
    %1956 = vmatprep.subr.mxu0 0.0
    %1957 = vmatpush1.msra.mxu0 0.0
    %1958 = vmatprep.subr.mxu0 0.0
    %1959 = vmatpush1.msra.mxu0 0.0
    %1960 = vmatprep.subr.mxu0 0.0
    %1961 = vmatpush1.msra.mxu0 0.0
    %1962 = vmatprep.subr.mxu0 0.0
    %1963 = vmatpush1.msra.mxu0 0.0
    %1964 = vmatprep.subr.mxu0 0.0
    %1965 = vmatpush1.msra.mxu0 0.0
    %1966 = vmatprep.subr.mxu0 0.0
    %1967 = vmatpush1.msra.mxu0 0.0
    %1968 = vmatprep.subr.mxu0 0.0
    %1969 = vmatpush1.msra.mxu0 0.0
    %1970 = vmatprep.subr.mxu0 0.0
    %1971 = vmatpush1.msra.mxu0 0.0
    %1972 = vmatprep.subr.mxu0 0.0
    %1973 = vmatpush1.msra.mxu0 0.0
    %1974 = vmatprep.mubr.f32.mxu0 0.0
    %1975 = vmatmul.mubr.f32.gmra.mrb[0].mxu0 %v1781
    %v1976 = vpop.f32.mrb[0].mxu0
    %v1977 = vadd.f32 0.0, %v1976
    %v1978 = vpop.f32.mrb[0].mxu0
    %v1979 = vadd.f32 0.0, %v1978
    %1980 = vmatprep.mubr.f32.mxu0 0.0
    %1981 = vmatmul.mubr.f32.gmra.mrb[0].mxu0 %v1618
    %v1982 = vpop.f32.mrb[0].mxu0
    %v1983 = vadd.f32 0.0, %v1982
    %v1984 = vpop.f32.mrb[0].mxu0
    %v1985 = vadd.f32 0.0, %v1984
    %1986 = vmatprep.mubr.f32.mxu0 0.0
    %1987 = vmatmul.mubr.f32.gmra.mrb[0].mxu0 %v1455
    %v1988 = vpop.f32.mrb[0].mxu0
    %v1989 = vadd.f32 0.0, %v1988
    %v1990 = vpop.f32.mrb[0].mxu0
    %v1991 = vadd.f32 0.0, %v1990
    %1992 = vmatprep.mubr.f32.mxu0 0.0
    %1993 = vmatmul.mubr.f32.gmra.mrb[0].mxu0 %v1292
    %v1994 = vpop.f32.mrb[0].mxu0
    %v1995 = vadd.f32 0.0, %v1994
    %v1996 = vpop.f32.mrb[0].mxu0
    %v1997 = vadd.f32 0.0, %v1996
    %1998 = vmatprep.mubr.f32.mxu0 0.0
    %1999 = vmatmul.mubr.f32.gmra.mrb[0].mxu0 %v1129
    %v2000 = vpop.f32.mrb[0].mxu0
    %v2001 = vadd.f32 0.0, %v2000
    %v2002 = vpop.f32.mrb[0].mxu0
    %v2003 = vadd.f32 0.0, %v2002
    %2004 = vmatprep.mubr.f32.mxu0 0.0
    %2005 = vmatmul.mubr.f32.gmra.mrb[0].mxu0 %v966
    %v2006 = vpop.f32.mrb[0].mxu0
    %v2007 = vadd.f32 0.0, %v2006
    %v2008 = vpop.f32.mrb[0].mxu0
    %v2009 = vadd.f32 0.0, %v2008
    %2010 = vmatprep.mubr.f32.mxu0 0.0
    %2011 = vmatmul.mubr.f32.gmra.mrb[0].mxu0 %v803
    %v2012 = vpop.f32.mrb[0].mxu0
    %v2013 = vadd.f32 0.0, %v2012
    %v2014 = vpop.f32.mrb[0].mxu0
    %v2015 = vadd.f32 0.0, %v2014
    %2016 = vmatprep.mubr.f32.mxu0 0.0
    %2017 = vmatmul.mubr.f32.gmra.mrb[0].mxu0 %v640
    %v2018 = vpop.f32.mrb[0].mxu0
    %v2019 = vadd.f32 0.0, %v2018
    %v2020 = vpop.f32.mrb[0].mxu0
    %v2021 = vadd.f32 0.0, %v2020
    %2022 = vdwg.mxu0
    %2023 = vmatprep.subr.mxu0 %v1849
    %2024 = vmatpush1.msra.mxu0 %v1848
    %2025 = vmatprep.subr.mxu0 %v1853
    %2026 = vmatpush1.msra.mxu0 %v1852
    %2027 = vmatprep.subr.mxu0 %v1857
    %2028 = vmatpush1.msra.mxu0 %v1856
    %2029 = vmatprep.subr.mxu0 %v1861
    %2030 = vmatpush1.msra.mxu0 %v1860
    %2031 = vmatprep.subr.mxu0 %v1865
    %2032 = vmatpush1.msra.mxu0 %v1864
    %2033 = vmatprep.subr.mxu0 %v1869
    %2034 = vmatpush1.msra.mxu0 %v1868
    %2035 = vmatprep.subr.mxu0 %v1873
    %2036 = vmatpush1.msra.mxu0 %v1872
    %2037 = vmatprep.subr.mxu0 %v1877
    %2038 = vmatpush1.msra.mxu0 %v1876
    %2039 = vmatprep.subr.mxu0 %v1881
    %2040 = vmatpush1.msra.mxu0 %v1880
    %2041 = vmatprep.subr.mxu0 %v1885
    %2042 = vmatpush1.msra.mxu0 %v1884
    %2043 = vmatprep.subr.mxu0 %v1889
    %2044 = vmatpush1.msra.mxu0 %v1888
    %2045 = vmatprep.subr.mxu0 %v1893
    %2046 = vmatpush1.msra.mxu0 %v1892
    %2047 = vmatprep.subr.mxu0 %v1897
    %2048 = vmatpush1.msra.mxu0 %v1896
    %2049 = vmatprep.subr.mxu0 %v1901
    %2050 = vmatpush1.msra.mxu0 %v1900
    %2051 = vmatprep.subr.mxu0 %v1905
    %2052 = vmatpush1.msra.mxu0 %v1904
    %2053 = vmatprep.subr.mxu0 %v1909
    %2054 = vmatpush1.msra.mxu0 %v1908
    %2055 = vmatprep.subr.mxu0 0.0
    %2056 = vmatpush1.msra.mxu0 0.0
    %2057 = vmatprep.subr.mxu0 0.0
    %2058 = vmatpush1.msra.mxu0 0.0
    %2059 = vmatprep.subr.mxu0 0.0
    %2060 = vmatpush1.msra.mxu0 0.0
    %2061 = vmatprep.subr.mxu0 0.0
    %2062 = vmatpush1.msra.mxu0 0.0
    %2063 = vmatprep.subr.mxu0 0.0
    %2064 = vmatpush1.msra.mxu0 0.0
    %2065 = vmatprep.subr.mxu0 0.0
    %2066 = vmatpush1.msra.mxu0 0.0
    %2067 = vmatprep.subr.mxu0 0.0
    %2068 = vmatpush1.msra.mxu0 0.0
    %2069 = vmatprep.subr.mxu0 0.0
    %2070 = vmatpush1.msra.mxu0 0.0
    %2071 = vmatprep.subr.mxu0 0.0
    %2072 = vmatpush1.msra.mxu0 0.0
    %2073 = vmatprep.subr.mxu0 0.0
    %2074 = vmatpush1.msra.mxu0 0.0
    %2075 = vmatprep.subr.mxu0 0.0
    %2076 = vmatpush1.msra.mxu0 0.0
    %2077 = vmatprep.subr.mxu0 0.0
    %2078 = vmatpush1.msra.mxu0 0.0
    %2079 = vmatprep.subr.mxu0 0.0
    %2080 = vmatpush1.msra.mxu0 0.0
    %2081 = vmatprep.subr.mxu0 0.0
    %2082 = vmatpush1.msra.mxu0 0.0
    %2083 = vmatprep.subr.mxu0 0.0
    %2084 = vmatpush1.msra.mxu0 0.0
    %2085 = vmatprep.subr.mxu0 0.0
    %2086 = vmatpush1.msra.mxu0 0.0
    %2087 = vmatprep.mubr.f32.mxu0 0.0
    %2088 = vmatmul.mubr.f32.gmra.mrb[0].mxu0 %v1781
    %v2089 = vpop.f32.mrb[0].mxu0
    %v2090 = vadd.f32 0.0, %v2089
    %v2091 = vpop.f32.mrb[0].mxu0
    %v2092 = vadd.f32 0.0, %v2091
    %2093 = vmatprep.mubr.f32.mxu0 0.0
    %2094 = vmatmul.mubr.f32.gmra.mrb[0].mxu0 %v1618
    %v2095 = vpop.f32.mrb[0].mxu0
    %v2096 = vadd.f32 0.0, %v2095
    %v2097 = vpop.f32.mrb[0].mxu0
    %v2098 = vadd.f32 0.0, %v2097
    %2099 = vmatprep.mubr.f32.mxu0 0.0
    %2100 = vmatmul.mubr.f32.gmra.mrb[0].mxu0 %v1455
    %v2101 = vpop.f32.mrb[0].mxu0
    %v2102 = vadd.f32 0.0, %v2101
    %v2103 = vpop.f32.mrb[0].mxu0
    %v2104 = vadd.f32 0.0, %v2103
    %2105 = vmatprep.mubr.f32.mxu0 0.0
    %2106 = vmatmul.mubr.f32.gmra.mrb[0].mxu0 %v1292
    %v2107 = vpop.f32.mrb[0].mxu0
    %v2108 = vadd.f32 0.0, %v2107
    %v2109 = vpop.f32.mrb[0].mxu0
    %v2110 = vadd.f32 0.0, %v2109
    %2111 = vmatprep.mubr.f32.mxu0 0.0
    %2112 = vmatmul.mubr.f32.gmra.mrb[0].mxu0 %v1129
    %v2113 = vpop.f32.mrb[0].mxu0
    %v2114 = vadd.f32 0.0, %v2113
    %v2115 = vpop.f32.mrb[0].mxu0
    %v2116 = vadd.f32 0.0, %v2115
    %2117 = vmatprep.mubr.f32.mxu0 0.0
    %2118 = vmatmul.mubr.f32.gmra.mrb[0].mxu0 %v966
    %v2119 = vpop.f32.mrb[0].mxu0
    %v2120 = vadd.f32 0.0, %v2119
    %v2121 = vpop.f32.mrb[0].mxu0
    %v2122 = vadd.f32 0.0, %v2121
    %2123 = vmatprep.mubr.f32.mxu0 0.0
    %2124 = vmatmul.mubr.f32.gmra.mrb[0].mxu0 %v803
    %v2125 = vpop.f32.mrb[0].mxu0
    %v2126 = vadd.f32 0.0, %v2125
    %v2127 = vpop.f32.mrb[0].mxu0
    %v2128 = vadd.f32 0.0, %v2127
    %2129 = vmatprep.mubr.f32.mxu0 0.0
    %2130 = vmatmul.mubr.f32.gmra.mrb[0].mxu0 %v640
    %v2131 = vpop.f32.mrb[0].mxu0
    %v2132 = vadd.f32 0.0, %v2131
    %v2133 = vpop.f32.mrb[0].mxu0
    %v2134 = vadd.f32 0.0, %v2133
    %2135 = vdwg.mxu0
    %2136 = vmatprep.subr.mxu0 %v1783
    %2137 = vmatpush1.msra.mxu0 %v1782
    %2138 = vmatprep.subr.mxu0 %v1787
    %2139 = vmatpush1.msra.mxu0 %v1786
    %2140 = vmatprep.subr.mxu0 %v1791
    %2141 = vmatpush1.msra.mxu0 %v1790
    %2142 = vmatprep.subr.mxu0 %v1795
    %2143 = vmatpush1.msra.mxu0 %v1794
    %2144 = vmatprep.subr.mxu0 %v1799
    %2145 = vmatpush1.msra.mxu0 %v1798
    %2146 = vmatprep.subr.mxu0 %v1803
    %2147 = vmatpush1.msra.mxu0 %v1802
    %2148 = vmatprep.subr.mxu0 %v1807
    %2149 = vmatpush1.msra.mxu0 %v1806
    %2150 = vmatprep.subr.mxu0 %v1811
    %2151 = vmatpush1.msra.mxu0 %v1810
    %2152 = vmatprep.subr.mxu0 %v1815
    %2153 = vmatpush1.msra.mxu0 %v1814
    %2154 = vmatprep.subr.mxu0 %v1819
    %2155 = vmatpush1.msra.mxu0 %v1818
    %2156 = vmatprep.subr.mxu0 %v1823
    %2157 = vmatpush1.msra.mxu0 %v1822
    %2158 = vmatprep.subr.mxu0 %v1827
    %2159 = vmatpush1.msra.mxu0 %v1826
    %2160 = vmatprep.subr.mxu0 %v1831
    %2161 = vmatpush1.msra.mxu0 %v1830
    %2162 = vmatprep.subr.mxu0 %v1835
    %2163 = vmatpush1.msra.mxu0 %v1834
    %2164 = vmatprep.subr.mxu0 %v1839
    %2165 = vmatpush1.msra.mxu0 %v1838
    %2166 = vmatprep.subr.mxu0 %v1843
    %2167 = vmatpush1.msra.mxu0 %v1842
    %2168 = vmatprep.subr.mxu0 0.0
    %2169 = vmatpush1.msra.mxu0 0.0
    %2170 = vmatprep.subr.mxu0 0.0
    %2171 = vmatpush1.msra.mxu0 0.0
    %2172 = vmatprep.subr.mxu0 0.0
    %2173 = vmatpush1.msra.mxu0 0.0
    %2174 = vmatprep.subr.mxu0 0.0
    %2175 = vmatpush1.msra.mxu0 0.0
    %2176 = vmatprep.subr.mxu0 0.0
    %2177 = vmatpush1.msra.mxu0 0.0
    %2178 = vmatprep.subr.mxu0 0.0
    %2179 = vmatpush1.msra.mxu0 0.0
    %2180 = vmatprep.subr.mxu0 0.0
    %2181 = vmatpush1.msra.mxu0 0.0
    %2182 = vmatprep.subr.mxu0 0.0
    %2183 = vmatpush1.msra.mxu0 0.0
    %2184 = vmatprep.subr.mxu0 0.0
    %2185 = vmatpush1.msra.mxu0 0.0
    %2186 = vmatprep.subr.mxu0 0.0
    %2187 = vmatpush1.msra.mxu0 0.0
    %2188 = vmatprep.subr.mxu0 0.0
    %2189 = vmatpush1.msra.mxu0 0.0
    %2190 = vmatprep.subr.mxu0 0.0
    %2191 = vmatpush1.msra.mxu0 0.0
    %2192 = vmatprep.subr.mxu0 0.0
    %2193 = vmatpush1.msra.mxu0 0.0
    %2194 = vmatprep.subr.mxu0 0.0
    %2195 = vmatpush1.msra.mxu0 0.0
    %2196 = vmatprep.subr.mxu0 0.0
    %2197 = vmatpush1.msra.mxu0 0.0
    %2198 = vmatprep.subr.mxu0 0.0
    %2199 = vmatpush1.msra.mxu0 0.0
    %2200 = vmatprep.mubr.f32.mxu0 0.0
    %2201 = vmatmul.mubr.f32.gmra.mrb[0].mxu0 %v640
    %v2202 = vpop.f32.mrb[0].mxu0
    %v2203 = vadd.f32 %v1977, %v2202
    %v2204 = vpop.f32.mrb[0].mxu0
    %v2205 = vadd.f32 %v1979, %v2204
    %2206 = vmatprep.mubr.f32.mxu0 0.0
    %2207 = vmatmul.mubr.f32.gmra.mrb[0].mxu0 %v803
    %v2208 = vpop.f32.mrb[0].mxu0
    %v2209 = vadd.f32 %v1983, %v2208
    %v2210 = vpop.f32.mrb[0].mxu0
    %v2211 = vadd.f32 %v1985, %v2210
    %2212 = vmatprep.mubr.f32.mxu0 0.0
    %2213 = vmatmul.mubr.f32.gmra.mrb[0].mxu0 %v966
    %v2214 = vpop.f32.mrb[0].mxu0
    %v2215 = vadd.f32 %v1989, %v2214
    %v2216 = vpop.f32.mrb[0].mxu0
    %v2217 = vadd.f32 %v1991, %v2216
    %2218 = vmatprep.mubr.f32.mxu0 0.0
    %2219 = vmatmul.mubr.f32.gmra.mrb[0].mxu0 %v1129
    %v2220 = vpop.f32.mrb[0].mxu0
    %v2221 = vadd.f32 %v1995, %v2220
    %v2222 = vpop.f32.mrb[0].mxu0
    %v2223 = vadd.f32 %v1997, %v2222
    %2224 = vmatprep.mubr.f32.mxu0 0.0
    %2225 = vmatmul.mubr.f32.gmra.mrb[0].mxu0 %v1292
    %v2226 = vpop.f32.mrb[0].mxu0
    %v2227 = vadd.f32 %v2001, %v2226
    %v2228 = vpop.f32.mrb[0].mxu0
    %v2229 = vadd.f32 %v2003, %v2228
    %2230 = vmatprep.mubr.f32.mxu0 0.0
    %2231 = vmatmul.mubr.f32.gmra.mrb[0].mxu0 %v1455
    %v2232 = vpop.f32.mrb[0].mxu0
    %v2233 = vadd.f32 %v2007, %v2232
    %v2234 = vpop.f32.mrb[0].mxu0
    %v2235 = vadd.f32 %v2009, %v2234
    %2236 = vmatprep.mubr.f32.mxu0 0.0
    %2237 = vmatmul.mubr.f32.gmra.mrb[0].mxu0 %v1618
    %v2238 = vpop.f32.mrb[0].mxu0
    %v2239 = vadd.f32 %v2013, %v2238
    %v2240 = vpop.f32.mrb[0].mxu0
    %v2241 = vadd.f32 %v2015, %v2240
    %2242 = vmatprep.mubr.f32.mxu0 0.0
    %2243 = vmatmul.mubr.f32.gmra.mrb[0].mxu0 %v1781
    %v2244 = vpop.f32.mrb[0].mxu0
    %v2245 = vadd.f32 %v2019, %v2244
    %v2246 = vpop.f32.mrb[0].mxu0
    %v2247 = vadd.f32 %v2021, %v2246
    %2248 = vdwg.mxu0
    %2249 = vmatprep.subr.mxu0 %v1785
    %2250 = vmatpush1.msra.mxu0 %v1784
    %2251 = vmatprep.subr.mxu0 %v1789
    %2252 = vmatpush1.msra.mxu0 %v1788
    %2253 = vmatprep.subr.mxu0 %v1793
    %2254 = vmatpush1.msra.mxu0 %v1792
    %2255 = vmatprep.subr.mxu0 %v1797
    %2256 = vmatpush1.msra.mxu0 %v1796
    %2257 = vmatprep.subr.mxu0 %v1801
    %2258 = vmatpush1.msra.mxu0 %v1800
    %2259 = vmatprep.subr.mxu0 %v1805
    %2260 = vmatpush1.msra.mxu0 %v1804
    %2261 = vmatprep.subr.mxu0 %v1809
    %2262 = vmatpush1.msra.mxu0 %v1808
    %2263 = vmatprep.subr.mxu0 %v1813
    %2264 = vmatpush1.msra.mxu0 %v1812
    %2265 = vmatprep.subr.mxu0 %v1817
    %2266 = vmatpush1.msra.mxu0 %v1816
    %2267 = vmatprep.subr.mxu0 %v1821
    %2268 = vmatpush1.msra.mxu0 %v1820
    %2269 = vmatprep.subr.mxu0 %v1825
    %2270 = vmatpush1.msra.mxu0 %v1824
    %2271 = vmatprep.subr.mxu0 %v1829
    %2272 = vmatpush1.msra.mxu0 %v1828
    %2273 = vmatprep.subr.mxu0 %v1833
    %2274 = vmatpush1.msra.mxu0 %v1832
    %2275 = vmatprep.subr.mxu0 %v1837
    %2276 = vmatpush1.msra.mxu0 %v1836
    %2277 = vmatprep.subr.mxu0 %v1841
    %2278 = vmatpush1.msra.mxu0 %v1840
    %2279 = vmatprep.subr.mxu0 %v1845
    %2280 = vmatpush1.msra.mxu0 %v1844
    %2281 = vmatprep.subr.mxu0 0.0
    %2282 = vmatpush1.msra.mxu0 0.0
    %2283 = vmatprep.subr.mxu0 0.0
    %2284 = vmatpush1.msra.mxu0 0.0
    %2285 = vmatprep.subr.mxu0 0.0
    %2286 = vmatpush1.msra.mxu0 0.0
    %2287 = vmatprep.subr.mxu0 0.0
    %2288 = vmatpush1.msra.mxu0 0.0
    %2289 = vmatprep.subr.mxu0 0.0
    %2290 = vmatpush1.msra.mxu0 0.0
    %2291 = vmatprep.subr.mxu0 0.0
    %2292 = vmatpush1.msra.mxu0 0.0
    %2293 = vmatprep.subr.mxu0 0.0
    %2294 = vmatpush1.msra.mxu0 0.0
    %2295 = vmatprep.subr.mxu0 0.0
    %2296 = vmatpush1.msra.mxu0 0.0
    %2297 = vmatprep.subr.mxu0 0.0
    %2298 = vmatpush1.msra.mxu0 0.0
    %2299 = vmatprep.subr.mxu0 0.0
    %2300 = vmatpush1.msra.mxu0 0.0
    %2301 = vmatprep.subr.mxu0 0.0
    %2302 = vmatpush1.msra.mxu0 0.0
    %2303 = vmatprep.subr.mxu0 0.0
    %2304 = vmatpush1.msra.mxu0 0.0
    %2305 = vmatprep.subr.mxu0 0.0
    %2306 = vmatpush1.msra.mxu0 0.0
    %2307 = vmatprep.subr.mxu0 0.0
    %2308 = vmatpush1.msra.mxu0 0.0
    %2309 = vmatprep.subr.mxu0 0.0
    %2310 = vmatpush1.msra.mxu0 0.0
    %2311 = vmatprep.subr.mxu0 0.0
    %2312 = vmatpush1.msra.mxu0 0.0
    %2313 = vmatprep.mubr.f32.mxu0 0.0
    %2314 = vmatmul.mubr.f32.gmra.mrb[0].mxu0 %v640
    %v2315 = vpop.f32.mrb[0].mxu0
    %v2316 = vadd.f32 %v2090, %v2315
    %v2317 = vpop.f32.mrb[0].mxu0
    %v2318 = vadd.f32 %v2092, %v2317
    %2319 = vmatprep.mubr.f32.mxu0 0.0
    %2320 = vmatmul.mubr.f32.gmra.mrb[0].mxu0 %v803
    %v2321 = vpop.f32.mrb[0].mxu0
    %v2322 = vadd.f32 %v2096, %v2321
    %v2323 = vpop.f32.mrb[0].mxu0
    %v2324 = vadd.f32 %v2098, %v2323
    %2325 = vmatprep.mubr.f32.mxu0 0.0
    %2326 = vmatmul.mubr.f32.gmra.mrb[0].mxu0 %v966
    %v2327 = vpop.f32.mrb[0].mxu0
    %v2328 = vadd.f32 %v2102, %v2327
    %v2329 = vpop.f32.mrb[0].mxu0
    %v2330 = vadd.f32 %v2104, %v2329
    %2331 = vmatprep.mubr.f32.mxu0 0.0
    %2332 = vmatmul.mubr.f32.gmra.mrb[0].mxu0 %v1129
    %v2333 = vpop.f32.mrb[0].mxu0
    %v2334 = vadd.f32 %v2108, %v2333
    %v2335 = vpop.f32.mrb[0].mxu0
    %v2336 = vadd.f32 %v2110, %v2335
    %2337 = vmatprep.mubr.f32.mxu0 0.0
    %2338 = vmatmul.mubr.f32.gmra.mrb[0].mxu0 %v1292
    %v2339 = vpop.f32.mrb[0].mxu0
    %v2340 = vadd.f32 %v2114, %v2339
    %v2341 = vpop.f32.mrb[0].mxu0
    %v2342 = vadd.f32 %v2116, %v2341
    %2343 = vmatprep.mubr.f32.mxu0 0.0
    %2344 = vmatmul.mubr.f32.gmra.mrb[0].mxu0 %v1455
    %v2345 = vpop.f32.mrb[0].mxu0
    %v2346 = vadd.f32 %v2120, %v2345
    %v2347 = vpop.f32.mrb[0].mxu0
    %v2348 = vadd.f32 %v2122, %v2347
    %2349 = vmatprep.mubr.f32.mxu0 0.0
    %2350 = vmatmul.mubr.f32.gmra.mrb[0].mxu0 %v1618
    %v2351 = vpop.f32.mrb[0].mxu0
    %v2352 = vadd.f32 %v2126, %v2351
    %v2353 = vpop.f32.mrb[0].mxu0
    %v2354 = vadd.f32 %v2128, %v2353
    %2355 = vmatprep.mubr.f32.mxu0 0.0
    %2356 = vmatmul.mubr.f32.gmra.mrb[0].mxu0 %v1781
    %v2357 = vpop.f32.mrb[0].mxu0
    %v2358 = vadd.f32 %v2132, %v2357
    %v2359 = vpop.f32.mrb[0].mxu0
    %v2360 = vadd.f32 %v2134, %v2359
    %2361 = vdwg.mxu0
    %v2363 = vlaneseq
    %v2364 = vshrl.u32 %v2363, 7
    %v2365 = vsub.s32 0, %v2364
    %v2366 = vrot.slane %v242, %v2365
    %v2367 = vlaneseq
    %v2368 = vshrl.u32 %v2367, 7
    %v2369 = vsub.s32 1, %v2368
    %v2370 = vrot.slane %v242, %v2369
    %v2371 = vlaneseq
    %v2372 = vshrl.u32 %v2371, 7
    %v2373 = vsub.s32 2, %v2372
    %v2374 = vrot.slane %v242, %v2373
    %v2375 = vlaneseq
    %v2376 = vshrl.u32 %v2375, 7
    %v2377 = vsub.s32 3, %v2376
    %v2378 = vrot.slane %v242, %v2377
    %v2383 = vadd.f32 %v2203, %v2366
    %v2384 = vadd.f32 %v2205, %v2370
    %v2385 = vadd.f32 %v2316, %v2374
    %v2386 = vadd.f32 %v2318, %v2378
    %v2387 = vadd.f32 %v2209, %v2366
    %v2388 = vadd.f32 %v2211, %v2370
    %v2389 = vadd.f32 %v2322, %v2374
    %v2390 = vadd.f32 %v2324, %v2378
    %v2391 = vadd.f32 %v2215, %v2366
    %v2392 = vadd.f32 %v2217, %v2370
    %v2393 = vadd.f32 %v2328, %v2374
    %v2394 = vadd.f32 %v2330, %v2378
    %v2395 = vadd.f32 %v2221, %v2366
    %v2396 = vadd.f32 %v2223, %v2370
    %v2397 = vadd.f32 %v2334, %v2374
    %v2398 = vadd.f32 %v2336, %v2378
    %v2399 = vadd.f32 %v2227, %v2366
    %v2400 = vadd.f32 %v2229, %v2370
    %v2401 = vadd.f32 %v2340, %v2374
    %v2402 = vadd.f32 %v2342, %v2378
    %v2403 = vadd.f32 %v2233, %v2366
    %v2404 = vadd.f32 %v2235, %v2370
    %v2405 = vadd.f32 %v2346, %v2374
    %v2406 = vadd.f32 %v2348, %v2378
    %v2407 = vadd.f32 %v2239, %v2366
    %v2408 = vadd.f32 %v2241, %v2370
    %v2409 = vadd.f32 %v2352, %v2374
    %v2410 = vadd.f32 %v2354, %v2378
    %v2411 = vadd.f32 %v2245, %v2366
    %v2412 = vadd.f32 %v2247, %v2370
    %v2413 = vadd.f32 %v2358, %v2374
    %v2414 = vadd.f32 %v2360, %v2378
    %v2415 = vtanh.pop %v2383
    %v2416 = vtanh.pop %v2384
    %v2417 = vtanh.pop %v2385
    %v2418 = vtanh.pop %v2386
    %v2419 = vtanh.pop %v2387
    %v2420 = vtanh.pop %v2388
    %v2421 = vtanh.pop %v2389
    %v2422 = vtanh.pop %v2390
    %v2423 = vtanh.pop %v2391
    %v2424 = vtanh.pop %v2392
    %v2425 = vtanh.pop %v2393
    %v2426 = vtanh.pop %v2394
    %v2427 = vtanh.pop %v2395
    %v2428 = vtanh.pop %v2396
    %v2429 = vtanh.pop %v2397
    %v2430 = vtanh.pop %v2398
    %v2431 = vtanh.pop %v2399
    %v2432 = vtanh.pop %v2400
    %v2433 = vtanh.pop %v2401
    %v2434 = vtanh.pop %v2402
    %v2435 = vtanh.pop %v2403
    %v2436 = vtanh.pop %v2404
    %v2437 = vtanh.pop %v2405
    %v2438 = vtanh.pop %v2406
    %v2439 = vtanh.pop %v2407
    %v2440 = vtanh.pop %v2408
    %v2441 = vtanh.pop %v2409
    %v2442 = vtanh.pop %v2410
    %v2443 = vtanh.pop %v2411
    %v2444 = vtanh.pop %v2412
    %v2445 = vtanh.pop %v2413
    %v2446 = vtanh.pop %v2414
    %v2447 = vld [vmem:[%s3] sm:$0xff]
    %v2448 = vld [vmem:[%s3 + $0x8] sm:$0xff]
    %v2449 = vld [vmem:[%s3 + $0x10] sm:$0xff]
    %v2450 = vld [vmem:[%s3 + $0x18] sm:$0xff]
    %v2451 = vld [vmem:[%s3 + $0x20] sm:$0xff]
    %v2452 = vld [vmem:[%s3 + $0x28] sm:$0xff]
    %v2453 = vld [vmem:[%s3 + $0x30] sm:$0xff]
    %v2454 = vld [vmem:[%s3 + $0x38] sm:$0xff]
    %v2455 = vld [vmem:[%s3 + $0x40] sm:$0xff]
    %v2456 = vld [vmem:[%s3 + $0x48] sm:$0xff]
    %v2457 = vld [vmem:[%s3 + $0x50] sm:$0xff]
    %v2458 = vld [vmem:[%s3 + $0x58] sm:$0xff]
    %v2459 = vld [vmem:[%s3 + $0x60] sm:$0xff]
    %v2460 = vld [vmem:[%s3 + $0x68] sm:$0xff]
    %v2461 = vld [vmem:[%s3 + $0x70] sm:$0xff]
    %v2462 = vld [vmem:[%s3 + $0x78] sm:$0xff]
    %v2463 = vld [vmem:[%s3 + $0x80] sm:$0xff]
    %v2464 = vld [vmem:[%s3 + $0x88] sm:$0xff]
    %v2465 = vld [vmem:[%s3 + $0x90] sm:$0xff]
    %v2466 = vld [vmem:[%s3 + $0x98] sm:$0xff]
    %v2467 = vld [vmem:[%s3 + $0xa0] sm:$0xff]
    %v2468 = vld [vmem:[%s3 + $0xa8] sm:$0xff]
    %v2469 = vld [vmem:[%s3 + $0xb0] sm:$0xff]
    %v2470 = vld [vmem:[%s3 + $0xb8] sm:$0xff]
    %v2471 = vld [vmem:[%s3 + $0xc0] sm:$0xff]
    %v2472 = vld [vmem:[%s3 + $0xc8] sm:$0xff]
    %v2473 = vld [vmem:[%s3 + $0xd0] sm:$0xff]
    %v2474 = vld [vmem:[%s3 + $0xd8] sm:$0xff]
    %v2475 = vld [vmem:[%s3 + $0xe0] sm:$0xff]
    %v2476 = vld [vmem:[%s3 + $0xe8] sm:$0xff]
    %v2477 = vld [vmem:[%s3 + $0xf0] sm:$0xff]
    %v2478 = vld [vmem:[%s3 + $0xf8] sm:$0xff]
    %v2479 = vld [vmem:[%s3 + $0x100] sm:$0xff]
    %v2480 = vld [vmem:[%s3 + $0x108] sm:$0xff]
    %v2481 = vld [vmem:[%s3 + $0x110] sm:$0xff]
    %v2482 = vld [vmem:[%s3 + $0x118] sm:$0xff]
    %v2483 = vld [vmem:[%s3 + $0x120] sm:$0xff]
    %v2484 = vld [vmem:[%s3 + $0x128] sm:$0xff]
    %v2485 = vld [vmem:[%s3 + $0x130] sm:$0xff]
    %v2486 = vld [vmem:[%s3 + $0x138] sm:$0xff]
    %v2487 = vld [vmem:[%s3 + $0x140] sm:$0xff]
    %v2488 = vld [vmem:[%s3 + $0x148] sm:$0xff]
    %v2489 = vld [vmem:[%s3 + $0x150] sm:$0xff]
    %v2490 = vld [vmem:[%s3 + $0x158] sm:$0xff]
    %v2491 = vld [vmem:[%s3 + $0x160] sm:$0xff]
    %v2492 = vld [vmem:[%s3 + $0x168] sm:$0xff]
    %v2493 = vld [vmem:[%s3 + $0x170] sm:$0xff]
    %v2494 = vld [vmem:[%s3 + $0x178] sm:$0xff]
    %v2495 = vld [vmem:[%s3 + $0x180] sm:$0xff]
    %v2496 = vld [vmem:[%s3 + $0x188] sm:$0xff]
    %v2497 = vld [vmem:[%s3 + $0x190] sm:$0xff]
    %v2498 = vld [vmem:[%s3 + $0x198] sm:$0xff]
    %v2499 = vld [vmem:[%s3 + $0x1a0] sm:$0xff]
    %v2500 = vld [vmem:[%s3 + $0x1a8] sm:$0xff]
    %v2501 = vld [vmem:[%s3 + $0x1b0] sm:$0xff]
    %v2502 = vld [vmem:[%s3 + $0x1b8] sm:$0xff]
    %v2503 = vld [vmem:[%s3 + $0x1c0] sm:$0xff]
    %v2504 = vld [vmem:[%s3 + $0x1c8] sm:$0xff]
    %v2505 = vld [vmem:[%s3 + $0x1d0] sm:$0xff]
    %v2506 = vld [vmem:[%s3 + $0x1d8] sm:$0xff]
    %v2507 = vld [vmem:[%s3 + $0x1e0] sm:$0xff]
    %v2508 = vld [vmem:[%s3 + $0x1e8] sm:$0xff]
    %v2509 = vld [vmem:[%s3 + $0x1f0] sm:$0xff]
    %v2510 = vld [vmem:[%s3 + $0x1f8] sm:$0xff]
    %2511 = vmatprep.subr.mxu0 0.0
    %2512 = vmatpush1.msra.mxu0 %v2447
    %2513 = vmatprep.subr.mxu0 0.0
    %2514 = vmatpush1.msra.mxu0 %v2448
    %2515 = vmatprep.subr.mxu0 0.0
    %2516 = vmatpush1.msra.mxu0 %v2449
    %2517 = vmatprep.subr.mxu0 0.0
    %2518 = vmatpush1.msra.mxu0 %v2450
    %2519 = vmatprep.subr.mxu0 0.0
    %2520 = vmatpush1.msra.mxu0 %v2451
    %2521 = vmatprep.subr.mxu0 0.0
    %2522 = vmatpush1.msra.mxu0 %v2452
    %2523 = vmatprep.subr.mxu0 0.0
    %2524 = vmatpush1.msra.mxu0 %v2453
    %2525 = vmatprep.subr.mxu0 0.0
    %2526 = vmatpush1.msra.mxu0 %v2454
    %2527 = vmatprep.subr.mxu0 0.0
    %2528 = vmatpush1.msra.mxu0 %v2455
    %2529 = vmatprep.subr.mxu0 0.0
    %2530 = vmatpush1.msra.mxu0 %v2456
    %2531 = vmatprep.subr.mxu0 0.0
    %2532 = vmatpush1.msra.mxu0 %v2457
    %2533 = vmatprep.subr.mxu0 0.0
    %2534 = vmatpush1.msra.mxu0 %v2458
    %2535 = vmatprep.subr.mxu0 0.0
    %2536 = vmatpush1.msra.mxu0 %v2459
    %2537 = vmatprep.subr.mxu0 0.0
    %2538 = vmatpush1.msra.mxu0 %v2460
    %2539 = vmatprep.subr.mxu0 0.0
    %2540 = vmatpush1.msra.mxu0 %v2461
    %2541 = vmatprep.subr.mxu0 0.0
    %2542 = vmatpush1.msra.mxu0 %v2462
    %2543 = vmatprep.subr.mxu0 0.0
    %2544 = vmatpush1.msra.mxu0 %v2463
    %2545 = vmatprep.subr.mxu0 0.0
    %2546 = vmatpush1.msra.mxu0 %v2464
    %2547 = vmatprep.subr.mxu0 0.0
    %2548 = vmatpush1.msra.mxu0 %v2465
    %2549 = vmatprep.subr.mxu0 0.0
    %2550 = vmatpush1.msra.mxu0 %v2466
    %2551 = vmatprep.subr.mxu0 0.0
    %2552 = vmatpush1.msra.mxu0 %v2467
    %2553 = vmatprep.subr.mxu0 0.0
    %2554 = vmatpush1.msra.mxu0 %v2468
    %2555 = vmatprep.subr.mxu0 0.0
    %2556 = vmatpush1.msra.mxu0 %v2469
    %2557 = vmatprep.subr.mxu0 0.0
    %2558 = vmatpush1.msra.mxu0 %v2470
    %2559 = vmatprep.subr.mxu0 0.0
    %2560 = vmatpush1.msra.mxu0 %v2471
    %2561 = vmatprep.subr.mxu0 0.0
    %2562 = vmatpush1.msra.mxu0 %v2472
    %2563 = vmatprep.subr.mxu0 0.0
    %2564 = vmatpush1.msra.mxu0 %v2473
    %2565 = vmatprep.subr.mxu0 0.0
    %2566 = vmatpush1.msra.mxu0 %v2474
    %2567 = vmatprep.subr.mxu0 0.0
    %2568 = vmatpush1.msra.mxu0 %v2475
    %2569 = vmatprep.subr.mxu0 0.0
    %2570 = vmatpush1.msra.mxu0 %v2476
    %2571 = vmatprep.subr.mxu0 0.0
    %2572 = vmatpush1.msra.mxu0 %v2477
    %2573 = vmatprep.subr.mxu0 0.0
    %2574 = vmatpush1.msra.mxu0 %v2478
    %2575 = vmatprep.mubr.f32.mxu0 %v2416
    %2576 = vmatmul.mubr.f32.gmra.mrb[0].mxu0 %v2415
    %v2577 = vpop.f32.mrb[0].mxu0
    %v2578 = vadd.f32 0.0, %v2577
    %v2579 = vpop.f32.mrb[0].mxu0
    %2580 = vmatprep.mubr.f32.mxu0 %v2420
    %2581 = vmatmul.mubr.f32.gmra.mrb[0].mxu0 %v2419
    %v2582 = vpop.f32.mrb[0].mxu0
    %v2583 = vadd.f32 0.0, %v2582
    %v2584 = vpop.f32.mrb[0].mxu0
    %2585 = vmatprep.mubr.f32.mxu0 %v2424
    %2586 = vmatmul.mubr.f32.gmra.mrb[0].mxu0 %v2423
    %v2587 = vpop.f32.mrb[0].mxu0
    %v2588 = vadd.f32 0.0, %v2587
    %v2589 = vpop.f32.mrb[0].mxu0
    %2590 = vmatprep.mubr.f32.mxu0 %v2428
    %2591 = vmatmul.mubr.f32.gmra.mrb[0].mxu0 %v2427
    %v2592 = vpop.f32.mrb[0].mxu0
    %v2593 = vadd.f32 0.0, %v2592
    %v2594 = vpop.f32.mrb[0].mxu0
    %2595 = vmatprep.mubr.f32.mxu0 %v2432
    %2596 = vmatmul.mubr.f32.gmra.mrb[0].mxu0 %v2431
    %v2597 = vpop.f32.mrb[0].mxu0
    %v2598 = vadd.f32 0.0, %v2597
    %v2599 = vpop.f32.mrb[0].mxu0
    %2600 = vmatprep.mubr.f32.mxu0 %v2436
    %2601 = vmatmul.mubr.f32.gmra.mrb[0].mxu0 %v2435
    %v2602 = vpop.f32.mrb[0].mxu0
    %v2603 = vadd.f32 0.0, %v2602
    %v2604 = vpop.f32.mrb[0].mxu0
    %2605 = vmatprep.mubr.f32.mxu0 %v2440
    %2606 = vmatmul.mubr.f32.gmra.mrb[0].mxu0 %v2439
    %v2607 = vpop.f32.mrb[0].mxu0
    %v2608 = vadd.f32 0.0, %v2607
    %v2609 = vpop.f32.mrb[0].mxu0
    %2610 = vmatprep.mubr.f32.mxu0 %v2444
    %2611 = vmatmul.mubr.f32.gmra.mrb[0].mxu0 %v2443
    %v2612 = vpop.f32.mrb[0].mxu0
    %v2613 = vadd.f32 0.0, %v2612
    %v2614 = vpop.f32.mrb[0].mxu0
    %2615 = vdwg.mxu0
    %2616 = vmatprep.subr.mxu0 0.0
    %2617 = vmatpush1.msra.mxu0 %v2479
    %2618 = vmatprep.subr.mxu0 0.0
    %2619 = vmatpush1.msra.mxu0 %v2480
    %2620 = vmatprep.subr.mxu0 0.0
    %2621 = vmatpush1.msra.mxu0 %v2481
    %2622 = vmatprep.subr.mxu0 0.0
    %2623 = vmatpush1.msra.mxu0 %v2482
    %2624 = vmatprep.subr.mxu0 0.0
    %2625 = vmatpush1.msra.mxu0 %v2483
    %2626 = vmatprep.subr.mxu0 0.0
    %2627 = vmatpush1.msra.mxu0 %v2484
    %2628 = vmatprep.subr.mxu0 0.0
    %2629 = vmatpush1.msra.mxu0 %v2485
    %2630 = vmatprep.subr.mxu0 0.0
    %2631 = vmatpush1.msra.mxu0 %v2486
    %2632 = vmatprep.subr.mxu0 0.0
    %2633 = vmatpush1.msra.mxu0 %v2487
    %2634 = vmatprep.subr.mxu0 0.0
    %2635 = vmatpush1.msra.mxu0 %v2488
    %2636 = vmatprep.subr.mxu0 0.0
    %2637 = vmatpush1.msra.mxu0 %v2489
    %2638 = vmatprep.subr.mxu0 0.0
    %2639 = vmatpush1.msra.mxu0 %v2490
    %2640 = vmatprep.subr.mxu0 0.0
    %2641 = vmatpush1.msra.mxu0 %v2491
    %2642 = vmatprep.subr.mxu0 0.0
    %2643 = vmatpush1.msra.mxu0 %v2492
    %2644 = vmatprep.subr.mxu0 0.0
    %2645 = vmatpush1.msra.mxu0 %v2493
    %2646 = vmatprep.subr.mxu0 0.0
    %2647 = vmatpush1.msra.mxu0 %v2494
    %2648 = vmatprep.subr.mxu0 0.0
    %2649 = vmatpush1.msra.mxu0 %v2495
    %2650 = vmatprep.subr.mxu0 0.0
    %2651 = vmatpush1.msra.mxu0 %v2496
    %2652 = vmatprep.subr.mxu0 0.0
    %2653 = vmatpush1.msra.mxu0 %v2497
    %2654 = vmatprep.subr.mxu0 0.0
    %2655 = vmatpush1.msra.mxu0 %v2498
    %2656 = vmatprep.subr.mxu0 0.0
    %2657 = vmatpush1.msra.mxu0 %v2499
    %2658 = vmatprep.subr.mxu0 0.0
    %2659 = vmatpush1.msra.mxu0 %v2500
    %2660 = vmatprep.subr.mxu0 0.0
    %2661 = vmatpush1.msra.mxu0 %v2501
    %2662 = vmatprep.subr.mxu0 0.0
    %2663 = vmatpush1.msra.mxu0 %v2502
    %2664 = vmatprep.subr.mxu0 0.0
    %2665 = vmatpush1.msra.mxu0 %v2503
    %2666 = vmatprep.subr.mxu0 0.0
    %2667 = vmatpush1.msra.mxu0 %v2504
    %2668 = vmatprep.subr.mxu0 0.0
    %2669 = vmatpush1.msra.mxu0 %v2505
    %2670 = vmatprep.subr.mxu0 0.0
    %2671 = vmatpush1.msra.mxu0 %v2506
    %2672 = vmatprep.subr.mxu0 0.0
    %2673 = vmatpush1.msra.mxu0 %v2507
    %2674 = vmatprep.subr.mxu0 0.0
    %2675 = vmatpush1.msra.mxu0 %v2508
    %2676 = vmatprep.subr.mxu0 0.0
    %2677 = vmatpush1.msra.mxu0 %v2509
    %2678 = vmatprep.subr.mxu0 0.0
    %2679 = vmatpush1.msra.mxu0 %v2510
    %2680 = vmatprep.mubr.f32.mxu0 %v2418
    %2681 = vmatmul.mubr.f32.gmra.mrb[0].mxu0 %v2417
    %v2682 = vpop.f32.mrb[0].mxu0
    %v2683 = vadd.f32 %v2578, %v2682
    %v2684 = vpop.f32.mrb[0].mxu0
    %2685 = vmatprep.mubr.f32.mxu0 %v2422
    %2686 = vmatmul.mubr.f32.gmra.mrb[0].mxu0 %v2421
    %v2687 = vpop.f32.mrb[0].mxu0
    %v2688 = vadd.f32 %v2583, %v2687
    %v2689 = vpop.f32.mrb[0].mxu0
    %2690 = vmatprep.mubr.f32.mxu0 %v2426
    %2691 = vmatmul.mubr.f32.gmra.mrb[0].mxu0 %v2425
    %v2692 = vpop.f32.mrb[0].mxu0
    %v2693 = vadd.f32 %v2588, %v2692
    %v2694 = vpop.f32.mrb[0].mxu0
    %2695 = vmatprep.mubr.f32.mxu0 %v2430
    %2696 = vmatmul.mubr.f32.gmra.mrb[0].mxu0 %v2429
    %v2697 = vpop.f32.mrb[0].mxu0
    %v2698 = vadd.f32 %v2593, %v2697
    %v2699 = vpop.f32.mrb[0].mxu0
    %2700 = vmatprep.mubr.f32.mxu0 %v2434
    %2701 = vmatmul.mubr.f32.gmra.mrb[0].mxu0 %v2433
    %v2702 = vpop.f32.mrb[0].mxu0
    %v2703 = vadd.f32 %v2598, %v2702
    %v2704 = vpop.f32.mrb[0].mxu0
    %2705 = vmatprep.mubr.f32.mxu0 %v2438
    %2706 = vmatmul.mubr.f32.gmra.mrb[0].mxu0 %v2437
    %v2707 = vpop.f32.mrb[0].mxu0
    %v2708 = vadd.f32 %v2603, %v2707
    %v2709 = vpop.f32.mrb[0].mxu0
    %2710 = vmatprep.mubr.f32.mxu0 %v2442
    %2711 = vmatmul.mubr.f32.gmra.mrb[0].mxu0 %v2441
    %v2712 = vpop.f32.mrb[0].mxu0
    %v2713 = vadd.f32 %v2608, %v2712
    %v2714 = vpop.f32.mrb[0].mxu0
    %2715 = vmatprep.mubr.f32.mxu0 %v2446
    %2716 = vmatmul.mubr.f32.gmra.mrb[0].mxu0 %v2445
    %v2717 = vpop.f32.mrb[0].mxu0
    %v2718 = vadd.f32 %v2613, %v2717
    %v2719 = vpop.f32.mrb[0].mxu0
    %2720 = vdwg.mxu0
    %v2721 = vlaneseq
    %v2722 = vshrl.u32 %v2721, 7
    %v2723 = vadd.s32 %v2722, 8
    %v2724 = vadd.s32 %v2722, 16
    %v2725 = vadd.s32 %v2722, 24
    %v2726 = vadd.s32 %v2722, 32
    %v2727 = vadd.s32 %v2722, 40
    %v2728 = vadd.s32 %v2722, 48
    %v2729 = vadd.s32 %v2722, 56
    %v2730 = vshra.s32 %v2722, 3
    %v2731 = vshra.s32 %v2723, 3
    %v2732 = vshra.s32 %v2724, 3
    %v2733 = vshra.s32 %v2725, 3
    %v2734 = vshra.s32 %v2726, 3
    %v2735 = vshra.s32 %v2727, 3
    %v2736 = vshra.s32 %v2728, 3
    %v2737 = vshra.s32 %v2729, 3
    %vm2738 = vcmp.eq.s32.totalorder %v2730, %v46
    %vm2739 = vcmp.eq.s32.totalorder %v2731, %v46
    %vm2740 = vcmp.eq.s32.totalorder %v2732, %v46
    %vm2741 = vcmp.eq.s32.totalorder %v2733, %v46
    %vm2742 = vcmp.eq.s32.totalorder %v2734, %v46
    %vm2743 = vcmp.eq.s32.totalorder %v2735, %v46
    %vm2744 = vcmp.eq.s32.totalorder %v2736, %v46
    %vm2745 = vcmp.eq.s32.totalorder %v2737, %v46
    %v2746 = vsel %vm2738, 1, 0
    %v2747 = vsel %vm2739, 1, 0
    %v2748 = vsel %vm2740, 1, 0
    %v2749 = vsel %vm2741, 1, 0
    %v2750 = vsel %vm2742, 1, 0
    %v2751 = vsel %vm2743, 1, 0
    %v2752 = vsel %vm2744, 1, 0
    %v2753 = vsel %vm2745, 1, 0
    %v2754 = vcvt.s32.f32 %v2746
    %v2755 = vcvt.s32.f32 %v2747
    %v2756 = vcvt.s32.f32 %v2748
    %v2757 = vcvt.s32.f32 %v2749
    %v2758 = vcvt.s32.f32 %v2750
    %v2759 = vcvt.s32.f32 %v2751
    %v2760 = vcvt.s32.f32 %v2752
    %v2761 = vcvt.s32.f32 %v2753
    %v2762 = vand.u32 %v46, 7
    %vm2763 = vcmp.eq.s32.totalorder %v2762, %v2722
    %v2764 = vsel %vm2763, 1, 0
    %v2765 = vcvt.s32.f32 %v2764
    %v2766 = vshra.s32 %v46, 3
    %vm2767 = vcmp.eq.s32.totalorder %v2766, %v2722
    %v2768 = vsel %vm2767, 1, 0
    %v2769 = vcvt.s32.f32 %v2768
    %2771 = vset.pattern.permute.xlu0 0
    %2772 = vperm.xlu0 %2771, %v2683
    %v2773 = vpop.permute.xlu0 %2772
    %2776 = vset.pattern.permute.xlu0 0
    %2777 = vperm.xlu0 %2776, %v2688
    %v2778 = vpop.permute.xlu0 %2777
    %2781 = vset.pattern.permute.xlu0 0
    %2782 = vperm.xlu0 %2781, %v2693
    %v2783 = vpop.permute.xlu0 %2782
    %2786 = vset.pattern.permute.xlu0 0
    %2787 = vperm.xlu0 %2786, %v2698
    %v2788 = vpop.permute.xlu0 %2787
    %2791 = vset.pattern.permute.xlu0 0
    %2792 = vperm.xlu0 %2791, %v2703
    %v2793 = vpop.permute.xlu0 %2792
    %2796 = vset.pattern.permute.xlu0 0
    %2797 = vperm.xlu0 %2796, %v2708
    %v2798 = vpop.permute.xlu0 %2797
    %2801 = vset.pattern.permute.xlu0 0
    %2802 = vperm.xlu0 %2801, %v2713
    %v2803 = vpop.permute.xlu0 %2802
    %2806 = vset.pattern.permute.xlu0 0
    %2807 = vperm.xlu0 %2806, %v2718
    %v2808 = vpop.permute.xlu0 %2807
    %v2810 = vmul.f32 %v2773, %v2754
    %v2811 = vmul.f32 %v2778, %v2755
    %v2812 = vmul.f32 %v2783, %v2756
    %v2813 = vmul.f32 %v2788, %v2757
    %v2814 = vmul.f32 %v2793, %v2758
    %v2815 = vmul.f32 %v2798, %v2759
    %v2816 = vmul.f32 %v2803, %v2760
    %v2817 = vmul.f32 %v2808, %v2761
    %vm2818 = vcmask 523264
    %v2820 = vsel %vm2818, %v2765, 0
    %2822 = vmatprep.subr.mxu0 0.0
    %2823 = vmatpush1.msra.mxu0 %v2810
    %2824 = vmatprep.subr.mxu0 0.0
    %2825 = vmatpush1.msra.mxu0 %v2811
    %2826 = vmatprep.subr.mxu0 0.0
    %2827 = vmatpush1.msra.mxu0 %v2812
    %2828 = vmatprep.subr.mxu0 0.0
    %2829 = vmatpush1.msra.mxu0 %v2813
    %2830 = vmatprep.subr.mxu0 0.0
    %2831 = vmatpush1.msra.mxu0 %v2814
    %2832 = vmatprep.subr.mxu0 0.0
    %2833 = vmatpush1.msra.mxu0 %v2815
    %2834 = vmatprep.subr.mxu0 0.0
    %2835 = vmatpush1.msra.mxu0 %v2816
    %2836 = vmatprep.subr.mxu0 0.0
    %2837 = vmatpush1.msra.mxu0 %v2817
    %2838 = vmatprep.subr.mxu0 0.0
    %2839 = vmatpush1.msra.mxu0 0.0
    %2840 = vmatprep.subr.mxu0 0.0
    %2841 = vmatpush1.msra.mxu0 0.0
    %2842 = vmatprep.subr.mxu0 0.0
    %2843 = vmatpush1.msra.mxu0 0.0
    %2844 = vmatprep.subr.mxu0 0.0
    %2845 = vmatpush1.msra.mxu0 0.0
    %2846 = vmatprep.subr.mxu0 0.0
    %2847 = vmatpush1.msra.mxu0 0.0
    %2848 = vmatprep.subr.mxu0 0.0
    %2849 = vmatpush1.msra.mxu0 0.0
    %2850 = vmatprep.subr.mxu0 0.0
    %2851 = vmatpush1.msra.mxu0 0.0
    %2852 = vmatprep.subr.mxu0 0.0
    %2853 = vmatpush1.msra.mxu0 0.0
    %2854 = vmatprep.subr.mxu0 0.0
    %2855 = vmatpush1.msra.mxu0 0.0
    %2856 = vmatprep.subr.mxu0 0.0
    %2857 = vmatpush1.msra.mxu0 0.0
    %2858 = vmatprep.subr.mxu0 0.0
    %2859 = vmatpush1.msra.mxu0 0.0
    %2860 = vmatprep.subr.mxu0 0.0
    %2861 = vmatpush1.msra.mxu0 0.0
    %2862 = vmatprep.subr.mxu0 0.0
    %2863 = vmatpush1.msra.mxu0 0.0
    %2864 = vmatprep.subr.mxu0 0.0
    %2865 = vmatpush1.msra.mxu0 0.0
    %2866 = vmatprep.subr.mxu0 0.0
    %2867 = vmatpush1.msra.mxu0 0.0
    %2868 = vmatprep.subr.mxu0 0.0
    %2869 = vmatpush1.msra.mxu0 0.0
    %2870 = vmatprep.subr.mxu0 0.0
    %2871 = vmatpush1.msra.mxu0 0.0
    %2872 = vmatprep.subr.mxu0 0.0
    %2873 = vmatpush1.msra.mxu0 0.0
    %2874 = vmatprep.subr.mxu0 0.0
    %2875 = vmatpush1.msra.mxu0 0.0
    %2876 = vmatprep.subr.mxu0 0.0
    %2877 = vmatpush1.msra.mxu0 0.0
    %2878 = vmatprep.subr.mxu0 0.0
    %2879 = vmatpush1.msra.mxu0 0.0
    %2880 = vmatprep.subr.mxu0 0.0
    %2881 = vmatpush1.msra.mxu0 0.0
    %2882 = vmatprep.subr.mxu0 0.0
    %2883 = vmatpush1.msra.mxu0 0.0
    %2884 = vmatprep.subr.mxu0 0.0
    %2885 = vmatpush1.msra.mxu0 0.0
    %2886 = vmatprep.mubr.f32.mxu0 0.0
    %2887 = vmatmul.mubr.f32.gmra.mrb[0].mxu0 %v2820
    %v2888 = vpop.f32.mrb[0].mxu0
    %v2889 = vadd.f32 0.0, %v2888
    %v2890 = vpop.f32.mrb[0].mxu0
    %2891 = vdwg.mxu0
    %vm2892 = vcmask 64512
    %v2893 = vsel %vm2892, %v2889, -inf
    %2894 = vmax.xlane.f32.xlu0 %v2893
    %v2895 = vpop.xlane.xlu0 %2894
    %v2896 = vsub.f32 %v2889, %v2895
    %v2897 = vmul.f32 %v2896, 1.442695
    %v2898 = vpow.pop %v2897
    %v2899 = vsel %vm2892, %v2898, 0.0
    %2900 = vadd.xlane.f32.xlu0 %v2899
    %v2901 = vpop.xlane.xlu0 %2900
    %v2902 = vrcp.pop %v2901
    %v2903 = vmul.f32 %v2898, %v2902
    %v2905 = vsel %vm2892, %v2903, 0
    %2907 = vmatprep.subr.mxu0 0.0
    %2908 = vmatpush1.msra.mxu0 %v2769
    %2909 = vmatprep.subr.mxu0 0.0
    %2910 = vmatpush1.msra.mxu0 0.0
    %2911 = vmatprep.subr.mxu0 0.0
    %2912 = vmatpush1.msra.mxu0 0.0
    %2913 = vmatprep.subr.mxu0 0.0
    %2914 = vmatpush1.msra.mxu0 0.0
    %2915 = vmatprep.subr.mxu0 0.0
    %2916 = vmatpush1.msra.mxu0 0.0
    %2917 = vmatprep.subr.mxu0 0.0
    %2918 = vmatpush1.msra.mxu0 0.0
    %2919 = vmatprep.subr.mxu0 0.0
    %2920 = vmatpush1.msra.mxu0 0.0
    %2921 = vmatprep.subr.mxu0 0.0
    %2922 = vmatpush1.msra.mxu0 0.0
    %2923 = vmatprep.subr.mxu0 0.0
    %2924 = vmatpush1.msra.mxu0 0.0
    %2925 = vmatprep.subr.mxu0 0.0
    %2926 = vmatpush1.msra.mxu0 0.0
    %2927 = vmatprep.subr.mxu0 0.0
    %2928 = vmatpush1.msra.mxu0 0.0
    %2929 = vmatprep.subr.mxu0 0.0
    %2930 = vmatpush1.msra.mxu0 0.0
    %2931 = vmatprep.subr.mxu0 0.0
    %2932 = vmatpush1.msra.mxu0 0.0
    %2933 = vmatprep.subr.mxu0 0.0
    %2934 = vmatpush1.msra.mxu0 0.0
    %2935 = vmatprep.subr.mxu0 0.0
    %2936 = vmatpush1.msra.mxu0 0.0
    %2937 = vmatprep.subr.mxu0 0.0
    %2938 = vmatpush1.msra.mxu0 0.0
    %2939 = vmatprep.subr.mxu0 0.0
    %2940 = vmatpush1.msra.mxu0 0.0
    %2941 = vmatprep.subr.mxu0 0.0
    %2942 = vmatpush1.msra.mxu0 0.0
    %2943 = vmatprep.subr.mxu0 0.0
    %2944 = vmatpush1.msra.mxu0 0.0
    %2945 = vmatprep.subr.mxu0 0.0
    %2946 = vmatpush1.msra.mxu0 0.0
    %2947 = vmatprep.subr.mxu0 0.0
    %2948 = vmatpush1.msra.mxu0 0.0
    %2949 = vmatprep.subr.mxu0 0.0
    %2950 = vmatpush1.msra.mxu0 0.0
    %2951 = vmatprep.subr.mxu0 0.0
    %2952 = vmatpush1.msra.mxu0 0.0
    %2953 = vmatprep.subr.mxu0 0.0
    %2954 = vmatpush1.msra.mxu0 0.0
    %2955 = vmatprep.subr.mxu0 0.0
    %2956 = vmatpush1.msra.mxu0 0.0
    %2957 = vmatprep.subr.mxu0 0.0
    %2958 = vmatpush1.msra.mxu0 0.0
    %2959 = vmatprep.subr.mxu0 0.0
    %2960 = vmatpush1.msra.mxu0 0.0
    %2961 = vmatprep.subr.mxu0 0.0
    %2962 = vmatpush1.msra.mxu0 0.0
    %2963 = vmatprep.subr.mxu0 0.0
    %2964 = vmatpush1.msra.mxu0 0.0
    %2965 = vmatprep.subr.mxu0 0.0
    %2966 = vmatpush1.msra.mxu0 0.0
    %2967 = vmatprep.subr.mxu0 0.0
    %2968 = vmatpush1.msra.mxu0 0.0
    %2969 = vmatprep.subr.mxu0 0.0
    %2970 = vmatpush1.msra.mxu0 0.0
    %2971 = vmatprep.mubr.f32.mxu0 0.0
    %2972 = vmatmul.mubr.f32.gmra.mrb[0].mxu0 %v2905
    %v2973 = vpop.f32.mrb[0].mxu0
    %v2974 = vadd.f32 0.0, %v2973
    %v2975 = vpop.f32.mrb[0].mxu0
    %2976 = vdwg.mxu0
    %v2977 = vmul.f32 %v2765, %v2974
    %v2979 = vsel %vm2818, %v2977, 0
    %2981 = vmatprep.subr.mxu0 0.0
    %2982 = vmatpush1.msra.mxu0 %v640
    %2983 = vmatprep.subr.mxu0 0.0
    %2984 = vmatpush1.msra.mxu0 %v803
    %2985 = vmatprep.subr.mxu0 0.0
    %2986 = vmatpush1.msra.mxu0 %v966
    %2987 = vmatprep.subr.mxu0 0.0
    %2988 = vmatpush1.msra.mxu0 %v1129
    %2989 = vmatprep.subr.mxu0 0.0
    %2990 = vmatpush1.msra.mxu0 %v1292
    %2991 = vmatprep.subr.mxu0 0.0
    %2992 = vmatpush1.msra.mxu0 %v1455
    %2993 = vmatprep.subr.mxu0 0.0
    %2994 = vmatpush1.msra.mxu0 %v1618
    %2995 = vmatprep.subr.mxu0 0.0
    %2996 = vmatpush1.msra.mxu0 %v1781
    %2997 = vmatprep.subr.mxu0 0.0
    %2998 = vmatpush1.msra.mxu0 0.0
    %2999 = vmatprep.subr.mxu0 0.0
    %3000 = vmatpush1.msra.mxu0 0.0
    %3001 = vmatprep.subr.mxu0 0.0
    %3002 = vmatpush1.msra.mxu0 0.0
    %3003 = vmatprep.subr.mxu0 0.0
    %3004 = vmatpush1.msra.mxu0 0.0
    %3005 = vmatprep.subr.mxu0 0.0
    %3006 = vmatpush1.msra.mxu0 0.0
    %3007 = vmatprep.subr.mxu0 0.0
    %3008 = vmatpush1.msra.mxu0 0.0
    %3009 = vmatprep.subr.mxu0 0.0
    %3010 = vmatpush1.msra.mxu0 0.0
    %3011 = vmatprep.subr.mxu0 0.0
    %3012 = vmatpush1.msra.mxu0 0.0
    %3013 = vmatprep.subr.mxu0 0.0
    %3014 = vmatpush1.msra.mxu0 0.0
    %3015 = vmatprep.subr.mxu0 0.0
    %3016 = vmatpush1.msra.mxu0 0.0
    %3017 = vmatprep.subr.mxu0 0.0
    %3018 = vmatpush1.msra.mxu0 0.0
    %3019 = vmatprep.subr.mxu0 0.0
    %3020 = vmatpush1.msra.mxu0 0.0
    %3021 = vmatprep.subr.mxu0 0.0
    %3022 = vmatpush1.msra.mxu0 0.0
    %3023 = vmatprep.subr.mxu0 0.0
    %3024 = vmatpush1.msra.mxu0 0.0
    %3025 = vmatprep.subr.mxu0 0.0
    %3026 = vmatpush1.msra.mxu0 0.0
    %3027 = vmatprep.subr.mxu0 0.0
    %3028 = vmatpush1.msra.mxu0 0.0
    %3029 = vmatprep.subr.mxu0 0.0
    %3030 = vmatpush1.msra.mxu0 0.0
    %3031 = vmatprep.subr.mxu0 0.0
    %3032 = vmatpush1.msra.mxu0 0.0
    %3033 = vmatprep.subr.mxu0 0.0
    %3034 = vmatpush1.msra.mxu0 0.0
    %3035 = vmatprep.subr.mxu0 0.0
    %3036 = vmatpush1.msra.mxu0 0.0
    %3037 = vmatprep.subr.mxu0 0.0
    %3038 = vmatpush1.msra.mxu0 0.0
    %3039 = vmatprep.subr.mxu0 0.0
    %3040 = vmatpush1.msra.mxu0 0.0
    %3041 = vmatprep.subr.mxu0 0.0
    %3042 = vmatpush1.msra.mxu0 0.0
    %3043 = vmatprep.subr.mxu0 0.0
    %3044 = vmatpush1.msra.mxu0 0.0
    %3045 = vmatprep.mubr.f32.mxu0 0.0
    %3046 = vmatmul.mubr.f32.gmra.mrb[0].mxu0 %v2979
    %v3047 = vpop.f32.mrb[0].mxu0
    %v3048 = vadd.f32 0.0, %v3047
    %v3049 = vpop.f32.mrb[0].mxu0
    %3050 = vdwg.mxu0
    %3051 = vmatprep.subr.mxu0 0.0
    %3052 = vmatpush1.msra.mxu0 %v1781
    %3053 = vmatprep.subr.mxu0 0.0
    %3054 = vmatpush1.msra.mxu0 %v1618
    %3055 = vmatprep.subr.mxu0 0.0
    %3056 = vmatpush1.msra.mxu0 %v1455
    %3057 = vmatprep.subr.mxu0 0.0
    %3058 = vmatpush1.msra.mxu0 %v1292
    %3059 = vmatprep.subr.mxu0 0.0
    %3060 = vmatpush1.msra.mxu0 %v1129
    %3061 = vmatprep.subr.mxu0 0.0
    %3062 = vmatpush1.msra.mxu0 %v966
    %3063 = vmatprep.subr.mxu0 0.0
    %3064 = vmatpush1.msra.mxu0 %v803
    %3065 = vmatprep.subr.mxu0 0.0
    %3066 = vmatpush1.msra.mxu0 %v640
    %3067 = vmatprep.subr.mxu0 0.0
    %3068 = vmatpush1.msra.mxu0 0.0
    %3069 = vmatprep.subr.mxu0 0.0
    %3070 = vmatpush1.msra.mxu0 0.0
    %3071 = vmatprep.subr.mxu0 0.0
    %3072 = vmatpush1.msra.mxu0 0.0
    %3073 = vmatprep.subr.mxu0 0.0
    %3074 = vmatpush1.msra.mxu0 0.0
    %3075 = vmatprep.subr.mxu0 0.0
    %3076 = vmatpush1.msra.mxu0 0.0
    %3077 = vmatprep.subr.mxu0 0.0
    %3078 = vmatpush1.msra.mxu0 0.0
    %3079 = vmatprep.subr.mxu0 0.0
    %3080 = vmatpush1.msra.mxu0 0.0
    %3081 = vmatprep.subr.mxu0 0.0
    %3082 = vmatpush1.msra.mxu0 0.0
    %3083 = vmatprep.subr.mxu0 0.0
    %3084 = vmatpush1.msra.mxu0 0.0
    %3085 = vmatprep.subr.mxu0 0.0
    %3086 = vmatpush1.msra.mxu0 0.0
    %3087 = vmatprep.subr.mxu0 0.0
    %3088 = vmatpush1.msra.mxu0 0.0
    %3089 = vmatprep.subr.mxu0 0.0
    %3090 = vmatpush1.msra.mxu0 0.0
    %3091 = vmatprep.subr.mxu0 0.0
    %3092 = vmatpush1.msra.mxu0 0.0
    %3093 = vmatprep.subr.mxu0 0.0
    %3094 = vmatpush1.msra.mxu0 0.0
    %3095 = vmatprep.subr.mxu0 0.0
    %3096 = vmatpush1.msra.mxu0 0.0
    %3097 = vmatprep.subr.mxu0 0.0
    %3098 = vmatpush1.msra.mxu0 0.0
    %3099 = vmatprep.subr.mxu0 0.0
    %3100 = vmatpush1.msra.mxu0 0.0
    %3101 = vmatprep.subr.mxu0 0.0
    %3102 = vmatpush1.msra.mxu0 0.0
    %3103 = vmatprep.subr.mxu0 0.0
    %3104 = vmatpush1.msra.mxu0 0.0
    %3105 = vmatprep.subr.mxu0 0.0
    %3106 = vmatpush1.msra.mxu0 0.0
    %3107 = vmatprep.subr.mxu0 0.0
    %3108 = vmatpush1.msra.mxu0 0.0
    %3109 = vmatprep.subr.mxu0 0.0
    %3110 = vmatpush1.msra.mxu0 0.0
    %3111 = vmatprep.subr.mxu0 0.0
    %3112 = vmatpush1.msra.mxu0 0.0
    %3113 = vmatprep.subr.mxu0 0.0
    %3114 = vmatpush1.msra.mxu0 0.0
    %3115 = vmatprep.mubr.f32.mxu0 0.0
    %3116 = vmatmul.mubr.f32.gmra.mrb[0].mxu0 %v2979
    %v3117 = vpop.f32.mrb[0].mxu0
    %v3118 = vadd.f32 0.0, %v3117
    %v3119 = vpop.f32.mrb[0].mxu0
    %3120 = vdwg.mxu0
    %v3121 = vld [vmem:[%s4] sm:$0xff]
    %v3122 = vld [vmem:[%s4 + $0x8] sm:$0xff]
    %v3123 = vld [vmem:[%s4 + $0x10] sm:$0xff]
    %v3124 = vld [vmem:[%s4 + $0x18] sm:$0xff]
    %v3125 = vld [vmem:[%s4 + $0x20] sm:$0xff]
    %v3126 = vld [vmem:[%s4 + $0x28] sm:$0xff]
    %v3127 = vld [vmem:[%s4 + $0x30] sm:$0xff]
    %v3128 = vld [vmem:[%s4 + $0x38] sm:$0xff]
    %v3129 = vld [vmem:[%s4 + $0x40] sm:$0xff]
    %v3130 = vld [vmem:[%s4 + $0x48] sm:$0xff]
    %v3131 = vld [vmem:[%s4 + $0x50] sm:$0xff]
    %v3132 = vld [vmem:[%s4 + $0x58] sm:$0xff]
    %v3133 = vld [vmem:[%s4 + $0x60] sm:$0xff]
    %v3134 = vld [vmem:[%s4 + $0x68] sm:$0xff]
    %v3135 = vld [vmem:[%s4 + $0x70] sm:$0xff]
    %v3136 = vld [vmem:[%s4 + $0x78] sm:$0xff]
    %v3137 = vld [vmem:[%s4 + $0x80] sm:$0xff]
    %v3138 = vld [vmem:[%s4 + $0x88] sm:$0xff]
    %v3139 = vld [vmem:[%s4 + $0x90] sm:$0xff]
    %v3140 = vld [vmem:[%s4 + $0x98] sm:$0xff]
    %v3141 = vld [vmem:[%s4 + $0xa0] sm:$0xff]
    %v3142 = vld [vmem:[%s4 + $0xa8] sm:$0xff]
    %v3143 = vld [vmem:[%s4 + $0xb0] sm:$0xff]
    %v3144 = vld [vmem:[%s4 + $0xb8] sm:$0xff]
    %v3145 = vld [vmem:[%s4 + $0xc0] sm:$0xff]
    %v3146 = vld [vmem:[%s4 + $0xc8] sm:$0xff]
    %v3147 = vld [vmem:[%s4 + $0xd0] sm:$0xff]
    %v3148 = vld [vmem:[%s4 + $0xd8] sm:$0xff]
    %v3149 = vld [vmem:[%s4 + $0xe0] sm:$0xff]
    %v3150 = vld [vmem:[%s4 + $0xe8] sm:$0xff]
    %v3151 = vld [vmem:[%s4 + $0xf0] sm:$0xff]
    %v3152 = vld [vmem:[%s4 + $0xf8] sm:$0xff]
    %3153 = vmatprep.subr.mxu0 0.0
    %3154 = vmatpush1.msra.mxu0 %v3137
    %3155 = vmatprep.subr.mxu0 0.0
    %3156 = vmatpush1.msra.mxu0 %v3138
    %3157 = vmatprep.subr.mxu0 0.0
    %3158 = vmatpush1.msra.mxu0 %v3139
    %3159 = vmatprep.subr.mxu0 0.0
    %3160 = vmatpush1.msra.mxu0 %v3140
    %3161 = vmatprep.subr.mxu0 0.0
    %3162 = vmatpush1.msra.mxu0 %v3141
    %3163 = vmatprep.subr.mxu0 0.0
    %3164 = vmatpush1.msra.mxu0 %v3142
    %3165 = vmatprep.subr.mxu0 0.0
    %3166 = vmatpush1.msra.mxu0 %v3143
    %3167 = vmatprep.subr.mxu0 0.0
    %3168 = vmatpush1.msra.mxu0 %v3144
    %3169 = vmatprep.subr.mxu0 0.0
    %3170 = vmatpush1.msra.mxu0 %v3145
    %3171 = vmatprep.subr.mxu0 0.0
    %3172 = vmatpush1.msra.mxu0 %v3146
    %3173 = vmatprep.subr.mxu0 0.0
    %3174 = vmatpush1.msra.mxu0 %v3147
    %3175 = vmatprep.subr.mxu0 0.0
    %3176 = vmatpush1.msra.mxu0 %v3148
    %3177 = vmatprep.subr.mxu0 0.0
    %3178 = vmatpush1.msra.mxu0 %v3149
    %3179 = vmatprep.subr.mxu0 0.0
    %3180 = vmatpush1.msra.mxu0 %v3150
    %3181 = vmatprep.subr.mxu0 0.0
    %3182 = vmatpush1.msra.mxu0 %v3151
    %3183 = vmatprep.subr.mxu0 0.0
    %3184 = vmatpush1.msra.mxu0 %v3152
    %3185 = vmatprep.subr.mxu0 0.0
    %3186 = vmatpush1.msra.mxu0 0.0
    %3187 = vmatprep.subr.mxu0 0.0
    %3188 = vmatpush1.msra.mxu0 0.0
    %3189 = vmatprep.subr.mxu0 0.0
    %3190 = vmatpush1.msra.mxu0 0.0
    %3191 = vmatprep.subr.mxu0 0.0
    %3192 = vmatpush1.msra.mxu0 0.0
    %3193 = vmatprep.subr.mxu0 0.0
    %3194 = vmatpush1.msra.mxu0 0.0
    %3195 = vmatprep.subr.mxu0 0.0
    %3196 = vmatpush1.msra.mxu0 0.0
    %3197 = vmatprep.subr.mxu0 0.0
    %3198 = vmatpush1.msra.mxu0 0.0
    %3199 = vmatprep.subr.mxu0 0.0
    %3200 = vmatpush1.msra.mxu0 0.0
    %3201 = vmatprep.subr.mxu0 0.0
    %3202 = vmatpush1.msra.mxu0 0.0
    %3203 = vmatprep.subr.mxu0 0.0
    %3204 = vmatpush1.msra.mxu0 0.0
    %3205 = vmatprep.subr.mxu0 0.0
    %3206 = vmatpush1.msra.mxu0 0.0
    %3207 = vmatprep.subr.mxu0 0.0
    %3208 = vmatpush1.msra.mxu0 0.0
    %3209 = vmatprep.subr.mxu0 0.0
    %3210 = vmatpush1.msra.mxu0 0.0
    %3211 = vmatprep.subr.mxu0 0.0
    %3212 = vmatpush1.msra.mxu0 0.0
    %3213 = vmatprep.subr.mxu0 0.0
    %3214 = vmatpush1.msra.mxu0 0.0
    %3215 = vmatprep.subr.mxu0 0.0
    %3216 = vmatpush1.msra.mxu0 0.0
    %3217 = vmatprep.mubr.f32.mxu0 0.0
    %3218 = vmatmul.mubr.f32.gmra.mrb[0].mxu0 %v3118
    %v3219 = vpop.f32.mrb[0].mxu0
    %v3220 = vadd.f32 0.0, %v3219
    %v3221 = vpop.f32.mrb[0].mxu0
    %3222 = vdwg.mxu0
    %3223 = vmatprep.subr.mxu0 0.0
    %3224 = vmatpush1.msra.mxu0 %v3121
    %3225 = vmatprep.subr.mxu0 0.0
    %3226 = vmatpush1.msra.mxu0 %v3122
    %3227 = vmatprep.subr.mxu0 0.0
    %3228 = vmatpush1.msra.mxu0 %v3123
    %3229 = vmatprep.subr.mxu0 0.0
    %3230 = vmatpush1.msra.mxu0 %v3124
    %3231 = vmatprep.subr.mxu0 0.0
    %3232 = vmatpush1.msra.mxu0 %v3125
    %3233 = vmatprep.subr.mxu0 0.0
    %3234 = vmatpush1.msra.mxu0 %v3126
    %3235 = vmatprep.subr.mxu0 0.0
    %3236 = vmatpush1.msra.mxu0 %v3127
    %3237 = vmatprep.subr.mxu0 0.0
    %3238 = vmatpush1.msra.mxu0 %v3128
    %3239 = vmatprep.subr.mxu0 0.0
    %3240 = vmatpush1.msra.mxu0 %v3129
    %3241 = vmatprep.subr.mxu0 0.0
    %3242 = vmatpush1.msra.mxu0 %v3130
    %3243 = vmatprep.subr.mxu0 0.0
    %3244 = vmatpush1.msra.mxu0 %v3131
    %3245 = vmatprep.subr.mxu0 0.0
    %3246 = vmatpush1.msra.mxu0 %v3132
    %3247 = vmatprep.subr.mxu0 0.0
    %3248 = vmatpush1.msra.mxu0 %v3133
    %3249 = vmatprep.subr.mxu0 0.0
    %3250 = vmatpush1.msra.mxu0 %v3134
    %3251 = vmatprep.subr.mxu0 0.0
    %3252 = vmatpush1.msra.mxu0 %v3135
    %3253 = vmatprep.subr.mxu0 0.0
    %3254 = vmatpush1.msra.mxu0 %v3136
    %3255 = vmatprep.subr.mxu0 0.0
    %3256 = vmatpush1.msra.mxu0 0.0
    %3257 = vmatprep.subr.mxu0 0.0
    %3258 = vmatpush1.msra.mxu0 0.0
    %3259 = vmatprep.subr.mxu0 0.0
    %3260 = vmatpush1.msra.mxu0 0.0
    %3261 = vmatprep.subr.mxu0 0.0
    %3262 = vmatpush1.msra.mxu0 0.0
    %3263 = vmatprep.subr.mxu0 0.0
    %3264 = vmatpush1.msra.mxu0 0.0
    %3265 = vmatprep.subr.mxu0 0.0
    %3266 = vmatpush1.msra.mxu0 0.0
    %3267 = vmatprep.subr.mxu0 0.0
    %3268 = vmatpush1.msra.mxu0 0.0
    %3269 = vmatprep.subr.mxu0 0.0
    %3270 = vmatpush1.msra.mxu0 0.0
    %3271 = vmatprep.subr.mxu0 0.0
    %3272 = vmatpush1.msra.mxu0 0.0
    %3273 = vmatprep.subr.mxu0 0.0
    %3274 = vmatpush1.msra.mxu0 0.0
    %3275 = vmatprep.subr.mxu0 0.0
    %3276 = vmatpush1.msra.mxu0 0.0
    %3277 = vmatprep.subr.mxu0 0.0
    %3278 = vmatpush1.msra.mxu0 0.0
    %3279 = vmatprep.subr.mxu0 0.0
    %3280 = vmatpush1.msra.mxu0 0.0
    %3281 = vmatprep.subr.mxu0 0.0
    %3282 = vmatpush1.msra.mxu0 0.0
    %3283 = vmatprep.subr.mxu0 0.0
    %3284 = vmatpush1.msra.mxu0 0.0
    %3285 = vmatprep.subr.mxu0 0.0
    %3286 = vmatpush1.msra.mxu0 0.0
    %3287 = vmatprep.mubr.f32.mxu0 0.0
    %3288 = vmatmul.mubr.f32.gmra.mrb[0].mxu0 %v3048
    %v3289 = vpop.f32.mrb[0].mxu0
    %v3290 = vadd.f32 %v3220, %v3289
    %v3291 = vpop.f32.mrb[0].mxu0
    %3292 = vdwg.mxu0
    %v3293 = vadd.f32 %v3290, %v243
    %vm3294 = vcmask 15360
    %3295 = vst.msk [vmem:[%s6] sm:$0xff] %vm3294, %v3293
    // Predicated region
    $region30: #{gru_random_att_forward.1} parent=1 // pred_check
      _
    $region31: #{gru_random_att_forward.1} parent=1 // pred_check_branch
      %3297 = sbr.rel (0) target = $region33
    $region32: #{gru_random_att_forward.1} parent=1 // pred_region
      _
    $region33: #{gru_random_att_forward.1} parent=1 // pred_fallthru
      _
    // Predicated region
    $region34: #{gru_random_att_forward.1} parent=1 // pred_check
      _
    $region35: #{gru_random_att_forward.1} parent=1 // pred_check_branch
      %3299 = sbr.rel (0) target = $region37
    $region36: #{gru_random_att_forward.1} parent=1 // pred_region
      _
    $region37: #{gru_random_att_forward.1} parent=1 // pred_fallthru
      _
    %3300 = vsyncpa [#allocation3], 1

</llo_original>
